<compile_context>
chip_gen: v7x
topology: tpu7x:2x2x1
jax: 0.10.0
libtpu: 0.0.40
codegen_flags: <defaults>
</compile_context>

<pallas_src>
import math
from functools import partial

import jax
import jax.numpy as jnp
from jax.experimental import pallas as pl
from jax.experimental.pallas import tpu as pltpu

BITS = 8
QMAX = float(2 ** BITS - 1)     # 255
QMIN = float(-(2 ** BITS))      # -256
QDEN = QMAX - QMIN              # 511
EPS = 1e-6
NEG_INF = -1e9
GELU_C = float(math.sqrt(2.0 / math.pi))


# ------------------------------ in-kernel helpers ------------------------------

def _addnorm(x, a, b):
    """a * (x - mean) / (std + eps) + b with torch-style unbiased std (N-1)."""
    h = x.shape[-1]
    mean = jnp.mean(x, axis=-1, keepdims=True)
    var = jnp.sum((x - mean) ** 2, axis=-1, keepdims=True) / (h - 1)
    return a * (x - mean) / (jnp.sqrt(var) + EPS) + b


def _maxabs(v):
    """Global max|v|, rank preserved via keepdims (lane reduce first, then the rest)."""
    m = jnp.abs(v)
    for ax in range(v.ndim - 1, -1, -1):
        m = jnp.max(m, axis=ax, keepdims=True)
    return m


def _scale(m):
    s = 2.0 * m / QDEN
    return jnp.where(s == 0.0, jnp.float32(1e-5), s)


def _quantize(v, s):
    inv = 1.0 / s                                   # one divide on a (1,...,1) tile
    return jnp.clip(jnp.round(v * inv), QMIN, QMAX) * s


def _gelu(x):
    return 0.5 * x * (1.0 + jnp.tanh(GELU_C * (x + 0.044715 * x ** 3)))


# ------------------------------ fused whole-model kernel -----------------------

def _bert_kernel(x_ref, km_ref,
                 a1_ref, b1_ref, wq_ref, bq_ref, wk_ref, bk_ref, wv_ref, bv_ref,
                 wo_ref, bo_ref, a2_ref, b2_ref, w1_ref, bf1_ref, w2_ref, bf2_ref,
                 fcw_ref, fcb_ref, o_ref, *, B, S, heads, dk, L):
    x = x_ref[...]                       # (B*S, H) activations, VMEM-resident throughout
    km = km_ref[...]                     # (B*heads, 1, S) key mask
    inv_sqrt_dk = 1.0 / math.sqrt(dk)

    for l in range(L):                   # static unroll over the 2 encoder layers
        # -------- attention sublayer: x + Wo(quant(attn(quant(addNorm(x))))) --------
        nx = _addnorm(x, a1_ref[l], b1_ref[l])
        nq = _quantize(nx, _scale(_maxabs(nx)))      # q==k==v input -> one global scale

        q = jnp.dot(nq, wq_ref[l], preferred_element_type=jnp.float32) + bq_ref[l]
        k = jnp.dot(nq, wk_ref[l], preferred_element_type=jnp.float32) + bk_ref[l]
        v = jnp.dot(nq, wv_ref[l], preferred_element_type=jnp.float32) + bv_ref[l]

        # (B*heads, S, dk) stacks via static slices (one-time, tiny relayout)
        def to_heads(t):
            return jnp.stack([t[b * S:(b + 1) * S, h * dk:(h + 1) * dk]
                              for b in range(B) for h in range(heads)], axis=0)

        q_bh = to_heads(q) * inv_sqrt_dk             # 1/sqrt(dk) folded into q
        k_bh = to_heads(k)
        v_bh = to_heads(v)

        # ONE batched QK^T, one masked softmax, ONE batched PV
        sc = jnp.einsum('bqd,bkd->bqk', q_bh, k_bh,
                        preferred_element_type=jnp.float32)       # (BH, S, S)
        sc = jnp.where(km == 0.0, NEG_INF, sc)                    # masked_fill(mask==0,-1e9)
        mx = jnp.max(sc, axis=-1, keepdims=True)
        e = jnp.exp(sc - mx)
        p = e * (1.0 / jnp.sum(e, axis=-1, keepdims=True))
        # (torch quantizes `probs` but never uses the result -> skipped)
        ctx = jnp.einsum('bqk,bkd->bqd', p, v_bh,
                         preferred_element_type=jnp.float32)      # (BH, S, dk)

        ctxq = _quantize(ctx, _scale(_maxabs(ctx)))               # single global scale/reduce

        # concat heads back to (B*S, H), ONE output projection matmul + residual
        ctx_cat = jnp.concatenate(
            [jnp.concatenate([ctxq[b * heads + h] for h in range(heads)], axis=1)
             for b in range(B)], axis=0)
        x = x + jnp.dot(ctx_cat, wo_ref[l],
                        preferred_element_type=jnp.float32) + bo_ref[l]

        # -------- FFN sublayer: x + quant(W2(gelu(W1(quant(addNorm(x)))))) ----------
        nx2 = _addnorm(x, a2_ref[l], b2_ref[l])
        nq2 = _quantize(nx2, _scale(_maxabs(nx2)))
        h1 = jnp.dot(nq2, w1_ref[l], preferred_element_type=jnp.float32) + bf1_ref[l]
        h2 = jnp.dot(_gelu(h1), w2_ref[l], preferred_element_type=jnp.float32) + bf2_ref[l]
        x = x + _quantize(h2, _scale(_maxabs(h2)))
        # transformerBlock outer dropout / all dropouts: inference identity

    # classifier head on the CLS rows — fused, no extra pallas_call
    x_cls = jnp.concatenate([x[b * S:b * S + 1, :] for b in range(B)], axis=0)   # (B, H)
    o_ref[...] = jnp.dot(x_cls, fcw_ref[...],
                         preferred_element_type=jnp.float32) + fcb_ref[...]


# ------------------------------ pallas_call wrapper -----------------------------

def _full_spec(shape):
    nd = len(shape)
    return pl.BlockSpec(shape, lambda i, _nd=nd: (0,) * _nd)


def bert_pallas_forward(params, token_ids, labels=None, heads=4):
    B, S = token_ids.shape
    H = params["emb"].shape[1]
    L = len(params["layers"])
    D = params["layers"][0]["w1"].shape[1]
    dk = H // heads
    M = B * S

    # key mask (B,S) -> (B*heads, 1, S); tiny host/XLA glue, broadcast in-kernel
    km = (token_ids > 0).astype(jnp.float32)
    km_bh = jnp.repeat(km, heads, axis=0)[:, None, :]

    # embedding lookup (gather) — plain-JAX glue; embedding dropout = identity
    x = jnp.take(params["emb"], token_ids, axis=0).reshape(M, H)

    ls = params["layers"]
    stk = lambda name, shape: jnp.stack([lay[name].reshape(shape) for lay in ls])
    args = [
        x, km_bh,
        stk("a1", (1, H)), stk("b1", (1, H)),
        stk("wq", (H, H)), stk("bq", (1, H)),
        stk("wk", (H, H)), stk("bk", (1, H)),
        stk("wv", (H, H)), stk("bv", (1, H)),
        stk("wo", (H, H)), stk("bo", (1, H)),
        stk("a2", (1, H)), stk("b2", (1, H)),
        stk("w1", (H, D)), stk("bf1", (1, D)),
        stk("w2", (D, H)), stk("bf2", (1, H)),
        params["fc_w"], params["fc_b"].reshape(1, 2),
    ]

    kern = partial(_bert_kernel, B=B, S=S, heads=heads, dk=dk, L=L)
    logits = pl.pallas_call(
        kern,
        out_shape=jax.ShapeDtypeStruct((B, 2), jnp.float32),
        grid=(1,),
        in_specs=[_full_spec(a.shape) for a in args],
        out_specs=_full_spec((B, 2)),
        compiler_params=pltpu.CompilerParams(dimension_semantics=("arbitrary",)),
    )(*args)

    loss = None
    if labels is not None:
        logp = jax.nn.log_softmax(logits, axis=-1)
        loss = -jnp.mean(jnp.take_along_axis(logp, labels[:, None], axis=1))
    return loss, logits


# ------------------------------ pure-JAX reference (correctness guard) ----------

def reference_forward(params, token_ids, heads=4):
    B, S = token_ids.shape
    H = params["emb"].shape[1]
    dk = H // heads
    km = (token_ids > 0).astype(jnp.float32)
    x = jnp.take(params["emb"], token_ids, axis=0)                  # (B, S, H)

    def addnorm(t, a, b):
        mean = t.mean(-1, keepdims=True)
        var = jnp.sum((t - mean) ** 2, -1, keepdims=True) / (t.shape[-1] - 1)
        return a * (t - mean) / (jnp.sqrt(var) + EPS) + b

    def quant(v):
        m = jnp.max(jnp.abs(v))
        s = 2.0 * m / QDEN
        s = jnp.where(s == 0.0, 1e-5, s)
        return jnp.clip(jnp.round(v / s), QMIN, QMAX) * s

    for layer in params["layers"]:
        nx = quant(addnorm(x, layer["a1"], layer["b1"]))
        q = nx @ layer["wq"] + layer["bq"]
        k = nx @ layer["wk"] + layer["bk"]
        v = nx @ layer["wv"] + layer["bv"]
        split = lambda t: t.reshape(B, S, heads, dk).transpose(0, 2, 1, 3)
        qh, kh, vh = split(q), split(k), split(v)
        sc = jnp.einsum('bhqd,bhkd->bhqk', qh, kh) / math.sqrt(dk)
        sc = jnp.where(km[:, None, None, :] == 0.0, NEG_INF, sc)
        p = jax.nn.softmax(sc, axis=-1)
        ctx = quant(jnp.einsum('bhqk,bhkd->bhqd', p, vh))
        cat = ctx.transpose(0, 2, 1, 3).reshape(B, S, H)
        x = x + cat @ layer["wo"] + layer["bo"]
        nx2 = quant(addnorm(x, layer["a2"], layer["b2"]))
        h1 = nx2 @ layer["w1"] + layer["bf1"]
        g = 0.5 * h1 * (1.0 + jnp.tanh(GELU_C * (h1 + 0.044715 * h1 ** 3)))
        h2 = g @ layer["w2"] + layer["bf2"]
        x = x + quant(h2)
    return x[:, 0, :] @ params["fc_w"] + params["fc_b"]


# ------------------------------ params ------------------------------------------

def init_params(key, vocab_size, hidden, n_layers, d_ff):
    def nrm(k, shape, scale=0.02):
        return scale * jax.random.normal(k, shape, dtype=jnp.float32)

    keys = jax.random.split(key, n_layers + 2)
    emb = nrm(keys[0], (vocab_size, hidden), 1.0)
    emb = emb.at[0].set(0.0)                 # padding_idx=0 -> zero row
    layers = []
    for l in range(n_layers):
        k = jax.random.split(keys[1 + l], 6)
        layers.append(dict(
            a1=jnp.ones((hidden,), jnp.float32), b1=jnp.zeros((hidden,), jnp.float32),
            wq=nrm(k[0], (hidden, hidden)), bq=jnp.zeros((hidden,), jnp.float32),
            wk=nrm(k[1], (hidden, hidden)), bk=jnp.zeros((hidden,), jnp.float32),
            wv=nrm(k[2], (hidden, hidden)), bv=jnp.zeros((hidden,), jnp.float32),
            wo=nrm(k[3], (hidden, hidden)), bo=jnp.zeros((hidden,), jnp.float32),
            a2=jnp.ones((hidden,), jnp.float32), b2=jnp.zeros((hidden,), jnp.float32),
            w1=nrm(k[4], (hidden, d_ff)), bf1=jnp.zeros((d_ff,), jnp.float32),
            w2=nrm(k[5], (d_ff, hidden)), bf2=jnp.zeros((hidden,), jnp.float32),
        ))
    fc_w = nrm(keys[-1], (hidden, 2))
    fc_b = jnp.zeros((2,), jnp.float32)
    return dict(emb=emb, layers=layers, fc_w=fc_w, fc_b=fc_b)


# ------------------------------ main ---------------------------------------------

if __name__ == "__main__":
    VOCAB, HIDDEN, N_LAYERS, HEADS = 50, 32, 2, 4
    D_FF = HIDDEN * 4
    B, S = 2, 8

    key = jax.random.PRNGKey(0)
    kp, kt, kl = jax.random.split(key, 3)
    params = init_params(kp, VOCAB, HIDDEN, N_LAYERS, D_FF)

    token_ids = jax.random.randint(kt, (B, S), 1, VOCAB, dtype=jnp.int32)
    token_ids = token_ids.at[:, -2:].set(0)     # padding tokens exercise the mask
    labels = jax.random.randint(kl, (B,), 0, 2, dtype=jnp.int32)

    fwd = jax.jit(partial(bert_pallas_forward, heads=HEADS))
    loss, logits = fwd(params, token_ids, labels)
    jax.block_until_ready((loss, logits))

    ref_logits = reference_forward(params, token_ids, heads=HEADS)

    assert logits.shape == (B, 2) and loss.shape == ()
    assert bool(jnp.all(jnp.isfinite(logits))) and bool(jnp.isfinite(loss))
    assert bool(jnp.allclose(logits, ref_logits, atol=1e-3, rtol=1e-2)), (logits, ref_logits)
    print("KERNEL_OK")
</pallas_src>

<mosaic_0001>
module attributes {stable_mosaic.version = 11 : i64} {
  func.func @_bert_kernel(%arg0: i32, %arg1: memref<16x32xf32, #tpu.memory_space<vmem>>, %arg2: memref<8x1x8xf32, #tpu.memory_space<vmem>>, %arg3: memref<2x1x32xf32, #tpu.memory_space<vmem>>, %arg4: memref<2x1x32xf32, #tpu.memory_space<vmem>>, %arg5: memref<2x32x32xf32, #tpu.memory_space<vmem>>, %arg6: memref<2x1x32xf32, #tpu.memory_space<vmem>>, %arg7: memref<2x32x32xf32, #tpu.memory_space<vmem>>, %arg8: memref<2x1x32xf32, #tpu.memory_space<vmem>>, %arg9: memref<2x32x32xf32, #tpu.memory_space<vmem>>, %arg10: memref<2x1x32xf32, #tpu.memory_space<vmem>>, %arg11: memref<2x32x32xf32, #tpu.memory_space<vmem>>, %arg12: memref<2x1x32xf32, #tpu.memory_space<vmem>>, %arg13: memref<2x1x32xf32, #tpu.memory_space<vmem>>, %arg14: memref<2x1x32xf32, #tpu.memory_space<vmem>>, %arg15: memref<2x32x128xf32, #tpu.memory_space<vmem>>, %arg16: memref<2x1x128xf32, #tpu.memory_space<vmem>>, %arg17: memref<2x128x32xf32, #tpu.memory_space<vmem>>, %arg18: memref<2x1x32xf32, #tpu.memory_space<vmem>>, %arg19: memref<32x2xf32, #tpu.memory_space<vmem>>, %arg20: memref<1x2xf32, #tpu.memory_space<vmem>>, %arg21: memref<2x2xf32, #tpu.memory_space<vmem>>) attributes {dimension_semantics = [#tpu.dimension_semantics<arbitrary>], iteration_bounds = array<i64: 1>, scalar_prefetch = 0 : i64, scratch_operands = 0 : i64, tpu.core_type = #tpu.core_type<tc>, window_params = [{pipeline_mode = #tpu.pipeline_mode<synchronous>, transform_indices = @transform_0, window_bounds = array<i64: 16, 32>}, {pipeline_mode = #tpu.pipeline_mode<synchronous>, transform_indices = @transform_1, window_bounds = array<i64: 8, 1, 8>}, {pipeline_mode = #tpu.pipeline_mode<synchronous>, transform_indices = @transform_2, window_bounds = array<i64: 2, 1, 32>}, {pipeline_mode = #tpu.pipeline_mode<synchronous>, transform_indices = @transform_3, window_bounds = array<i64: 2, 1, 32>}, {pipeline_mode = #tpu.pipeline_mode<synchronous>, transform_indices = @transform_4, window_bounds = array<i64: 2, 32, 32>}, {pipeline_mode = #tpu.pipeline_mode<synchronous>, transform_indices = @transform_5, window_bounds = array<i64: 2, 1, 32>}, {pipeline_mode = #tpu.pipeline_mode<synchronous>, transform_indices = @transform_6, window_bounds = array<i64: 2, 32, 32>}, {pipeline_mode = #tpu.pipeline_mode<synchronous>, transform_indices = @transform_7, window_bounds = array<i64: 2, 1, 32>}, {pipeline_mode = #tpu.pipeline_mode<synchronous>, transform_indices = @transform_8, window_bounds = array<i64: 2, 32, 32>}, {pipeline_mode = #tpu.pipeline_mode<synchronous>, transform_indices = @transform_9, window_bounds = array<i64: 2, 1, 32>}, {pipeline_mode = #tpu.pipeline_mode<synchronous>, transform_indices = @transform_10, window_bounds = array<i64: 2, 32, 32>}, {pipeline_mode = #tpu.pipeline_mode<synchronous>, transform_indices = @transform_11, window_bounds = array<i64: 2, 1, 32>}, {pipeline_mode = #tpu.pipeline_mode<synchronous>, transform_indices = @transform_12, window_bounds = array<i64: 2, 1, 32>}, {pipeline_mode = #tpu.pipeline_mode<synchronous>, transform_indices = @transform_13, window_bounds = array<i64: 2, 1, 32>}, {pipeline_mode = #tpu.pipeline_mode<synchronous>, transform_indices = @transform_14, window_bounds = array<i64: 2, 32, 128>}, {pipeline_mode = #tpu.pipeline_mode<synchronous>, transform_indices = @transform_15, window_bounds = array<i64: 2, 1, 128>}, {pipeline_mode = #tpu.pipeline_mode<synchronous>, transform_indices = @transform_16, window_bounds = array<i64: 2, 128, 32>}, {pipeline_mode = #tpu.pipeline_mode<synchronous>, transform_indices = @transform_17, window_bounds = array<i64: 2, 1, 32>}, {pipeline_mode = #tpu.pipeline_mode<synchronous>, transform_indices = @transform_18, window_bounds = array<i64: 32, 2>}, {pipeline_mode = #tpu.pipeline_mode<synchronous>, transform_indices = @transform_19, window_bounds = array<i64: 1, 2>}, {pipeline_mode = #tpu.pipeline_mode<synchronous>, transform_indices = @transform_20, window_bounds = array<i64: 2, 2>}]} {
    %c0 = arith.constant 0 : index
    %c0_0 = arith.constant 0 : index
    %0 = vector.load %arg1[%c0, %c0_0] : memref<16x32xf32, #tpu.memory_space<vmem>>, vector<16x32xf32>
    %c0_1 = arith.constant 0 : index
    %c0_2 = arith.constant 0 : index
    %c0_3 = arith.constant 0 : index
    %1 = vector.load %arg2[%c0_1, %c0_2, %c0_3] : memref<8x1x8xf32, #tpu.memory_space<vmem>>, vector<8x1x8xf32>
    %c0_4 = arith.constant 0 : index
    %c0_5 = arith.constant 0 : index
    %c0_6 = arith.constant 0 : index
    %2 = vector.load %arg3[%c0_4, %c0_5, %c0_6] : memref<2x1x32xf32, #tpu.memory_space<vmem>>, vector<1x1x32xf32>
    %3 = vector.shape_cast %2 : vector<1x1x32xf32> to vector<1x32xf32>
    %c0_7 = arith.constant 0 : index
    %c0_8 = arith.constant 0 : index
    %c0_9 = arith.constant 0 : index
    %4 = vector.load %arg4[%c0_7, %c0_8, %c0_9] : memref<2x1x32xf32, #tpu.memory_space<vmem>>, vector<1x1x32xf32>
    %5 = vector.shape_cast %4 : vector<1x1x32xf32> to vector<1x32xf32>
    %cst = arith.constant dense<0.000000e+00> : vector<16xf32>
    %6 = vector.multi_reduction <add>, %0, %cst [1] : vector<16x32xf32> to vector<16xf32>
    %7 = vector.shape_cast %6 : vector<16xf32> to vector<16x1xf32>
    %cst_10 = arith.constant 3.200000e+01 : f32
    %8 = vector.broadcast %cst_10 : f32 to vector<16x1xf32>
    %9 = arith.divf %7, %8 : vector<16x1xf32>
    %10 = vector.broadcast %9 : vector<16x1xf32> to vector<16x32xf32>
    %11 = arith.subf %0, %10 : vector<16x32xf32>
    %12 = arith.mulf %11, %11 : vector<16x32xf32>
    %cst_11 = arith.constant dense<0.000000e+00> : vector<16xf32>
    %13 = vector.multi_reduction <add>, %12, %cst_11 [1] : vector<16x32xf32> to vector<16xf32>
    %14 = vector.shape_cast %13 : vector<16xf32> to vector<16x1xf32>
    %cst_12 = arith.constant 3.100000e+01 : f32
    %15 = vector.broadcast %cst_12 : f32 to vector<16x1xf32>
    %16 = arith.divf %14, %15 : vector<16x1xf32>
    %17 = vector.broadcast %9 : vector<16x1xf32> to vector<16x32xf32>
    %18 = arith.subf %0, %17 : vector<16x32xf32>
    %19 = vector.broadcast %3 : vector<1x32xf32> to vector<16x32xf32>
    %20 = arith.mulf %19, %18 : vector<16x32xf32>
    %21 = math.sqrt %16 : vector<16x1xf32>
    %cst_13 = arith.constant 9.99999997E-7 : f32
    %22 = vector.broadcast %cst_13 : f32 to vector<16x1xf32>
    %23 = arith.addf %21, %22 : vector<16x1xf32>
    %24 = vector.broadcast %23 : vector<16x1xf32> to vector<16x32xf32>
    %25 = arith.divf %20, %24 : vector<16x32xf32>
    %26 = vector.broadcast %5 : vector<1x32xf32> to vector<16x32xf32>
    %27 = arith.addf %25, %26 : vector<16x32xf32>
    %28 = math.absf %27 : vector<16x32xf32>
    %cst_14 = arith.constant dense<0xFF800000> : vector<16xf32>
    %29 = vector.multi_reduction <maximumf>, %28, %cst_14 [1] : vector<16x32xf32> to vector<16xf32>
    %30 = vector.shape_cast %29 : vector<16xf32> to vector<16x1xf32>
    %cst_15 = arith.constant dense<0xFF800000> : vector<1xf32>
    %31 = vector.multi_reduction <maximumf>, %30, %cst_15 [0] : vector<16x1xf32> to vector<1xf32>
    %32 = vector.shape_cast %31 : vector<1xf32> to vector<1x1xf32>
    %cst_16 = arith.constant 2.000000e+00 : f32
    %33 = vector.broadcast %cst_16 : f32 to vector<1x1xf32>
    %34 = arith.mulf %33, %32 : vector<1x1xf32>
    %cst_17 = arith.constant 5.110000e+02 : f32
    %35 = vector.broadcast %cst_17 : f32 to vector<1x1xf32>
    %36 = arith.divf %34, %35 : vector<1x1xf32>
    %cst_18 = arith.constant 0.000000e+00 : f32
    %37 = vector.broadcast %cst_18 : f32 to vector<1x1xf32>
    %38 = arith.cmpf oeq, %36, %37 : vector<1x1xf32>
    %cst_19 = arith.constant 9.99999974E-6 : f32
    %39 = vector.broadcast %cst_19 : f32 to vector<1x1xf32>
    %40 = arith.select %38, %39, %36 : vector<1x1xi1>, vector<1x1xf32>
    %cst_20 = arith.constant 1.000000e+00 : f32
    %41 = vector.broadcast %cst_20 : f32 to vector<1x1xf32>
    %42 = arith.divf %41, %40 : vector<1x1xf32>
    %43 = vector.broadcast %42 : vector<1x1xf32> to vector<16x32xf32>
    %44 = arith.mulf %27, %43 : vector<16x32xf32>
    %45 = math.roundeven %44 : vector<16x32xf32>
    %cst_21 = arith.constant -2.560000e+02 : f32
    %cst_22 = arith.constant 2.550000e+02 : f32
    %46 = vector.broadcast %cst_21 : f32 to vector<16x32xf32>
    %47 = arith.maximumf %46, %45 : vector<16x32xf32>
    %48 = vector.broadcast %cst_22 : f32 to vector<16x32xf32>
    %49 = arith.minimumf %48, %47 : vector<16x32xf32>
    %50 = vector.broadcast %40 : vector<1x1xf32> to vector<16x32xf32>
    %51 = arith.mulf %49, %50 : vector<16x32xf32>
    %c0_23 = arith.constant 0 : index
    %c0_24 = arith.constant 0 : index
    %c0_25 = arith.constant 0 : index
    %52 = vector.load %arg5[%c0_23, %c0_24, %c0_25] : memref<2x32x32xf32, #tpu.memory_space<vmem>>, vector<1x32x32xf32>
    %53 = vector.shape_cast %52 : vector<1x32x32xf32> to vector<32x32xf32>
    %cst_26 = arith.constant dense<0.000000e+00> : vector<16x32xf32>
    %54 = tpu.matmul %51, %53, %cst_26 {dimension_numbers = #tpu.dot_dimension_numbers<[1], [0], [0], [1], [0, 0, 1, 1], [], []>} : vector<16x32xf32>, vector<32x32xf32>, vector<16x32xf32> -> vector<16x32xf32>
    %c0_27 = arith.constant 0 : index
    %c0_28 = arith.constant 0 : index
    %c0_29 = arith.constant 0 : index
    %55 = vector.load %arg6[%c0_27, %c0_28, %c0_29] : memref<2x1x32xf32, #tpu.memory_space<vmem>>, vector<1x1x32xf32>
    %56 = vector.shape_cast %55 : vector<1x1x32xf32> to vector<1x32xf32>
    %57 = vector.broadcast %56 : vector<1x32xf32> to vector<16x32xf32>
    %58 = arith.addf %54, %57 : vector<16x32xf32>
    %c0_30 = arith.constant 0 : index
    %c0_31 = arith.constant 0 : index
    %c0_32 = arith.constant 0 : index
    %59 = vector.load %arg7[%c0_30, %c0_31, %c0_32] : memref<2x32x32xf32, #tpu.memory_space<vmem>>, vector<1x32x32xf32>
    %60 = vector.shape_cast %59 : vector<1x32x32xf32> to vector<32x32xf32>
    %cst_33 = arith.constant dense<0.000000e+00> : vector<16x32xf32>
    %61 = tpu.matmul %51, %60, %cst_33 {dimension_numbers = #tpu.dot_dimension_numbers<[1], [0], [0], [1], [0, 0, 1, 1], [], []>} : vector<16x32xf32>, vector<32x32xf32>, vector<16x32xf32> -> vector<16x32xf32>
    %c0_34 = arith.constant 0 : index
    %c0_35 = arith.constant 0 : index
    %c0_36 = arith.constant 0 : index
    %62 = vector.load %arg8[%c0_34, %c0_35, %c0_36] : memref<2x1x32xf32, #tpu.memory_space<vmem>>, vector<1x1x32xf32>
    %63 = vector.shape_cast %62 : vector<1x1x32xf32> to vector<1x32xf32>
    %64 = vector.broadcast %63 : vector<1x32xf32> to vector<16x32xf32>
    %65 = arith.addf %61, %64 : vector<16x32xf32>
    %c0_37 = arith.constant 0 : index
    %c0_38 = arith.constant 0 : index
    %c0_39 = arith.constant 0 : index
    %66 = vector.load %arg9[%c0_37, %c0_38, %c0_39] : memref<2x32x32xf32, #tpu.memory_space<vmem>>, vector<1x32x32xf32>
    %67 = vector.shape_cast %66 : vector<1x32x32xf32> to vector<32x32xf32>
    %cst_40 = arith.constant dense<0.000000e+00> : vector<16x32xf32>
    %68 = tpu.matmul %51, %67, %cst_40 {dimension_numbers = #tpu.dot_dimension_numbers<[1], [0], [0], [1], [0, 0, 1, 1], [], []>} : vector<16x32xf32>, vector<32x32xf32>, vector<16x32xf32> -> vector<16x32xf32>
    %c0_41 = arith.constant 0 : index
    %c0_42 = arith.constant 0 : index
    %c0_43 = arith.constant 0 : index
    %69 = vector.load %arg10[%c0_41, %c0_42, %c0_43] : memref<2x1x32xf32, #tpu.memory_space<vmem>>, vector<1x1x32xf32>
    %70 = vector.shape_cast %69 : vector<1x1x32xf32> to vector<1x32xf32>
    %71 = vector.broadcast %70 : vector<1x32xf32> to vector<16x32xf32>
    %72 = arith.addf %68, %71 : vector<16x32xf32>
    %73 = vector.extract_strided_slice %58 {offsets = [0, 0], sizes = [8, 8], strides = [1, 1]} : vector<16x32xf32> to vector<8x8xf32>
    %74 = vector.extract_strided_slice %58 {offsets = [0, 8], sizes = [8, 8], strides = [1, 1]} : vector<16x32xf32> to vector<8x8xf32>
    %75 = vector.extract_strided_slice %58 {offsets = [0, 16], sizes = [8, 8], strides = [1, 1]} : vector<16x32xf32> to vector<8x8xf32>
    %76 = vector.extract_strided_slice %58 {offsets = [0, 24], sizes = [8, 8], strides = [1, 1]} : vector<16x32xf32> to vector<8x8xf32>
    %77 = vector.extract_strided_slice %58 {offsets = [8, 0], sizes = [8, 8], strides = [1, 1]} : vector<16x32xf32> to vector<8x8xf32>
    %78 = vector.extract_strided_slice %58 {offsets = [8, 8], sizes = [8, 8], strides = [1, 1]} : vector<16x32xf32> to vector<8x8xf32>
    %79 = vector.extract_strided_slice %58 {offsets = [8, 16], sizes = [8, 8], strides = [1, 1]} : vector<16x32xf32> to vector<8x8xf32>
    %80 = vector.extract_strided_slice %58 {offsets = [8, 24], sizes = [8, 8], strides = [1, 1]} : vector<16x32xf32> to vector<8x8xf32>
    %81 = vector.shape_cast %73 : vector<8x8xf32> to vector<1x8x8xf32>
    %82 = vector.shape_cast %74 : vector<8x8xf32> to vector<1x8x8xf32>
    %83 = vector.shape_cast %75 : vector<8x8xf32> to vector<1x8x8xf32>
    %84 = vector.shape_cast %76 : vector<8x8xf32> to vector<1x8x8xf32>
    %85 = vector.shape_cast %77 : vector<8x8xf32> to vector<1x8x8xf32>
    %86 = vector.shape_cast %78 : vector<8x8xf32> to vector<1x8x8xf32>
    %87 = vector.shape_cast %79 : vector<8x8xf32> to vector<1x8x8xf32>
    %88 = vector.shape_cast %80 : vector<8x8xf32> to vector<1x8x8xf32>
    %89 = tpu.concatenate %81, %82, %83, %84, %85, %86, %87, %88 in 0 : vector<1x8x8xf32>, vector<1x8x8xf32>, vector<1x8x8xf32>, vector<1x8x8xf32>, vector<1x8x8xf32>, vector<1x8x8xf32>, vector<1x8x8xf32>, vector<1x8x8xf32> -> vector<8x8x8xf32>
    %cst_44 = arith.constant 0.353553385 : f32
    %90 = vector.broadcast %cst_44 : f32 to vector<8x8x8xf32>
    %91 = arith.mulf %89, %90 : vector<8x8x8xf32>
    %92 = vector.extract_strided_slice %65 {offsets = [0, 0], sizes = [8, 8], strides = [1, 1]} : vector<16x32xf32> to vector<8x8xf32>
    %93 = vector.extract_strided_slice %65 {offsets = [0, 8], sizes = [8, 8], strides = [1, 1]} : vector<16x32xf32> to vector<8x8xf32>
    %94 = vector.extract_strided_slice %65 {offsets = [0, 16], sizes = [8, 8], strides = [1, 1]} : vector<16x32xf32> to vector<8x8xf32>
    %95 = vector.extract_strided_slice %65 {offsets = [0, 24], sizes = [8, 8], strides = [1, 1]} : vector<16x32xf32> to vector<8x8xf32>
    %96 = vector.extract_strided_slice %65 {offsets = [8, 0], sizes = [8, 8], strides = [1, 1]} : vector<16x32xf32> to vector<8x8xf32>
    %97 = vector.extract_strided_slice %65 {offsets = [8, 8], sizes = [8, 8], strides = [1, 1]} : vector<16x32xf32> to vector<8x8xf32>
    %98 = vector.extract_strided_slice %65 {offsets = [8, 16], sizes = [8, 8], strides = [1, 1]} : vector<16x32xf32> to vector<8x8xf32>
    %99 = vector.extract_strided_slice %65 {offsets = [8, 24], sizes = [8, 8], strides = [1, 1]} : vector<16x32xf32> to vector<8x8xf32>
    %100 = vector.shape_cast %92 : vector<8x8xf32> to vector<1x8x8xf32>
    %101 = vector.shape_cast %93 : vector<8x8xf32> to vector<1x8x8xf32>
    %102 = vector.shape_cast %94 : vector<8x8xf32> to vector<1x8x8xf32>
    %103 = vector.shape_cast %95 : vector<8x8xf32> to vector<1x8x8xf32>
    %104 = vector.shape_cast %96 : vector<8x8xf32> to vector<1x8x8xf32>
    %105 = vector.shape_cast %97 : vector<8x8xf32> to vector<1x8x8xf32>
    %106 = vector.shape_cast %98 : vector<8x8xf32> to vector<1x8x8xf32>
    %107 = vector.shape_cast %99 : vector<8x8xf32> to vector<1x8x8xf32>
    %108 = tpu.concatenate %100, %101, %102, %103, %104, %105, %106, %107 in 0 : vector<1x8x8xf32>, vector<1x8x8xf32>, vector<1x8x8xf32>, vector<1x8x8xf32>, vector<1x8x8xf32>, vector<1x8x8xf32>, vector<1x8x8xf32>, vector<1x8x8xf32> -> vector<8x8x8xf32>
    %109 = vector.extract_strided_slice %72 {offsets = [0, 0], sizes = [8, 8], strides = [1, 1]} : vector<16x32xf32> to vector<8x8xf32>
    %110 = vector.extract_strided_slice %72 {offsets = [0, 8], sizes = [8, 8], strides = [1, 1]} : vector<16x32xf32> to vector<8x8xf32>
    %111 = vector.extract_strided_slice %72 {offsets = [0, 16], sizes = [8, 8], strides = [1, 1]} : vector<16x32xf32> to vector<8x8xf32>
    %112 = vector.extract_strided_slice %72 {offsets = [0, 24], sizes = [8, 8], strides = [1, 1]} : vector<16x32xf32> to vector<8x8xf32>
    %113 = vector.extract_strided_slice %72 {offsets = [8, 0], sizes = [8, 8], strides = [1, 1]} : vector<16x32xf32> to vector<8x8xf32>
    %114 = vector.extract_strided_slice %72 {offsets = [8, 8], sizes = [8, 8], strides = [1, 1]} : vector<16x32xf32> to vector<8x8xf32>
    %115 = vector.extract_strided_slice %72 {offsets = [8, 16], sizes = [8, 8], strides = [1, 1]} : vector<16x32xf32> to vector<8x8xf32>
    %116 = vector.extract_strided_slice %72 {offsets = [8, 24], sizes = [8, 8], strides = [1, 1]} : vector<16x32xf32> to vector<8x8xf32>
    %117 = vector.shape_cast %109 : vector<8x8xf32> to vector<1x8x8xf32>
    %118 = vector.shape_cast %110 : vector<8x8xf32> to vector<1x8x8xf32>
    %119 = vector.shape_cast %111 : vector<8x8xf32> to vector<1x8x8xf32>
    %120 = vector.shape_cast %112 : vector<8x8xf32> to vector<1x8x8xf32>
    %121 = vector.shape_cast %113 : vector<8x8xf32> to vector<1x8x8xf32>
    %122 = vector.shape_cast %114 : vector<8x8xf32> to vector<1x8x8xf32>
    %123 = vector.shape_cast %115 : vector<8x8xf32> to vector<1x8x8xf32>
    %124 = vector.shape_cast %116 : vector<8x8xf32> to vector<1x8x8xf32>
    %125 = tpu.concatenate %117, %118, %119, %120, %121, %122, %123, %124 in 0 : vector<1x8x8xf32>, vector<1x8x8xf32>, vector<1x8x8xf32>, vector<1x8x8xf32>, vector<1x8x8xf32>, vector<1x8x8xf32>, vector<1x8x8xf32>, vector<1x8x8xf32> -> vector<8x8x8xf32>
    "tpu.trace_start"() <{level = 10 : i32, message = "bqd,bkd->bqk"}> : () -> ()
    %cst_45 = arith.constant dense<0.000000e+00> : vector<8x8x8xf32>
    %126 = tpu.matmul %91, %108, %cst_45 {dimension_numbers = #tpu.dot_dimension_numbers<[2], [2], [1], [1], [0, 0, 0, 1, 1, 1], [0], [0]>} : vector<8x8x8xf32>, vector<8x8x8xf32>, vector<8x8x8xf32> -> vector<8x8x8xf32>
    %cst_46 = arith.constant 0.000000e+00 : f32
    "tpu.trace_stop"() : () -> ()
    %127 = vector.broadcast %cst_46 : f32 to vector<8x1x8xf32>
    %128 = arith.cmpf oeq, %1, %127 : vector<8x1x8xf32>
    %cst_47 = arith.constant -1.000000e+09 : f32
    %129 = vector.shape_cast %128 : vector<8x1x8xi1> to vector<8x1x8xi1>
    %130 = vector.broadcast %129 : vector<8x1x8xi1> to vector<8x8x8xi1>
    %131 = vector.broadcast %cst_47 : f32 to vector<8x8x8xf32>
    %132 = arith.select %130, %131, %126 : vector<8x8x8xi1>, vector<8x8x8xf32>
    %cst_48 = arith.constant dense<0xFF800000> : vector<8x8xf32>
    %133 = vector.multi_reduction <maximumf>, %132, %cst_48 [2] : vector<8x8x8xf32> to vector<8x8xf32>
    %134 = vector.shape_cast %133 : vector<8x8xf32> to vector<8x8x1xf32>
    %135 = vector.broadcast %134 : vector<8x8x1xf32> to vector<8x8x8xf32>
    %136 = arith.subf %132, %135 : vector<8x8x8xf32>
    %137 = math.exp %136 : vector<8x8x8xf32>
    %cst_49 = arith.constant dense<0.000000e+00> : vector<8x8xf32>
    %138 = vector.multi_reduction <add>, %137, %cst_49 [2] : vector<8x8x8xf32> to vector<8x8xf32>
    %139 = vector.shape_cast %138 : vector<8x8xf32> to vector<8x8x1xf32>
    %cst_50 = arith.constant 1.000000e+00 : f32
    %140 = vector.broadcast %cst_50 : f32 to vector<8x8x1xf32>
    %141 = arith.divf %140, %139 : vector<8x8x1xf32>
    %142 = vector.broadcast %141 : vector<8x8x1xf32> to vector<8x8x8xf32>
    %143 = arith.mulf %137, %142 : vector<8x8x8xf32>
    "tpu.trace_start"() <{level = 10 : i32, message = "bqk,bkd->bqd"}> : () -> ()
    %cst_51 = arith.constant dense<0.000000e+00> : vector<8x8x8xf32>
    %144 = tpu.matmul %143, %125, %cst_51 {dimension_numbers = #tpu.dot_dimension_numbers<[2], [1], [1], [2], [0, 0, 0, 1, 1, 2], [0], [0]>} : vector<8x8x8xf32>, vector<8x8x8xf32>, vector<8x8x8xf32> -> vector<8x8x8xf32>
    "tpu.trace_stop"() : () -> ()
    %145 = math.absf %144 : vector<8x8x8xf32>
    %cst_52 = arith.constant dense<0xFF800000> : vector<8x8xf32>
    %146 = vector.multi_reduction <maximumf>, %145, %cst_52 [2] : vector<8x8x8xf32> to vector<8x8xf32>
    %147 = vector.shape_cast %146 : vector<8x8xf32> to vector<8x8x1xf32>
    %cst_53 = arith.constant dense<0xFF800000> : vector<8x1xf32>
    %148 = vector.multi_reduction <maximumf>, %147, %cst_53 [1] : vector<8x8x1xf32> to vector<8x1xf32>
    %149 = vector.shape_cast %148 : vector<8x1xf32> to vector<8x1x1xf32>
    %cst_54 = arith.constant dense<0xFF800000> : vector<1x1xf32>
    %150 = vector.multi_reduction <maximumf>, %149, %cst_54 [0] : vector<8x1x1xf32> to vector<1x1xf32>
    %151 = vector.shape_cast %150 : vector<1x1xf32> to vector<1x1x1xf32>
    %cst_55 = arith.constant 2.000000e+00 : f32
    %152 = vector.broadcast %cst_55 : f32 to vector<1x1x1xf32>
    %153 = arith.mulf %152, %151 : vector<1x1x1xf32>
    %cst_56 = arith.constant 5.110000e+02 : f32
    %154 = vector.broadcast %cst_56 : f32 to vector<1x1x1xf32>
    %155 = arith.divf %153, %154 : vector<1x1x1xf32>
    %cst_57 = arith.constant 0.000000e+00 : f32
    %156 = vector.broadcast %cst_57 : f32 to vector<1x1x1xf32>
    %157 = arith.cmpf oeq, %155, %156 : vector<1x1x1xf32>
    %cst_58 = arith.constant 9.99999974E-6 : f32
    %158 = vector.broadcast %cst_58 : f32 to vector<1x1x1xf32>
    %159 = arith.select %157, %158, %155 : vector<1x1x1xi1>, vector<1x1x1xf32>
    %cst_59 = arith.constant 1.000000e+00 : f32
    %160 = vector.broadcast %cst_59 : f32 to vector<1x1x1xf32>
    %161 = arith.divf %160, %159 : vector<1x1x1xf32>
    %162 = vector.broadcast %161 : vector<1x1x1xf32> to vector<8x8x8xf32>
    %163 = arith.mulf %144, %162 : vector<8x8x8xf32>
    %164 = math.roundeven %163 : vector<8x8x8xf32>
    %cst_60 = arith.constant -2.560000e+02 : f32
    %cst_61 = arith.constant 2.550000e+02 : f32
    %165 = vector.broadcast %cst_60 : f32 to vector<8x8x8xf32>
    %166 = arith.maximumf %165, %164 : vector<8x8x8xf32>
    %167 = vector.broadcast %cst_61 : f32 to vector<8x8x8xf32>
    %168 = arith.minimumf %167, %166 : vector<8x8x8xf32>
    %169 = vector.broadcast %159 : vector<1x1x1xf32> to vector<8x8x8xf32>
    %170 = arith.mulf %168, %169 : vector<8x8x8xf32>
    %171 = vector.extract_strided_slice %170 {offsets = [0, 0, 0], sizes = [1, 8, 8], strides = [1, 1, 1]} : vector<8x8x8xf32> to vector<1x8x8xf32>
    %172 = vector.shape_cast %171 : vector<1x8x8xf32> to vector<8x8xf32>
    %173 = vector.extract_strided_slice %170 {offsets = [1, 0, 0], sizes = [1, 8, 8], strides = [1, 1, 1]} : vector<8x8x8xf32> to vector<1x8x8xf32>
    %174 = vector.shape_cast %173 : vector<1x8x8xf32> to vector<8x8xf32>
    %175 = vector.extract_strided_slice %170 {offsets = [2, 0, 0], sizes = [1, 8, 8], strides = [1, 1, 1]} : vector<8x8x8xf32> to vector<1x8x8xf32>
    %176 = vector.shape_cast %175 : vector<1x8x8xf32> to vector<8x8xf32>
    %177 = vector.extract_strided_slice %170 {offsets = [3, 0, 0], sizes = [1, 8, 8], strides = [1, 1, 1]} : vector<8x8x8xf32> to vector<1x8x8xf32>
    %178 = vector.shape_cast %177 : vector<1x8x8xf32> to vector<8x8xf32>
    %179 = tpu.concatenate %172, %174, %176, %178 in 1 : vector<8x8xf32>, vector<8x8xf32>, vector<8x8xf32>, vector<8x8xf32> -> vector<8x32xf32>
    %180 = vector.extract_strided_slice %170 {offsets = [4, 0, 0], sizes = [1, 8, 8], strides = [1, 1, 1]} : vector<8x8x8xf32> to vector<1x8x8xf32>
    %181 = vector.shape_cast %180 : vector<1x8x8xf32> to vector<8x8xf32>
    %182 = vector.extract_strided_slice %170 {offsets = [5, 0, 0], sizes = [1, 8, 8], strides = [1, 1, 1]} : vector<8x8x8xf32> to vector<1x8x8xf32>
    %183 = vector.shape_cast %182 : vector<1x8x8xf32> to vector<8x8xf32>
    %184 = vector.extract_strided_slice %170 {offsets = [6, 0, 0], sizes = [1, 8, 8], strides = [1, 1, 1]} : vector<8x8x8xf32> to vector<1x8x8xf32>
    %185 = vector.shape_cast %184 : vector<1x8x8xf32> to vector<8x8xf32>
    %186 = vector.extract_strided_slice %170 {offsets = [7, 0, 0], sizes = [1, 8, 8], strides = [1, 1, 1]} : vector<8x8x8xf32> to vector<1x8x8xf32>
    %187 = vector.shape_cast %186 : vector<1x8x8xf32> to vector<8x8xf32>
    %188 = tpu.concatenate %181, %183, %185, %187 in 1 : vector<8x8xf32>, vector<8x8xf32>, vector<8x8xf32>, vector<8x8xf32> -> vector<8x32xf32>
    %189 = tpu.concatenate %179, %188 in 0 : vector<8x32xf32>, vector<8x32xf32> -> vector<16x32xf32>
    %c0_62 = arith.constant 0 : index
    %c0_63 = arith.constant 0 : index
    %c0_64 = arith.constant 0 : index
    %190 = vector.load %arg11[%c0_62, %c0_63, %c0_64] : memref<2x32x32xf32, #tpu.memory_space<vmem>>, vector<1x32x32xf32>
    %191 = vector.shape_cast %190 : vector<1x32x32xf32> to vector<32x32xf32>
    %cst_65 = arith.constant dense<0.000000e+00> : vector<16x32xf32>
    %192 = tpu.matmul %189, %191, %cst_65 {dimension_numbers = #tpu.dot_dimension_numbers<[1], [0], [0], [1], [0, 0, 1, 1], [], []>} : vector<16x32xf32>, vector<32x32xf32>, vector<16x32xf32> -> vector<16x32xf32>
    %193 = arith.addf %0, %192 : vector<16x32xf32>
    %c0_66 = arith.constant 0 : index
    %c0_67 = arith.constant 0 : index
    %c0_68 = arith.constant 0 : index
    %194 = vector.load %arg12[%c0_66, %c0_67, %c0_68] : memref<2x1x32xf32, #tpu.memory_space<vmem>>, vector<1x1x32xf32>
    %195 = vector.shape_cast %194 : vector<1x1x32xf32> to vector<1x32xf32>
    %196 = vector.broadcast %195 : vector<1x32xf32> to vector<16x32xf32>
    %197 = arith.addf %193, %196 : vector<16x32xf32>
    %c0_69 = arith.constant 0 : index
    %c0_70 = arith.constant 0 : index
    %c0_71 = arith.constant 0 : index
    %198 = vector.load %arg13[%c0_69, %c0_70, %c0_71] : memref<2x1x32xf32, #tpu.memory_space<vmem>>, vector<1x1x32xf32>
    %199 = vector.shape_cast %198 : vector<1x1x32xf32> to vector<1x32xf32>
    %c0_72 = arith.constant 0 : index
    %c0_73 = arith.constant 0 : index
    %c0_74 = arith.constant 0 : index
    %200 = vector.load %arg14[%c0_72, %c0_73, %c0_74] : memref<2x1x32xf32, #tpu.memory_space<vmem>>, vector<1x1x32xf32>
    %201 = vector.shape_cast %200 : vector<1x1x32xf32> to vector<1x32xf32>
    %cst_75 = arith.constant dense<0.000000e+00> : vector<16xf32>
    %202 = vector.multi_reduction <add>, %197, %cst_75 [1] : vector<16x32xf32> to vector<16xf32>
    %203 = vector.shape_cast %202 : vector<16xf32> to vector<16x1xf32>
    %cst_76 = arith.constant 3.200000e+01 : f32
    %204 = vector.broadcast %cst_76 : f32 to vector<16x1xf32>
    %205 = arith.divf %203, %204 : vector<16x1xf32>
    %206 = vector.broadcast %205 : vector<16x1xf32> to vector<16x32xf32>
    %207 = arith.subf %197, %206 : vector<16x32xf32>
    %208 = arith.mulf %207, %207 : vector<16x32xf32>
    %cst_77 = arith.constant dense<0.000000e+00> : vector<16xf32>
    %209 = vector.multi_reduction <add>, %208, %cst_77 [1] : vector<16x32xf32> to vector<16xf32>
    %210 = vector.shape_cast %209 : vector<16xf32> to vector<16x1xf32>
    %cst_78 = arith.constant 3.100000e+01 : f32
    %211 = vector.broadcast %cst_78 : f32 to vector<16x1xf32>
    %212 = arith.divf %210, %211 : vector<16x1xf32>
    %213 = vector.broadcast %205 : vector<16x1xf32> to vector<16x32xf32>
    %214 = arith.subf %197, %213 : vector<16x32xf32>
    %215 = vector.broadcast %199 : vector<1x32xf32> to vector<16x32xf32>
    %216 = arith.mulf %215, %214 : vector<16x32xf32>
    %217 = math.sqrt %212 : vector<16x1xf32>
    %cst_79 = arith.constant 9.99999997E-7 : f32
    %218 = vector.broadcast %cst_79 : f32 to vector<16x1xf32>
    %219 = arith.addf %217, %218 : vector<16x1xf32>
    %220 = vector.broadcast %219 : vector<16x1xf32> to vector<16x32xf32>
    %221 = arith.divf %216, %220 : vector<16x32xf32>
    %222 = vector.broadcast %201 : vector<1x32xf32> to vector<16x32xf32>
    %223 = arith.addf %221, %222 : vector<16x32xf32>
    %224 = math.absf %223 : vector<16x32xf32>
    %cst_80 = arith.constant dense<0xFF800000> : vector<16xf32>
    %225 = vector.multi_reduction <maximumf>, %224, %cst_80 [1] : vector<16x32xf32> to vector<16xf32>
    %226 = vector.shape_cast %225 : vector<16xf32> to vector<16x1xf32>
    %cst_81 = arith.constant dense<0xFF800000> : vector<1xf32>
    %227 = vector.multi_reduction <maximumf>, %226, %cst_81 [0] : vector<16x1xf32> to vector<1xf32>
    %228 = vector.shape_cast %227 : vector<1xf32> to vector<1x1xf32>
    %cst_82 = arith.constant 2.000000e+00 : f32
    %229 = vector.broadcast %cst_82 : f32 to vector<1x1xf32>
    %230 = arith.mulf %229, %228 : vector<1x1xf32>
    %cst_83 = arith.constant 5.110000e+02 : f32
    %231 = vector.broadcast %cst_83 : f32 to vector<1x1xf32>
    %232 = arith.divf %230, %231 : vector<1x1xf32>
    %cst_84 = arith.constant 0.000000e+00 : f32
    %233 = vector.broadcast %cst_84 : f32 to vector<1x1xf32>
    %234 = arith.cmpf oeq, %232, %233 : vector<1x1xf32>
    %cst_85 = arith.constant 9.99999974E-6 : f32
    %235 = vector.broadcast %cst_85 : f32 to vector<1x1xf32>
    %236 = arith.select %234, %235, %232 : vector<1x1xi1>, vector<1x1xf32>
    %cst_86 = arith.constant 1.000000e+00 : f32
    %237 = vector.broadcast %cst_86 : f32 to vector<1x1xf32>
    %238 = arith.divf %237, %236 : vector<1x1xf32>
    %239 = vector.broadcast %238 : vector<1x1xf32> to vector<16x32xf32>
    %240 = arith.mulf %223, %239 : vector<16x32xf32>
    %241 = math.roundeven %240 : vector<16x32xf32>
    %cst_87 = arith.constant -2.560000e+02 : f32
    %cst_88 = arith.constant 2.550000e+02 : f32
    %242 = vector.broadcast %cst_87 : f32 to vector<16x32xf32>
    %243 = arith.maximumf %242, %241 : vector<16x32xf32>
    %244 = vector.broadcast %cst_88 : f32 to vector<16x32xf32>
    %245 = arith.minimumf %244, %243 : vector<16x32xf32>
    %246 = vector.broadcast %236 : vector<1x1xf32> to vector<16x32xf32>
    %247 = arith.mulf %245, %246 : vector<16x32xf32>
    %c0_89 = arith.constant 0 : index
    %c0_90 = arith.constant 0 : index
    %c0_91 = arith.constant 0 : index
    %248 = vector.load %arg15[%c0_89, %c0_90, %c0_91] : memref<2x32x128xf32, #tpu.memory_space<vmem>>, vector<1x32x128xf32>
    %249 = vector.shape_cast %248 : vector<1x32x128xf32> to vector<32x128xf32>
    %cst_92 = arith.constant dense<0.000000e+00> : vector<16x128xf32>
    %250 = tpu.matmul %247, %249, %cst_92 {dimension_numbers = #tpu.dot_dimension_numbers<[1], [0], [0], [1], [0, 0, 1, 1], [], []>} : vector<16x32xf32>, vector<32x128xf32>, vector<16x128xf32> -> vector<16x128xf32>
    %c0_93 = arith.constant 0 : index
    %c0_94 = arith.constant 0 : index
    %c0_95 = arith.constant 0 : index
    %251 = vector.load %arg16[%c0_93, %c0_94, %c0_95] : memref<2x1x128xf32, #tpu.memory_space<vmem>>, vector<1x1x128xf32>
    %252 = vector.shape_cast %251 : vector<1x1x128xf32> to vector<1x128xf32>
    %253 = vector.broadcast %252 : vector<1x128xf32> to vector<16x128xf32>
    %254 = arith.addf %250, %253 : vector<16x128xf32>
    %cst_96 = arith.constant 5.000000e-01 : f32
    %255 = vector.broadcast %cst_96 : f32 to vector<16x128xf32>
    %256 = arith.mulf %255, %254 : vector<16x128xf32>
    %257 = arith.mulf %254, %254 : vector<16x128xf32>
    %258 = arith.mulf %254, %257 : vector<16x128xf32>
    %cst_97 = arith.constant 4.471500e-02 : f32
    %259 = vector.broadcast %cst_97 : f32 to vector<16x128xf32>
    %260 = arith.mulf %259, %258 : vector<16x128xf32>
    %261 = arith.addf %254, %260 : vector<16x128xf32>
    %cst_98 = arith.constant 0.797884583 : f32
    %262 = vector.broadcast %cst_98 : f32 to vector<16x128xf32>
    %263 = arith.mulf %262, %261 : vector<16x128xf32>
    %264 = math.tanh %263 : vector<16x128xf32>
    %cst_99 = arith.constant 1.000000e+00 : f32
    %265 = vector.broadcast %cst_99 : f32 to vector<16x128xf32>
    %266 = arith.addf %265, %264 : vector<16x128xf32>
    %267 = arith.mulf %256, %266 : vector<16x128xf32>
    %c0_100 = arith.constant 0 : index
    %c0_101 = arith.constant 0 : index
    %c0_102 = arith.constant 0 : index
    %268 = vector.load %arg17[%c0_100, %c0_101, %c0_102] : memref<2x128x32xf32, #tpu.memory_space<vmem>>, vector<1x128x32xf32>
    %269 = vector.shape_cast %268 : vector<1x128x32xf32> to vector<128x32xf32>
    %cst_103 = arith.constant dense<0.000000e+00> : vector<16x32xf32>
    %270 = tpu.matmul %267, %269, %cst_103 {dimension_numbers = #tpu.dot_dimension_numbers<[1], [0], [0], [1], [0, 0, 1, 1], [], []>} : vector<16x128xf32>, vector<128x32xf32>, vector<16x32xf32> -> vector<16x32xf32>
    %c0_104 = arith.constant 0 : index
    %c0_105 = arith.constant 0 : index
    %c0_106 = arith.constant 0 : index
    %271 = vector.load %arg18[%c0_104, %c0_105, %c0_106] : memref<2x1x32xf32, #tpu.memory_space<vmem>>, vector<1x1x32xf32>
    %272 = vector.shape_cast %271 : vector<1x1x32xf32> to vector<1x32xf32>
    %273 = vector.broadcast %272 : vector<1x32xf32> to vector<16x32xf32>
    %274 = arith.addf %270, %273 : vector<16x32xf32>
    %275 = math.absf %274 : vector<16x32xf32>
    %cst_107 = arith.constant dense<0xFF800000> : vector<16xf32>
    %276 = vector.multi_reduction <maximumf>, %275, %cst_107 [1] : vector<16x32xf32> to vector<16xf32>
    %277 = vector.shape_cast %276 : vector<16xf32> to vector<16x1xf32>
    %cst_108 = arith.constant dense<0xFF800000> : vector<1xf32>
    %278 = vector.multi_reduction <maximumf>, %277, %cst_108 [0] : vector<16x1xf32> to vector<1xf32>
    %279 = vector.shape_cast %278 : vector<1xf32> to vector<1x1xf32>
    %cst_109 = arith.constant 2.000000e+00 : f32
    %280 = vector.broadcast %cst_109 : f32 to vector<1x1xf32>
    %281 = arith.mulf %280, %279 : vector<1x1xf32>
    %cst_110 = arith.constant 5.110000e+02 : f32
    %282 = vector.broadcast %cst_110 : f32 to vector<1x1xf32>
    %283 = arith.divf %281, %282 : vector<1x1xf32>
    %cst_111 = arith.constant 0.000000e+00 : f32
    %284 = vector.broadcast %cst_111 : f32 to vector<1x1xf32>
    %285 = arith.cmpf oeq, %283, %284 : vector<1x1xf32>
    %cst_112 = arith.constant 9.99999974E-6 : f32
    %286 = vector.broadcast %cst_112 : f32 to vector<1x1xf32>
    %287 = arith.select %285, %286, %283 : vector<1x1xi1>, vector<1x1xf32>
    %cst_113 = arith.constant 1.000000e+00 : f32
    %288 = vector.broadcast %cst_113 : f32 to vector<1x1xf32>
    %289 = arith.divf %288, %287 : vector<1x1xf32>
    %290 = vector.broadcast %289 : vector<1x1xf32> to vector<16x32xf32>
    %291 = arith.mulf %274, %290 : vector<16x32xf32>
    %292 = math.roundeven %291 : vector<16x32xf32>
    %cst_114 = arith.constant -2.560000e+02 : f32
    %cst_115 = arith.constant 2.550000e+02 : f32
    %293 = vector.broadcast %cst_114 : f32 to vector<16x32xf32>
    %294 = arith.maximumf %293, %292 : vector<16x32xf32>
    %295 = vector.broadcast %cst_115 : f32 to vector<16x32xf32>
    %296 = arith.minimumf %295, %294 : vector<16x32xf32>
    %297 = vector.broadcast %287 : vector<1x1xf32> to vector<16x32xf32>
    %298 = arith.mulf %296, %297 : vector<16x32xf32>
    %299 = arith.addf %197, %298 : vector<16x32xf32>
    %c1 = arith.constant 1 : index
    %c0_116 = arith.constant 0 : index
    %c0_117 = arith.constant 0 : index
    %300 = vector.load %arg3[%c1, %c0_116, %c0_117] : memref<2x1x32xf32, #tpu.memory_space<vmem>>, vector<1x1x32xf32>
    %301 = vector.shape_cast %300 : vector<1x1x32xf32> to vector<1x32xf32>
    %c1_118 = arith.constant 1 : index
    %c0_119 = arith.constant 0 : index
    %c0_120 = arith.constant 0 : index
    %302 = vector.load %arg4[%c1_118, %c0_119, %c0_120] : memref<2x1x32xf32, #tpu.memory_space<vmem>>, vector<1x1x32xf32>
    %303 = vector.shape_cast %302 : vector<1x1x32xf32> to vector<1x32xf32>
    %cst_121 = arith.constant dense<0.000000e+00> : vector<16xf32>
    %304 = vector.multi_reduction <add>, %299, %cst_121 [1] : vector<16x32xf32> to vector<16xf32>
    %305 = vector.shape_cast %304 : vector<16xf32> to vector<16x1xf32>
    %cst_122 = arith.constant 3.200000e+01 : f32
    %306 = vector.broadcast %cst_122 : f32 to vector<16x1xf32>
    %307 = arith.divf %305, %306 : vector<16x1xf32>
    %308 = vector.broadcast %307 : vector<16x1xf32> to vector<16x32xf32>
    %309 = arith.subf %299, %308 : vector<16x32xf32>
    %310 = arith.mulf %309, %309 : vector<16x32xf32>
    %cst_123 = arith.constant dense<0.000000e+00> : vector<16xf32>
    %311 = vector.multi_reduction <add>, %310, %cst_123 [1] : vector<16x32xf32> to vector<16xf32>
    %312 = vector.shape_cast %311 : vector<16xf32> to vector<16x1xf32>
    %cst_124 = arith.constant 3.100000e+01 : f32
    %313 = vector.broadcast %cst_124 : f32 to vector<16x1xf32>
    %314 = arith.divf %312, %313 : vector<16x1xf32>
    %315 = vector.broadcast %307 : vector<16x1xf32> to vector<16x32xf32>
    %316 = arith.subf %299, %315 : vector<16x32xf32>
    %317 = vector.broadcast %301 : vector<1x32xf32> to vector<16x32xf32>
    %318 = arith.mulf %317, %316 : vector<16x32xf32>
    %319 = math.sqrt %314 : vector<16x1xf32>
    %cst_125 = arith.constant 9.99999997E-7 : f32
    %320 = vector.broadcast %cst_125 : f32 to vector<16x1xf32>
    %321 = arith.addf %319, %320 : vector<16x1xf32>
    %322 = vector.broadcast %321 : vector<16x1xf32> to vector<16x32xf32>
    %323 = arith.divf %318, %322 : vector<16x32xf32>
    %324 = vector.broadcast %303 : vector<1x32xf32> to vector<16x32xf32>
    %325 = arith.addf %323, %324 : vector<16x32xf32>
    %326 = math.absf %325 : vector<16x32xf32>
    %cst_126 = arith.constant dense<0xFF800000> : vector<16xf32>
    %327 = vector.multi_reduction <maximumf>, %326, %cst_126 [1] : vector<16x32xf32> to vector<16xf32>
    %328 = vector.shape_cast %327 : vector<16xf32> to vector<16x1xf32>
    %cst_127 = arith.constant dense<0xFF800000> : vector<1xf32>
    %329 = vector.multi_reduction <maximumf>, %328, %cst_127 [0] : vector<16x1xf32> to vector<1xf32>
    %330 = vector.shape_cast %329 : vector<1xf32> to vector<1x1xf32>
    %cst_128 = arith.constant 2.000000e+00 : f32
    %331 = vector.broadcast %cst_128 : f32 to vector<1x1xf32>
    %332 = arith.mulf %331, %330 : vector<1x1xf32>
    %cst_129 = arith.constant 5.110000e+02 : f32
    %333 = vector.broadcast %cst_129 : f32 to vector<1x1xf32>
    %334 = arith.divf %332, %333 : vector<1x1xf32>
    %cst_130 = arith.constant 0.000000e+00 : f32
    %335 = vector.broadcast %cst_130 : f32 to vector<1x1xf32>
    %336 = arith.cmpf oeq, %334, %335 : vector<1x1xf32>
    %cst_131 = arith.constant 9.99999974E-6 : f32
    %337 = vector.broadcast %cst_131 : f32 to vector<1x1xf32>
    %338 = arith.select %336, %337, %334 : vector<1x1xi1>, vector<1x1xf32>
    %cst_132 = arith.constant 1.000000e+00 : f32
    %339 = vector.broadcast %cst_132 : f32 to vector<1x1xf32>
    %340 = arith.divf %339, %338 : vector<1x1xf32>
    %341 = vector.broadcast %340 : vector<1x1xf32> to vector<16x32xf32>
    %342 = arith.mulf %325, %341 : vector<16x32xf32>
    %343 = math.roundeven %342 : vector<16x32xf32>
    %cst_133 = arith.constant -2.560000e+02 : f32
    %cst_134 = arith.constant 2.550000e+02 : f32
    %344 = vector.broadcast %cst_133 : f32 to vector<16x32xf32>
    %345 = arith.maximumf %344, %343 : vector<16x32xf32>
    %346 = vector.broadcast %cst_134 : f32 to vector<16x32xf32>
    %347 = arith.minimumf %346, %345 : vector<16x32xf32>
    %348 = vector.broadcast %338 : vector<1x1xf32> to vector<16x32xf32>
    %349 = arith.mulf %347, %348 : vector<16x32xf32>
    %c1_135 = arith.constant 1 : index
    %c0_136 = arith.constant 0 : index
    %c0_137 = arith.constant 0 : index
    %350 = vector.load %arg5[%c1_135, %c0_136, %c0_137] : memref<2x32x32xf32, #tpu.memory_space<vmem>>, vector<1x32x32xf32>
    %351 = vector.shape_cast %350 : vector<1x32x32xf32> to vector<32x32xf32>
    %cst_138 = arith.constant dense<0.000000e+00> : vector<16x32xf32>
    %352 = tpu.matmul %349, %351, %cst_138 {dimension_numbers = #tpu.dot_dimension_numbers<[1], [0], [0], [1], [0, 0, 1, 1], [], []>} : vector<16x32xf32>, vector<32x32xf32>, vector<16x32xf32> -> vector<16x32xf32>
    %c1_139 = arith.constant 1 : index
    %c0_140 = arith.constant 0 : index
    %c0_141 = arith.constant 0 : index
    %353 = vector.load %arg6[%c1_139, %c0_140, %c0_141] : memref<2x1x32xf32, #tpu.memory_space<vmem>>, vector<1x1x32xf32>
    %354 = vector.shape_cast %353 : vector<1x1x32xf32> to vector<1x32xf32>
    %355 = vector.broadcast %354 : vector<1x32xf32> to vector<16x32xf32>
    %356 = arith.addf %352, %355 : vector<16x32xf32>
    %c1_142 = arith.constant 1 : index
    %c0_143 = arith.constant 0 : index
    %c0_144 = arith.constant 0 : index
    %357 = vector.load %arg7[%c1_142, %c0_143, %c0_144] : memref<2x32x32xf32, #tpu.memory_space<vmem>>, vector<1x32x32xf32>
    %358 = vector.shape_cast %357 : vector<1x32x32xf32> to vector<32x32xf32>
    %cst_145 = arith.constant dense<0.000000e+00> : vector<16x32xf32>
    %359 = tpu.matmul %349, %358, %cst_145 {dimension_numbers = #tpu.dot_dimension_numbers<[1], [0], [0], [1], [0, 0, 1, 1], [], []>} : vector<16x32xf32>, vector<32x32xf32>, vector<16x32xf32> -> vector<16x32xf32>
    %c1_146 = arith.constant 1 : index
    %c0_147 = arith.constant 0 : index
    %c0_148 = arith.constant 0 : index
    %360 = vector.load %arg8[%c1_146, %c0_147, %c0_148] : memref<2x1x32xf32, #tpu.memory_space<vmem>>, vector<1x1x32xf32>
    %361 = vector.shape_cast %360 : vector<1x1x32xf32> to vector<1x32xf32>
    %362 = vector.broadcast %361 : vector<1x32xf32> to vector<16x32xf32>
    %363 = arith.addf %359, %362 : vector<16x32xf32>
    %c1_149 = arith.constant 1 : index
    %c0_150 = arith.constant 0 : index
    %c0_151 = arith.constant 0 : index
    %364 = vector.load %arg9[%c1_149, %c0_150, %c0_151] : memref<2x32x32xf32, #tpu.memory_space<vmem>>, vector<1x32x32xf32>
    %365 = vector.shape_cast %364 : vector<1x32x32xf32> to vector<32x32xf32>
    %cst_152 = arith.constant dense<0.000000e+00> : vector<16x32xf32>
    %366 = tpu.matmul %349, %365, %cst_152 {dimension_numbers = #tpu.dot_dimension_numbers<[1], [0], [0], [1], [0, 0, 1, 1], [], []>} : vector<16x32xf32>, vector<32x32xf32>, vector<16x32xf32> -> vector<16x32xf32>
    %c1_153 = arith.constant 1 : index
    %c0_154 = arith.constant 0 : index
    %c0_155 = arith.constant 0 : index
    %367 = vector.load %arg10[%c1_153, %c0_154, %c0_155] : memref<2x1x32xf32, #tpu.memory_space<vmem>>, vector<1x1x32xf32>
    %368 = vector.shape_cast %367 : vector<1x1x32xf32> to vector<1x32xf32>
    %369 = vector.broadcast %368 : vector<1x32xf32> to vector<16x32xf32>
    %370 = arith.addf %366, %369 : vector<16x32xf32>
    %371 = vector.extract_strided_slice %356 {offsets = [0, 0], sizes = [8, 8], strides = [1, 1]} : vector<16x32xf32> to vector<8x8xf32>
    %372 = vector.extract_strided_slice %356 {offsets = [0, 8], sizes = [8, 8], strides = [1, 1]} : vector<16x32xf32> to vector<8x8xf32>
    %373 = vector.extract_strided_slice %356 {offsets = [0, 16], sizes = [8, 8], strides = [1, 1]} : vector<16x32xf32> to vector<8x8xf32>
    %374 = vector.extract_strided_slice %356 {offsets = [0, 24], sizes = [8, 8], strides = [1, 1]} : vector<16x32xf32> to vector<8x8xf32>
    %375 = vector.extract_strided_slice %356 {offsets = [8, 0], sizes = [8, 8], strides = [1, 1]} : vector<16x32xf32> to vector<8x8xf32>
    %376 = vector.extract_strided_slice %356 {offsets = [8, 8], sizes = [8, 8], strides = [1, 1]} : vector<16x32xf32> to vector<8x8xf32>
    %377 = vector.extract_strided_slice %356 {offsets = [8, 16], sizes = [8, 8], strides = [1, 1]} : vector<16x32xf32> to vector<8x8xf32>
    %378 = vector.extract_strided_slice %356 {offsets = [8, 24], sizes = [8, 8], strides = [1, 1]} : vector<16x32xf32> to vector<8x8xf32>
    %379 = vector.shape_cast %371 : vector<8x8xf32> to vector<1x8x8xf32>
    %380 = vector.shape_cast %372 : vector<8x8xf32> to vector<1x8x8xf32>
    %381 = vector.shape_cast %373 : vector<8x8xf32> to vector<1x8x8xf32>
    %382 = vector.shape_cast %374 : vector<8x8xf32> to vector<1x8x8xf32>
    %383 = vector.shape_cast %375 : vector<8x8xf32> to vector<1x8x8xf32>
    %384 = vector.shape_cast %376 : vector<8x8xf32> to vector<1x8x8xf32>
    %385 = vector.shape_cast %377 : vector<8x8xf32> to vector<1x8x8xf32>
    %386 = vector.shape_cast %378 : vector<8x8xf32> to vector<1x8x8xf32>
    %387 = tpu.concatenate %379, %380, %381, %382, %383, %384, %385, %386 in 0 : vector<1x8x8xf32>, vector<1x8x8xf32>, vector<1x8x8xf32>, vector<1x8x8xf32>, vector<1x8x8xf32>, vector<1x8x8xf32>, vector<1x8x8xf32>, vector<1x8x8xf32> -> vector<8x8x8xf32>
    %cst_156 = arith.constant 0.353553385 : f32
    %388 = vector.broadcast %cst_156 : f32 to vector<8x8x8xf32>
    %389 = arith.mulf %387, %388 : vector<8x8x8xf32>
    %390 = vector.extract_strided_slice %363 {offsets = [0, 0], sizes = [8, 8], strides = [1, 1]} : vector<16x32xf32> to vector<8x8xf32>
    %391 = vector.extract_strided_slice %363 {offsets = [0, 8], sizes = [8, 8], strides = [1, 1]} : vector<16x32xf32> to vector<8x8xf32>
    %392 = vector.extract_strided_slice %363 {offsets = [0, 16], sizes = [8, 8], strides = [1, 1]} : vector<16x32xf32> to vector<8x8xf32>
    %393 = vector.extract_strided_slice %363 {offsets = [0, 24], sizes = [8, 8], strides = [1, 1]} : vector<16x32xf32> to vector<8x8xf32>
    %394 = vector.extract_strided_slice %363 {offsets = [8, 0], sizes = [8, 8], strides = [1, 1]} : vector<16x32xf32> to vector<8x8xf32>
    %395 = vector.extract_strided_slice %363 {offsets = [8, 8], sizes = [8, 8], strides = [1, 1]} : vector<16x32xf32> to vector<8x8xf32>
    %396 = vector.extract_strided_slice %363 {offsets = [8, 16], sizes = [8, 8], strides = [1, 1]} : vector<16x32xf32> to vector<8x8xf32>
    %397 = vector.extract_strided_slice %363 {offsets = [8, 24], sizes = [8, 8], strides = [1, 1]} : vector<16x32xf32> to vector<8x8xf32>
    %398 = vector.shape_cast %390 : vector<8x8xf32> to vector<1x8x8xf32>
    %399 = vector.shape_cast %391 : vector<8x8xf32> to vector<1x8x8xf32>
    %400 = vector.shape_cast %392 : vector<8x8xf32> to vector<1x8x8xf32>
    %401 = vector.shape_cast %393 : vector<8x8xf32> to vector<1x8x8xf32>
    %402 = vector.shape_cast %394 : vector<8x8xf32> to vector<1x8x8xf32>
    %403 = vector.shape_cast %395 : vector<8x8xf32> to vector<1x8x8xf32>
    %404 = vector.shape_cast %396 : vector<8x8xf32> to vector<1x8x8xf32>
    %405 = vector.shape_cast %397 : vector<8x8xf32> to vector<1x8x8xf32>
    %406 = tpu.concatenate %398, %399, %400, %401, %402, %403, %404, %405 in 0 : vector<1x8x8xf32>, vector<1x8x8xf32>, vector<1x8x8xf32>, vector<1x8x8xf32>, vector<1x8x8xf32>, vector<1x8x8xf32>, vector<1x8x8xf32>, vector<1x8x8xf32> -> vector<8x8x8xf32>
    %407 = vector.extract_strided_slice %370 {offsets = [0, 0], sizes = [8, 8], strides = [1, 1]} : vector<16x32xf32> to vector<8x8xf32>
    %408 = vector.extract_strided_slice %370 {offsets = [0, 8], sizes = [8, 8], strides = [1, 1]} : vector<16x32xf32> to vector<8x8xf32>
    %409 = vector.extract_strided_slice %370 {offsets = [0, 16], sizes = [8, 8], strides = [1, 1]} : vector<16x32xf32> to vector<8x8xf32>
    %410 = vector.extract_strided_slice %370 {offsets = [0, 24], sizes = [8, 8], strides = [1, 1]} : vector<16x32xf32> to vector<8x8xf32>
    %411 = vector.extract_strided_slice %370 {offsets = [8, 0], sizes = [8, 8], strides = [1, 1]} : vector<16x32xf32> to vector<8x8xf32>
    %412 = vector.extract_strided_slice %370 {offsets = [8, 8], sizes = [8, 8], strides = [1, 1]} : vector<16x32xf32> to vector<8x8xf32>
    %413 = vector.extract_strided_slice %370 {offsets = [8, 16], sizes = [8, 8], strides = [1, 1]} : vector<16x32xf32> to vector<8x8xf32>
    %414 = vector.extract_strided_slice %370 {offsets = [8, 24], sizes = [8, 8], strides = [1, 1]} : vector<16x32xf32> to vector<8x8xf32>
    %415 = vector.shape_cast %407 : vector<8x8xf32> to vector<1x8x8xf32>
    %416 = vector.shape_cast %408 : vector<8x8xf32> to vector<1x8x8xf32>
    %417 = vector.shape_cast %409 : vector<8x8xf32> to vector<1x8x8xf32>
    %418 = vector.shape_cast %410 : vector<8x8xf32> to vector<1x8x8xf32>
    %419 = vector.shape_cast %411 : vector<8x8xf32> to vector<1x8x8xf32>
    %420 = vector.shape_cast %412 : vector<8x8xf32> to vector<1x8x8xf32>
    %421 = vector.shape_cast %413 : vector<8x8xf32> to vector<1x8x8xf32>
    %422 = vector.shape_cast %414 : vector<8x8xf32> to vector<1x8x8xf32>
    %423 = tpu.concatenate %415, %416, %417, %418, %419, %420, %421, %422 in 0 : vector<1x8x8xf32>, vector<1x8x8xf32>, vector<1x8x8xf32>, vector<1x8x8xf32>, vector<1x8x8xf32>, vector<1x8x8xf32>, vector<1x8x8xf32>, vector<1x8x8xf32> -> vector<8x8x8xf32>
    "tpu.trace_start"() <{level = 10 : i32, message = "bqd,bkd->bqk"}> : () -> ()
    %cst_157 = arith.constant dense<0.000000e+00> : vector<8x8x8xf32>
    %424 = tpu.matmul %389, %406, %cst_157 {dimension_numbers = #tpu.dot_dimension_numbers<[2], [2], [1], [1], [0, 0, 0, 1, 1, 1], [0], [0]>} : vector<8x8x8xf32>, vector<8x8x8xf32>, vector<8x8x8xf32> -> vector<8x8x8xf32>
    %cst_158 = arith.constant 0.000000e+00 : f32
    "tpu.trace_stop"() : () -> ()
    %425 = vector.broadcast %cst_158 : f32 to vector<8x1x8xf32>
    %426 = arith.cmpf oeq, %1, %425 : vector<8x1x8xf32>
    %cst_159 = arith.constant -1.000000e+09 : f32
    %427 = vector.shape_cast %426 : vector<8x1x8xi1> to vector<8x1x8xi1>
    %428 = vector.broadcast %427 : vector<8x1x8xi1> to vector<8x8x8xi1>
    %429 = vector.broadcast %cst_159 : f32 to vector<8x8x8xf32>
    %430 = arith.select %428, %429, %424 : vector<8x8x8xi1>, vector<8x8x8xf32>
    %cst_160 = arith.constant dense<0xFF800000> : vector<8x8xf32>
    %431 = vector.multi_reduction <maximumf>, %430, %cst_160 [2] : vector<8x8x8xf32> to vector<8x8xf32>
    %432 = vector.shape_cast %431 : vector<8x8xf32> to vector<8x8x1xf32>
    %433 = vector.broadcast %432 : vector<8x8x1xf32> to vector<8x8x8xf32>
    %434 = arith.subf %430, %433 : vector<8x8x8xf32>
    %435 = math.exp %434 : vector<8x8x8xf32>
    %cst_161 = arith.constant dense<0.000000e+00> : vector<8x8xf32>
    %436 = vector.multi_reduction <add>, %435, %cst_161 [2] : vector<8x8x8xf32> to vector<8x8xf32>
    %437 = vector.shape_cast %436 : vector<8x8xf32> to vector<8x8x1xf32>
    %cst_162 = arith.constant 1.000000e+00 : f32
    %438 = vector.broadcast %cst_162 : f32 to vector<8x8x1xf32>
    %439 = arith.divf %438, %437 : vector<8x8x1xf32>
    %440 = vector.broadcast %439 : vector<8x8x1xf32> to vector<8x8x8xf32>
    %441 = arith.mulf %435, %440 : vector<8x8x8xf32>
    "tpu.trace_start"() <{level = 10 : i32, message = "bqk,bkd->bqd"}> : () -> ()
    %cst_163 = arith.constant dense<0.000000e+00> : vector<8x8x8xf32>
    %442 = tpu.matmul %441, %423, %cst_163 {dimension_numbers = #tpu.dot_dimension_numbers<[2], [1], [1], [2], [0, 0, 0, 1, 1, 2], [0], [0]>} : vector<8x8x8xf32>, vector<8x8x8xf32>, vector<8x8x8xf32> -> vector<8x8x8xf32>
    "tpu.trace_stop"() : () -> ()
    %443 = math.absf %442 : vector<8x8x8xf32>
    %cst_164 = arith.constant dense<0xFF800000> : vector<8x8xf32>
    %444 = vector.multi_reduction <maximumf>, %443, %cst_164 [2] : vector<8x8x8xf32> to vector<8x8xf32>
    %445 = vector.shape_cast %444 : vector<8x8xf32> to vector<8x8x1xf32>
    %cst_165 = arith.constant dense<0xFF800000> : vector<8x1xf32>
    %446 = vector.multi_reduction <maximumf>, %445, %cst_165 [1] : vector<8x8x1xf32> to vector<8x1xf32>
    %447 = vector.shape_cast %446 : vector<8x1xf32> to vector<8x1x1xf32>
    %cst_166 = arith.constant dense<0xFF800000> : vector<1x1xf32>
    %448 = vector.multi_reduction <maximumf>, %447, %cst_166 [0] : vector<8x1x1xf32> to vector<1x1xf32>
    %449 = vector.shape_cast %448 : vector<1x1xf32> to vector<1x1x1xf32>
    %cst_167 = arith.constant 2.000000e+00 : f32
    %450 = vector.broadcast %cst_167 : f32 to vector<1x1x1xf32>
    %451 = arith.mulf %450, %449 : vector<1x1x1xf32>
    %cst_168 = arith.constant 5.110000e+02 : f32
    %452 = vector.broadcast %cst_168 : f32 to vector<1x1x1xf32>
    %453 = arith.divf %451, %452 : vector<1x1x1xf32>
    %cst_169 = arith.constant 0.000000e+00 : f32
    %454 = vector.broadcast %cst_169 : f32 to vector<1x1x1xf32>
    %455 = arith.cmpf oeq, %453, %454 : vector<1x1x1xf32>
    %cst_170 = arith.constant 9.99999974E-6 : f32
    %456 = vector.broadcast %cst_170 : f32 to vector<1x1x1xf32>
    %457 = arith.select %455, %456, %453 : vector<1x1x1xi1>, vector<1x1x1xf32>
    %cst_171 = arith.constant 1.000000e+00 : f32
    %458 = vector.broadcast %cst_171 : f32 to vector<1x1x1xf32>
    %459 = arith.divf %458, %457 : vector<1x1x1xf32>
    %460 = vector.broadcast %459 : vector<1x1x1xf32> to vector<8x8x8xf32>
    %461 = arith.mulf %442, %460 : vector<8x8x8xf32>
    %462 = math.roundeven %461 : vector<8x8x8xf32>
    %cst_172 = arith.constant -2.560000e+02 : f32
    %cst_173 = arith.constant 2.550000e+02 : f32
    %463 = vector.broadcast %cst_172 : f32 to vector<8x8x8xf32>
    %464 = arith.maximumf %463, %462 : vector<8x8x8xf32>
    %465 = vector.broadcast %cst_173 : f32 to vector<8x8x8xf32>
    %466 = arith.minimumf %465, %464 : vector<8x8x8xf32>
    %467 = vector.broadcast %457 : vector<1x1x1xf32> to vector<8x8x8xf32>
    %468 = arith.mulf %466, %467 : vector<8x8x8xf32>
    %469 = vector.extract_strided_slice %468 {offsets = [0, 0, 0], sizes = [1, 8, 8], strides = [1, 1, 1]} : vector<8x8x8xf32> to vector<1x8x8xf32>
    %470 = vector.shape_cast %469 : vector<1x8x8xf32> to vector<8x8xf32>
    %471 = vector.extract_strided_slice %468 {offsets = [1, 0, 0], sizes = [1, 8, 8], strides = [1, 1, 1]} : vector<8x8x8xf32> to vector<1x8x8xf32>
    %472 = vector.shape_cast %471 : vector<1x8x8xf32> to vector<8x8xf32>
    %473 = vector.extract_strided_slice %468 {offsets = [2, 0, 0], sizes = [1, 8, 8], strides = [1, 1, 1]} : vector<8x8x8xf32> to vector<1x8x8xf32>
    %474 = vector.shape_cast %473 : vector<1x8x8xf32> to vector<8x8xf32>
    %475 = vector.extract_strided_slice %468 {offsets = [3, 0, 0], sizes = [1, 8, 8], strides = [1, 1, 1]} : vector<8x8x8xf32> to vector<1x8x8xf32>
    %476 = vector.shape_cast %475 : vector<1x8x8xf32> to vector<8x8xf32>
    %477 = tpu.concatenate %470, %472, %474, %476 in 1 : vector<8x8xf32>, vector<8x8xf32>, vector<8x8xf32>, vector<8x8xf32> -> vector<8x32xf32>
    %478 = vector.extract_strided_slice %468 {offsets = [4, 0, 0], sizes = [1, 8, 8], strides = [1, 1, 1]} : vector<8x8x8xf32> to vector<1x8x8xf32>
    %479 = vector.shape_cast %478 : vector<1x8x8xf32> to vector<8x8xf32>
    %480 = vector.extract_strided_slice %468 {offsets = [5, 0, 0], sizes = [1, 8, 8], strides = [1, 1, 1]} : vector<8x8x8xf32> to vector<1x8x8xf32>
    %481 = vector.shape_cast %480 : vector<1x8x8xf32> to vector<8x8xf32>
    %482 = vector.extract_strided_slice %468 {offsets = [6, 0, 0], sizes = [1, 8, 8], strides = [1, 1, 1]} : vector<8x8x8xf32> to vector<1x8x8xf32>
    %483 = vector.shape_cast %482 : vector<1x8x8xf32> to vector<8x8xf32>
    %484 = vector.extract_strided_slice %468 {offsets = [7, 0, 0], sizes = [1, 8, 8], strides = [1, 1, 1]} : vector<8x8x8xf32> to vector<1x8x8xf32>
    %485 = vector.shape_cast %484 : vector<1x8x8xf32> to vector<8x8xf32>
    %486 = tpu.concatenate %479, %481, %483, %485 in 1 : vector<8x8xf32>, vector<8x8xf32>, vector<8x8xf32>, vector<8x8xf32> -> vector<8x32xf32>
    %487 = tpu.concatenate %477, %486 in 0 : vector<8x32xf32>, vector<8x32xf32> -> vector<16x32xf32>
    %c1_174 = arith.constant 1 : index
    %c0_175 = arith.constant 0 : index
    %c0_176 = arith.constant 0 : index
    %488 = vector.load %arg11[%c1_174, %c0_175, %c0_176] : memref<2x32x32xf32, #tpu.memory_space<vmem>>, vector<1x32x32xf32>
    %489 = vector.shape_cast %488 : vector<1x32x32xf32> to vector<32x32xf32>
    %cst_177 = arith.constant dense<0.000000e+00> : vector<16x32xf32>
    %490 = tpu.matmul %487, %489, %cst_177 {dimension_numbers = #tpu.dot_dimension_numbers<[1], [0], [0], [1], [0, 0, 1, 1], [], []>} : vector<16x32xf32>, vector<32x32xf32>, vector<16x32xf32> -> vector<16x32xf32>
    %491 = arith.addf %299, %490 : vector<16x32xf32>
    %c1_178 = arith.constant 1 : index
    %c0_179 = arith.constant 0 : index
    %c0_180 = arith.constant 0 : index
    %492 = vector.load %arg12[%c1_178, %c0_179, %c0_180] : memref<2x1x32xf32, #tpu.memory_space<vmem>>, vector<1x1x32xf32>
    %493 = vector.shape_cast %492 : vector<1x1x32xf32> to vector<1x32xf32>
    %494 = vector.broadcast %493 : vector<1x32xf32> to vector<16x32xf32>
    %495 = arith.addf %491, %494 : vector<16x32xf32>
    %c1_181 = arith.constant 1 : index
    %c0_182 = arith.constant 0 : index
    %c0_183 = arith.constant 0 : index
    %496 = vector.load %arg13[%c1_181, %c0_182, %c0_183] : memref<2x1x32xf32, #tpu.memory_space<vmem>>, vector<1x1x32xf32>
    %497 = vector.shape_cast %496 : vector<1x1x32xf32> to vector<1x32xf32>
    %c1_184 = arith.constant 1 : index
    %c0_185 = arith.constant 0 : index
    %c0_186 = arith.constant 0 : index
    %498 = vector.load %arg14[%c1_184, %c0_185, %c0_186] : memref<2x1x32xf32, #tpu.memory_space<vmem>>, vector<1x1x32xf32>
    %499 = vector.shape_cast %498 : vector<1x1x32xf32> to vector<1x32xf32>
    %cst_187 = arith.constant dense<0.000000e+00> : vector<16xf32>
    %500 = vector.multi_reduction <add>, %495, %cst_187 [1] : vector<16x32xf32> to vector<16xf32>
    %501 = vector.shape_cast %500 : vector<16xf32> to vector<16x1xf32>
    %cst_188 = arith.constant 3.200000e+01 : f32
    %502 = vector.broadcast %cst_188 : f32 to vector<16x1xf32>
    %503 = arith.divf %501, %502 : vector<16x1xf32>
    %504 = vector.broadcast %503 : vector<16x1xf32> to vector<16x32xf32>
    %505 = arith.subf %495, %504 : vector<16x32xf32>
    %506 = arith.mulf %505, %505 : vector<16x32xf32>
    %cst_189 = arith.constant dense<0.000000e+00> : vector<16xf32>
    %507 = vector.multi_reduction <add>, %506, %cst_189 [1] : vector<16x32xf32> to vector<16xf32>
    %508 = vector.shape_cast %507 : vector<16xf32> to vector<16x1xf32>
    %cst_190 = arith.constant 3.100000e+01 : f32
    %509 = vector.broadcast %cst_190 : f32 to vector<16x1xf32>
    %510 = arith.divf %508, %509 : vector<16x1xf32>
    %511 = vector.broadcast %503 : vector<16x1xf32> to vector<16x32xf32>
    %512 = arith.subf %495, %511 : vector<16x32xf32>
    %513 = vector.broadcast %497 : vector<1x32xf32> to vector<16x32xf32>
    %514 = arith.mulf %513, %512 : vector<16x32xf32>
    %515 = math.sqrt %510 : vector<16x1xf32>
    %cst_191 = arith.constant 9.99999997E-7 : f32
    %516 = vector.broadcast %cst_191 : f32 to vector<16x1xf32>
    %517 = arith.addf %515, %516 : vector<16x1xf32>
    %518 = vector.broadcast %517 : vector<16x1xf32> to vector<16x32xf32>
    %519 = arith.divf %514, %518 : vector<16x32xf32>
    %520 = vector.broadcast %499 : vector<1x32xf32> to vector<16x32xf32>
    %521 = arith.addf %519, %520 : vector<16x32xf32>
    %522 = math.absf %521 : vector<16x32xf32>
    %cst_192 = arith.constant dense<0xFF800000> : vector<16xf32>
    %523 = vector.multi_reduction <maximumf>, %522, %cst_192 [1] : vector<16x32xf32> to vector<16xf32>
    %524 = vector.shape_cast %523 : vector<16xf32> to vector<16x1xf32>
    %cst_193 = arith.constant dense<0xFF800000> : vector<1xf32>
    %525 = vector.multi_reduction <maximumf>, %524, %cst_193 [0] : vector<16x1xf32> to vector<1xf32>
    %526 = vector.shape_cast %525 : vector<1xf32> to vector<1x1xf32>
    %cst_194 = arith.constant 2.000000e+00 : f32
    %527 = vector.broadcast %cst_194 : f32 to vector<1x1xf32>
    %528 = arith.mulf %527, %526 : vector<1x1xf32>
    %cst_195 = arith.constant 5.110000e+02 : f32
    %529 = vector.broadcast %cst_195 : f32 to vector<1x1xf32>
    %530 = arith.divf %528, %529 : vector<1x1xf32>
    %cst_196 = arith.constant 0.000000e+00 : f32
    %531 = vector.broadcast %cst_196 : f32 to vector<1x1xf32>
    %532 = arith.cmpf oeq, %530, %531 : vector<1x1xf32>
    %cst_197 = arith.constant 9.99999974E-6 : f32
    %533 = vector.broadcast %cst_197 : f32 to vector<1x1xf32>
    %534 = arith.select %532, %533, %530 : vector<1x1xi1>, vector<1x1xf32>
    %cst_198 = arith.constant 1.000000e+00 : f32
    %535 = vector.broadcast %cst_198 : f32 to vector<1x1xf32>
    %536 = arith.divf %535, %534 : vector<1x1xf32>
    %537 = vector.broadcast %536 : vector<1x1xf32> to vector<16x32xf32>
    %538 = arith.mulf %521, %537 : vector<16x32xf32>
    %539 = math.roundeven %538 : vector<16x32xf32>
    %cst_199 = arith.constant -2.560000e+02 : f32
    %cst_200 = arith.constant 2.550000e+02 : f32
    %540 = vector.broadcast %cst_199 : f32 to vector<16x32xf32>
    %541 = arith.maximumf %540, %539 : vector<16x32xf32>
    %542 = vector.broadcast %cst_200 : f32 to vector<16x32xf32>
    %543 = arith.minimumf %542, %541 : vector<16x32xf32>
    %544 = vector.broadcast %534 : vector<1x1xf32> to vector<16x32xf32>
    %545 = arith.mulf %543, %544 : vector<16x32xf32>
    %c1_201 = arith.constant 1 : index
    %c0_202 = arith.constant 0 : index
    %c0_203 = arith.constant 0 : index
    %546 = vector.load %arg15[%c1_201, %c0_202, %c0_203] : memref<2x32x128xf32, #tpu.memory_space<vmem>>, vector<1x32x128xf32>
    %547 = vector.shape_cast %546 : vector<1x32x128xf32> to vector<32x128xf32>
    %cst_204 = arith.constant dense<0.000000e+00> : vector<16x128xf32>
    %548 = tpu.matmul %545, %547, %cst_204 {dimension_numbers = #tpu.dot_dimension_numbers<[1], [0], [0], [1], [0, 0, 1, 1], [], []>} : vector<16x32xf32>, vector<32x128xf32>, vector<16x128xf32> -> vector<16x128xf32>
    %c1_205 = arith.constant 1 : index
    %c0_206 = arith.constant 0 : index
    %c0_207 = arith.constant 0 : index
    %549 = vector.load %arg16[%c1_205, %c0_206, %c0_207] : memref<2x1x128xf32, #tpu.memory_space<vmem>>, vector<1x1x128xf32>
    %550 = vector.shape_cast %549 : vector<1x1x128xf32> to vector<1x128xf32>
    %551 = vector.broadcast %550 : vector<1x128xf32> to vector<16x128xf32>
    %552 = arith.addf %548, %551 : vector<16x128xf32>
    %cst_208 = arith.constant 5.000000e-01 : f32
    %553 = vector.broadcast %cst_208 : f32 to vector<16x128xf32>
    %554 = arith.mulf %553, %552 : vector<16x128xf32>
    %555 = arith.mulf %552, %552 : vector<16x128xf32>
    %556 = arith.mulf %552, %555 : vector<16x128xf32>
    %cst_209 = arith.constant 4.471500e-02 : f32
    %557 = vector.broadcast %cst_209 : f32 to vector<16x128xf32>
    %558 = arith.mulf %557, %556 : vector<16x128xf32>
    %559 = arith.addf %552, %558 : vector<16x128xf32>
    %cst_210 = arith.constant 0.797884583 : f32
    %560 = vector.broadcast %cst_210 : f32 to vector<16x128xf32>
    %561 = arith.mulf %560, %559 : vector<16x128xf32>
    %562 = math.tanh %561 : vector<16x128xf32>
    %cst_211 = arith.constant 1.000000e+00 : f32
    %563 = vector.broadcast %cst_211 : f32 to vector<16x128xf32>
    %564 = arith.addf %563, %562 : vector<16x128xf32>
    %565 = arith.mulf %554, %564 : vector<16x128xf32>
    %c1_212 = arith.constant 1 : index
    %c0_213 = arith.constant 0 : index
    %c0_214 = arith.constant 0 : index
    %566 = vector.load %arg17[%c1_212, %c0_213, %c0_214] : memref<2x128x32xf32, #tpu.memory_space<vmem>>, vector<1x128x32xf32>
    %567 = vector.shape_cast %566 : vector<1x128x32xf32> to vector<128x32xf32>
    %cst_215 = arith.constant dense<0.000000e+00> : vector<16x32xf32>
    %568 = tpu.matmul %565, %567, %cst_215 {dimension_numbers = #tpu.dot_dimension_numbers<[1], [0], [0], [1], [0, 0, 1, 1], [], []>} : vector<16x128xf32>, vector<128x32xf32>, vector<16x32xf32> -> vector<16x32xf32>
    %c1_216 = arith.constant 1 : index
    %c0_217 = arith.constant 0 : index
    %c0_218 = arith.constant 0 : index
    %569 = vector.load %arg18[%c1_216, %c0_217, %c0_218] : memref<2x1x32xf32, #tpu.memory_space<vmem>>, vector<1x1x32xf32>
    %570 = vector.shape_cast %569 : vector<1x1x32xf32> to vector<1x32xf32>
    %571 = vector.broadcast %570 : vector<1x32xf32> to vector<16x32xf32>
    %572 = arith.addf %568, %571 : vector<16x32xf32>
    %573 = math.absf %572 : vector<16x32xf32>
    %cst_219 = arith.constant dense<0xFF800000> : vector<16xf32>
    %574 = vector.multi_reduction <maximumf>, %573, %cst_219 [1] : vector<16x32xf32> to vector<16xf32>
    %575 = vector.shape_cast %574 : vector<16xf32> to vector<16x1xf32>
    %cst_220 = arith.constant dense<0xFF800000> : vector<1xf32>
    %576 = vector.multi_reduction <maximumf>, %575, %cst_220 [0] : vector<16x1xf32> to vector<1xf32>
    %577 = vector.shape_cast %576 : vector<1xf32> to vector<1x1xf32>
    %cst_221 = arith.constant 2.000000e+00 : f32
    %578 = vector.broadcast %cst_221 : f32 to vector<1x1xf32>
    %579 = arith.mulf %578, %577 : vector<1x1xf32>
    %cst_222 = arith.constant 5.110000e+02 : f32
    %580 = vector.broadcast %cst_222 : f32 to vector<1x1xf32>
    %581 = arith.divf %579, %580 : vector<1x1xf32>
    %cst_223 = arith.constant 0.000000e+00 : f32
    %582 = vector.broadcast %cst_223 : f32 to vector<1x1xf32>
    %583 = arith.cmpf oeq, %581, %582 : vector<1x1xf32>
    %cst_224 = arith.constant 9.99999974E-6 : f32
    %584 = vector.broadcast %cst_224 : f32 to vector<1x1xf32>
    %585 = arith.select %583, %584, %581 : vector<1x1xi1>, vector<1x1xf32>
    %cst_225 = arith.constant 1.000000e+00 : f32
    %586 = vector.broadcast %cst_225 : f32 to vector<1x1xf32>
    %587 = arith.divf %586, %585 : vector<1x1xf32>
    %588 = vector.broadcast %587 : vector<1x1xf32> to vector<16x32xf32>
    %589 = arith.mulf %572, %588 : vector<16x32xf32>
    %590 = math.roundeven %589 : vector<16x32xf32>
    %cst_226 = arith.constant -2.560000e+02 : f32
    %cst_227 = arith.constant 2.550000e+02 : f32
    %591 = vector.broadcast %cst_226 : f32 to vector<16x32xf32>
    %592 = arith.maximumf %591, %590 : vector<16x32xf32>
    %593 = vector.broadcast %cst_227 : f32 to vector<16x32xf32>
    %594 = arith.minimumf %593, %592 : vector<16x32xf32>
    %595 = vector.broadcast %585 : vector<1x1xf32> to vector<16x32xf32>
    %596 = arith.mulf %594, %595 : vector<16x32xf32>
    %597 = arith.addf %495, %596 : vector<16x32xf32>
    %598 = vector.extract_strided_slice %597 {offsets = [0, 0], sizes = [1, 32], strides = [1, 1]} : vector<16x32xf32> to vector<1x32xf32>
    %599 = vector.extract_strided_slice %597 {offsets = [8, 0], sizes = [1, 32], strides = [1, 1]} : vector<16x32xf32> to vector<1x32xf32>
    %600 = tpu.concatenate %598, %599 in 0 : vector<1x32xf32>, vector<1x32xf32> -> vector<2x32xf32>
    %c0_228 = arith.constant 0 : index
    %c0_229 = arith.constant 0 : index
    %601 = vector.load %arg19[%c0_228, %c0_229] : memref<32x2xf32, #tpu.memory_space<vmem>>, vector<32x2xf32>
    %cst_230 = arith.constant dense<0.000000e+00> : vector<2x2xf32>
    %602 = tpu.matmul %600, %601, %cst_230 {dimension_numbers = #tpu.dot_dimension_numbers<[1], [0], [0], [1], [0, 0, 1, 1], [], []>} : vector<2x32xf32>, vector<32x2xf32>, vector<2x2xf32> -> vector<2x2xf32>
    %c0_231 = arith.constant 0 : index
    %c0_232 = arith.constant 0 : index
    %603 = vector.load %arg20[%c0_231, %c0_232] : memref<1x2xf32, #tpu.memory_space<vmem>>, vector<1x2xf32>
    %604 = vector.broadcast %603 : vector<1x2xf32> to vector<2x2xf32>
    %605 = arith.addf %602, %604 : vector<2x2xf32>
    %c0_233 = arith.constant 0 : index
    %c0_234 = arith.constant 0 : index
    %606 = vector.load %arg21[%c0_233, %c0_234] : memref<2x2xf32, #tpu.memory_space<vmem>>, vector<2x2xf32>
    tpu.vector_store %arg21[%c0_233, %c0_234], %605 {strides = array<i32>} : memref<2x2xf32, #tpu.memory_space<vmem>>, vector<2x2xf32>,
    return
  }
  func.func @transform_0(%arg0: i32) -> (i32, i32) {
    %c0_i32 = arith.constant 0 : i32
    %c0_i32_0 = arith.constant 0 : i32
    %c0_i32_1 = arith.constant 0 : i32
    return %c0_i32, %c0_i32_0 : i32, i32
  }
  func.func @transform_1(%arg0: i32) -> (i32, i32, i32) {
    %c0_i32 = arith.constant 0 : i32
    %c0_i32_0 = arith.constant 0 : i32
    %c0_i32_1 = arith.constant 0 : i32
    %c0_i32_2 = arith.constant 0 : i32
    return %c0_i32, %c0_i32_0, %c0_i32_1 : i32, i32, i32
  }
  func.func @transform_2(%arg0: i32) -> (i32, i32, i32) {
    %c0_i32 = arith.constant 0 : i32
    %c0_i32_0 = arith.constant 0 : i32
    %c0_i32_1 = arith.constant 0 : i32
    %c0_i32_2 = arith.constant 0 : i32
    return %c0_i32, %c0_i32_0, %c0_i32_1 : i32, i32, i32
  }
  func.func @transform_3(%arg0: i32) -> (i32, i32, i32) {
    %c0_i32 = arith.constant 0 : i32
    %c0_i32_0 = arith.constant 0 : i32
    %c0_i32_1 = arith.constant 0 : i32
    %c0_i32_2 = arith.constant 0 : i32
    return %c0_i32, %c0_i32_0, %c0_i32_1 : i32, i32, i32
  }
  func.func @transform_4(%arg0: i32) -> (i32, i32, i32) {
    %c0_i32 = arith.constant 0 : i32
    %c0_i32_0 = arith.constant 0 : i32
    %c0_i32_1 = arith.constant 0 : i32
    %c0_i32_2 = arith.constant 0 : i32
    return %c0_i32, %c0_i32_0, %c0_i32_1 : i32, i32, i32
  }
  func.func @transform_5(%arg0: i32) -> (i32, i32, i32) {
    %c0_i32 = arith.constant 0 : i32
    %c0_i32_0 = arith.constant 0 : i32
    %c0_i32_1 = arith.constant 0 : i32
    %c0_i32_2 = arith.constant 0 : i32
    return %c0_i32, %c0_i32_0, %c0_i32_1 : i32, i32, i32
  }
  func.func @transform_6(%arg0: i32) -> (i32, i32, i32) {
    %c0_i32 = arith.constant 0 : i32
    %c0_i32_0 = arith.constant 0 : i32
    %c0_i32_1 = arith.constant 0 : i32
    %c0_i32_2 = arith.constant 0 : i32
    return %c0_i32, %c0_i32_0, %c0_i32_1 : i32, i32, i32
  }
  func.func @transform_7(%arg0: i32) -> (i32, i32, i32) {
    %c0_i32 = arith.constant 0 : i32
    %c0_i32_0 = arith.constant 0 : i32
    %c0_i32_1 = arith.constant 0 : i32
    %c0_i32_2 = arith.constant 0 : i32
    return %c0_i32, %c0_i32_0, %c0_i32_1 : i32, i32, i32
  }
  func.func @transform_8(%arg0: i32) -> (i32, i32, i32) {
    %c0_i32 = arith.constant 0 : i32
    %c0_i32_0 = arith.constant 0 : i32
    %c0_i32_1 = arith.constant 0 : i32
    %c0_i32_2 = arith.constant 0 : i32
    return %c0_i32, %c0_i32_0, %c0_i32_1 : i32, i32, i32
  }
  func.func @transform_9(%arg0: i32) -> (i32, i32, i32) {
    %c0_i32 = arith.constant 0 : i32
    %c0_i32_0 = arith.constant 0 : i32
    %c0_i32_1 = arith.constant 0 : i32
    %c0_i32_2 = arith.constant 0 : i32
    return %c0_i32, %c0_i32_0, %c0_i32_1 : i32, i32, i32
  }
  func.func @transform_10(%arg0: i32) -> (i32, i32, i32) {
    %c0_i32 = arith.constant 0 : i32
    %c0_i32_0 = arith.constant 0 : i32
    %c0_i32_1 = arith.constant 0 : i32
    %c0_i32_2 = arith.constant 0 : i32
    return %c0_i32, %c0_i32_0, %c0_i32_1 : i32, i32, i32
  }
  func.func @transform_11(%arg0: i32) -> (i32, i32, i32) {
    %c0_i32 = arith.constant 0 : i32
    %c0_i32_0 = arith.constant 0 : i32
    %c0_i32_1 = arith.constant 0 : i32
    %c0_i32_2 = arith.constant 0 : i32
    return %c0_i32, %c0_i32_0, %c0_i32_1 : i32, i32, i32
  }
  func.func @transform_12(%arg0: i32) -> (i32, i32, i32) {
    %c0_i32 = arith.constant 0 : i32
    %c0_i32_0 = arith.constant 0 : i32
    %c0_i32_1 = arith.constant 0 : i32
    %c0_i32_2 = arith.constant 0 : i32
    return %c0_i32, %c0_i32_0, %c0_i32_1 : i32, i32, i32
  }
  func.func @transform_13(%arg0: i32) -> (i32, i32, i32) {
    %c0_i32 = arith.constant 0 : i32
    %c0_i32_0 = arith.constant 0 : i32
    %c0_i32_1 = arith.constant 0 : i32
    %c0_i32_2 = arith.constant 0 : i32
    return %c0_i32, %c0_i32_0, %c0_i32_1 : i32, i32, i32
  }
  func.func @transform_14(%arg0: i32) -> (i32, i32, i32) {
    %c0_i32 = arith.constant 0 : i32
    %c0_i32_0 = arith.constant 0 : i32
    %c0_i32_1 = arith.constant 0 : i32
    %c0_i32_2 = arith.constant 0 : i32
    return %c0_i32, %c0_i32_0, %c0_i32_1 : i32, i32, i32
  }
  func.func @transform_15(%arg0: i32) -> (i32, i32, i32) {
    %c0_i32 = arith.constant 0 : i32
    %c0_i32_0 = arith.constant 0 : i32
    %c0_i32_1 = arith.constant 0 : i32
    %c0_i32_2 = arith.constant 0 : i32
    return %c0_i32, %c0_i32_0, %c0_i32_1 : i32, i32, i32
  }
  func.func @transform_16(%arg0: i32) -> (i32, i32, i32) {
    %c0_i32 = arith.constant 0 : i32
    %c0_i32_0 = arith.constant 0 : i32
    %c0_i32_1 = arith.constant 0 : i32
    %c0_i32_2 = arith.constant 0 : i32
    return %c0_i32, %c0_i32_0, %c0_i32_1 : i32, i32, i32
  }
  func.func @transform_17(%arg0: i32) -> (i32, i32, i32) {
    %c0_i32 = arith.constant 0 : i32
    %c0_i32_0 = arith.constant 0 : i32
    %c0_i32_1 = arith.constant 0 : i32
    %c0_i32_2 = arith.constant 0 : i32
    return %c0_i32, %c0_i32_0, %c0_i32_1 : i32, i32, i32
  }
  func.func @transform_18(%arg0: i32) -> (i32, i32) {
    %c0_i32 = arith.constant 0 : i32
    %c0_i32_0 = arith.constant 0 : i32
    %c0_i32_1 = arith.constant 0 : i32
    return %c0_i32, %c0_i32_0 : i32, i32
  }
  func.func @transform_19(%arg0: i32) -> (i32, i32) {
    %c0_i32 = arith.constant 0 : i32
    %c0_i32_0 = arith.constant 0 : i32
    %c0_i32_1 = arith.constant 0 : i32
    return %c0_i32, %c0_i32_0 : i32, i32
  }
  func.func @transform_20(%arg0: i32) -> (i32, i32) {
    %c0_i32 = arith.constant 0 : i32
    %c0_i32_0 = arith.constant 0 : i32
    %c0_i32_1 = arith.constant 0 : i32
    return %c0_i32, %c0_i32_0 : i32, i32
  }
}

</mosaic_0001>

<llo_original>
// kernel: bert_pallas_forward.1
$region0: #{bert_pallas_forward.1}
  #allocation0 [shape = 'u32[]', space=smem, size = 0x4, offset = 0x4, fixed_abs, tag = 'smem constant byte address 0x4 - core index']
  #allocation1 [shape = 'u32[144,128]{1,0:T(1,128)}', space=vmem, size = 0x12000, scoped, tag = 'internal scratch']
  %s0 = inlined_call_operand.vmem [shape: f32[16,32], index: 0, kind: input, shape index: {}]
  %s1 = inlined_call_operand.vmem [shape: f32[8,1,8], index: 1, kind: input, shape index: {}]
  %s2 = inlined_call_operand.vmem [shape: f32[2,1,32], index: 2, kind: input, shape index: {}]
  %s3 = inlined_call_operand.vmem [shape: f32[2,1,32], index: 3, kind: input, shape index: {}]
  %s4 = inlined_call_operand.vmem [shape: f32[2,32,32], index: 4, kind: input, shape index: {}]
  %s5 = inlined_call_operand.vmem [shape: f32[2,1,32], index: 5, kind: input, shape index: {}]
  %s6 = inlined_call_operand.vmem [shape: f32[2,32,32], index: 6, kind: input, shape index: {}]
  %s7 = inlined_call_operand.vmem [shape: f32[2,1,32], index: 7, kind: input, shape index: {}]
  %s8 = inlined_call_operand.vmem [shape: f32[2,32,32], index: 8, kind: input, shape index: {}]
  %s9 = inlined_call_operand.vmem [shape: f32[2,1,32], index: 9, kind: input, shape index: {}]
  %s10 = inlined_call_operand.vmem [shape: f32[2,32,32], index: 10, kind: input, shape index: {}]
  %s11 = inlined_call_operand.vmem [shape: f32[2,1,32], index: 11, kind: input, shape index: {}]
  %s12 = inlined_call_operand.vmem [shape: f32[2,1,32], index: 12, kind: input, shape index: {}]
  %s13 = inlined_call_operand.vmem [shape: f32[2,1,32], index: 13, kind: input, shape index: {}]
  %s14 = inlined_call_operand.vmem [shape: f32[2,32,128], index: 14, kind: input, shape index: {}]
  %s15 = inlined_call_operand.vmem [shape: f32[2,1,128], index: 15, kind: input, shape index: {}]
  %s16 = inlined_call_operand.vmem [shape: f32[2,128,32], index: 16, kind: input, shape index: {}]
  %s17 = inlined_call_operand.vmem [shape: f32[2,1,32], index: 17, kind: input, shape index: {}]
  %s18 = inlined_call_operand.vmem [shape: f32[32,2], index: 18, kind: input, shape index: {}]
  %s19 = inlined_call_operand.vmem [shape: f32[1,2], index: 19, kind: input, shape index: {}]
  %s20 = inlined_call_operand.vmem [shape: f32[2,2], index: 20, kind: output, shape index: {}]
  %s21 = sld [smem:[#allocation0]]
  $region90: #{bert_pallas_forward.1} parent=0
    _
  %s23 = ssub.s32 1, %s21
  %s24 = scalar_select 0, %s23, %s21
  // Predicated region
  $region2: #{bert_pallas_forward.1} parent=0 // pred_check
    _
  $region3: #{bert_pallas_forward.1} parent=0 // pred_check_branch
    %26 = sbr.rel (0) target = $region5
  $region4: #{bert_pallas_forward.1} parent=0 // pred_region
    _
  $region5: #{bert_pallas_forward.1} parent=0 // pred_fallthru
    _
  // Predicated region
  $region6: #{bert_pallas_forward.1} parent=0 // pred_check
    _
  $region7: #{bert_pallas_forward.1} parent=0 // pred_check_branch
    %28 = sbr.rel (0) target = $region9
  $region8: #{bert_pallas_forward.1} parent=0 // pred_region
    _
  $region9: #{bert_pallas_forward.1} parent=0 // pred_fallthru
    _
  // Predicated region
  $region10: #{bert_pallas_forward.1} parent=0 // pred_check
    _
  $region11: #{bert_pallas_forward.1} parent=0 // pred_check_branch
    %30 = sbr.rel (0) target = $region13
  $region12: #{bert_pallas_forward.1} parent=0 // pred_region
    _
  $region13: #{bert_pallas_forward.1} parent=0 // pred_fallthru
    _
  // Predicated region
  $region14: #{bert_pallas_forward.1} parent=0 // pred_check
    _
  $region15: #{bert_pallas_forward.1} parent=0 // pred_check_branch
    %32 = sbr.rel (0) target = $region17
  $region16: #{bert_pallas_forward.1} parent=0 // pred_region
    _
  $region17: #{bert_pallas_forward.1} parent=0 // pred_fallthru
    _
  // Predicated region
  $region18: #{bert_pallas_forward.1} parent=0 // pred_check
    _
  $region19: #{bert_pallas_forward.1} parent=0 // pred_check_branch
    %34 = sbr.rel (0) target = $region21
  $region20: #{bert_pallas_forward.1} parent=0 // pred_region
    _
  $region21: #{bert_pallas_forward.1} parent=0 // pred_fallthru
    _
  // Predicated region
  $region22: #{bert_pallas_forward.1} parent=0 // pred_check
    _
  $region23: #{bert_pallas_forward.1} parent=0 // pred_check_branch
    %36 = sbr.rel (0) target = $region25
  $region24: #{bert_pallas_forward.1} parent=0 // pred_region
    _
  $region25: #{bert_pallas_forward.1} parent=0 // pred_fallthru
    _
  // Predicated region
  $region26: #{bert_pallas_forward.1} parent=0 // pred_check
    _
  $region27: #{bert_pallas_forward.1} parent=0 // pred_check_branch
    %38 = sbr.rel (0) target = $region29
  $region28: #{bert_pallas_forward.1} parent=0 // pred_region
    _
  $region29: #{bert_pallas_forward.1} parent=0 // pred_fallthru
    _
  // Predicated region
  $region30: #{bert_pallas_forward.1} parent=0 // pred_check
    _
  $region31: #{bert_pallas_forward.1} parent=0 // pred_check_branch
    %40 = sbr.rel (0) target = $region33
  $region32: #{bert_pallas_forward.1} parent=0 // pred_region
    _
  $region33: #{bert_pallas_forward.1} parent=0 // pred_fallthru
    _
  // Predicated region
  $region34: #{bert_pallas_forward.1} parent=0 // pred_check
    _
  $region35: #{bert_pallas_forward.1} parent=0 // pred_check_branch
    %42 = sbr.rel (0) target = $region37
  $region36: #{bert_pallas_forward.1} parent=0 // pred_region
    _
  $region37: #{bert_pallas_forward.1} parent=0 // pred_fallthru
    _
  // Predicated region
  $region38: #{bert_pallas_forward.1} parent=0 // pred_check
    _
  $region39: #{bert_pallas_forward.1} parent=0 // pred_check_branch
    %44 = sbr.rel (0) target = $region41
  $region40: #{bert_pallas_forward.1} parent=0 // pred_region
    _
  $region41: #{bert_pallas_forward.1} parent=0 // pred_fallthru
    _
  // Predicated region
  $region42: #{bert_pallas_forward.1} parent=0 // pred_check
    _
  $region43: #{bert_pallas_forward.1} parent=0 // pred_check_branch
    %46 = sbr.rel (0) target = $region45
  $region44: #{bert_pallas_forward.1} parent=0 // pred_region
    _
  $region45: #{bert_pallas_forward.1} parent=0 // pred_fallthru
    _
  // Predicated region
  $region46: #{bert_pallas_forward.1} parent=0 // pred_check
    _
  $region47: #{bert_pallas_forward.1} parent=0 // pred_check_branch
    %48 = sbr.rel (0) target = $region49
  $region48: #{bert_pallas_forward.1} parent=0 // pred_region
    _
  $region49: #{bert_pallas_forward.1} parent=0 // pred_fallthru
    _
  // Predicated region
  $region50: #{bert_pallas_forward.1} parent=0 // pred_check
    _
  $region51: #{bert_pallas_forward.1} parent=0 // pred_check_branch
    %50 = sbr.rel (0) target = $region53
  $region52: #{bert_pallas_forward.1} parent=0 // pred_region
    _
  $region53: #{bert_pallas_forward.1} parent=0 // pred_fallthru
    _
  // Predicated region
  $region54: #{bert_pallas_forward.1} parent=0 // pred_check
    _
  $region55: #{bert_pallas_forward.1} parent=0 // pred_check_branch
    %52 = sbr.rel (0) target = $region57
  $region56: #{bert_pallas_forward.1} parent=0 // pred_region
    _
  $region57: #{bert_pallas_forward.1} parent=0 // pred_fallthru
    _
  // Predicated region
  $region58: #{bert_pallas_forward.1} parent=0 // pred_check
    _
  $region59: #{bert_pallas_forward.1} parent=0 // pred_check_branch
    %54 = sbr.rel (0) target = $region61
  $region60: #{bert_pallas_forward.1} parent=0 // pred_region
    _
  $region61: #{bert_pallas_forward.1} parent=0 // pred_fallthru
    _
  // Predicated region
  $region62: #{bert_pallas_forward.1} parent=0 // pred_check
    _
  $region63: #{bert_pallas_forward.1} parent=0 // pred_check_branch
    %56 = sbr.rel (0) target = $region65
  $region64: #{bert_pallas_forward.1} parent=0 // pred_region
    _
  $region65: #{bert_pallas_forward.1} parent=0 // pred_fallthru
    _
  // Predicated region
  $region66: #{bert_pallas_forward.1} parent=0 // pred_check
    _
  $region67: #{bert_pallas_forward.1} parent=0 // pred_check_branch
    %58 = sbr.rel (0) target = $region69
  $region68: #{bert_pallas_forward.1} parent=0 // pred_region
    _
  $region69: #{bert_pallas_forward.1} parent=0 // pred_fallthru
    _
  // Predicated region
  $region70: #{bert_pallas_forward.1} parent=0 // pred_check
    _
  $region71: #{bert_pallas_forward.1} parent=0 // pred_check_branch
    %60 = sbr.rel (0) target = $region73
  $region72: #{bert_pallas_forward.1} parent=0 // pred_region
    _
  $region73: #{bert_pallas_forward.1} parent=0 // pred_fallthru
    _
  // Predicated region
  $region74: #{bert_pallas_forward.1} parent=0 // pred_check
    _
  $region75: #{bert_pallas_forward.1} parent=0 // pred_check_branch
    %62 = sbr.rel (0) target = $region77
  $region76: #{bert_pallas_forward.1} parent=0 // pred_region
    _
  $region77: #{bert_pallas_forward.1} parent=0 // pred_fallthru
    _
  // Predicated region
  $region78: #{bert_pallas_forward.1} parent=0 // pred_check
    _
  $region79: #{bert_pallas_forward.1} parent=0 // pred_check_branch
    %64 = sbr.rel (0) target = $region81
  $region80: #{bert_pallas_forward.1} parent=0 // pred_region
    _
  $region81: #{bert_pallas_forward.1} parent=0 // pred_fallthru
    _
  %v65 = vld [vmem:[%s0] sm:$0xff]
  %v66 = vld [vmem:[%s0 + $0x8] sm:$0xff]
  %v67 = vld [vmem:[%s1] sm:$0x1]
  %v68 = vld [vmem:[%s1 + $0x1] sm:$0x1]
  %v69 = vld [vmem:[%s1 + $0x2] sm:$0x1]
  %v70 = vld [vmem:[%s1 + $0x3] sm:$0x1]
  %v71 = vld [vmem:[%s1 + $0x4] sm:$0x1]
  %v72 = vld [vmem:[%s1 + $0x5] sm:$0x1]
  %v73 = vld [vmem:[%s1 + $0x6] sm:$0x1]
  %v74 = vld [vmem:[%s1 + $0x7] sm:$0x1]
  %v75 = vld [vmem:[%s2] sm:$0x1]
  %v76 = vld [vmem:[%s3] sm:$0x1]
  %vm77 = vcmask 261120
  %v78 = vsel %vm77, %v65, 0.0
  %79 = vadd.xlane.f32.xlu0 %v78
  %v80 = vpop.xlane.xlu0 %79
  %v81 = vsel %vm77, %v66, 0.0
  %82 = vadd.xlane.f32.xlu0 %v81
  %v83 = vpop.xlane.xlu0 %82
  %v84 = vrcp.pop 32.0
  %v85 = vmul.f32 %v80, %v84
  %v86 = vmul.f32 %v83, %v84
  %v87 = vsub.f32 %v65, %v85
  %v88 = vsub.f32 %v66, %v86
  %v89 = vmul.f32 %v87, %v87
  %v90 = vmul.f32 %v88, %v88
  %v91 = vsel %vm77, %v89, 0.0
  %92 = vadd.xlane.f32.xlu0 %v91
  %v93 = vpop.xlane.xlu0 %92
  %v94 = vsel %vm77, %v90, 0.0
  %95 = vadd.xlane.f32.xlu0 %v94
  %v96 = vpop.xlane.xlu0 %95
  %v97 = vrcp.pop 31.0
  %v98 = vmul.f32 %v93, %v97
  %v99 = vmul.f32 %v96, %v97
  %v101 = vlaneseq
  %v102 = vshrl.u32 %v101, 7
  %v103 = vsub.s32 0, %v102
  %v104 = vrot.slane %v75, %v103
  %v106 = vmul.f32 %v104, %v87
  %v107 = vmul.f32 %v104, %v88
  %v108 = vrsqrt.pop %v98
  %v109 = vmul.f32 %v98, %v108
  %vm110 = vcmp.eq.f32.partialorder %v98, inf
  %v111 = vsel %vm110, %v98, %v109
  %vm112 = vcmp.eq.f32.partialorder %v98, 0.0
  %v113 = vand.u32 %v98, 2147483648
  %v114 = vsel %vm112, %v113, %v111
  %v115 = vrsqrt.pop %v99
  %v116 = vmul.f32 %v99, %v115
  %vm117 = vcmp.eq.f32.partialorder %v99, inf
  %v118 = vsel %vm117, %v99, %v116
  %vm119 = vcmp.eq.f32.partialorder %v99, 0.0
  %v120 = vand.u32 %v99, 2147483648
  %v121 = vsel %vm119, %v120, %v118
  %v122 = vadd.f32 %v114, 1e-06
  %v123 = vadd.f32 %v121, 1e-06
  %v124 = vrcp.pop %v122
  %v125 = vmul.f32 %v106, %v124
  %v126 = vrcp.pop %v123
  %v127 = vmul.f32 %v107, %v126
  %v129 = vlaneseq
  %v130 = vshrl.u32 %v129, 7
  %v131 = vsub.s32 0, %v130
  %v132 = vrot.slane %v76, %v131
  %v134 = vadd.f32 %v125, %v132
  %v135 = vadd.f32 %v127, %v132
  %v136 = vand.u32 2147483647, %v134
  %v137 = vand.u32 2147483647, %v135
  %v138 = vsel %vm77, %v136, -inf
  %139 = vmax.xlane.f32.xlu0 %v138
  %v140 = vpop.xlane.xlu0 %139
  %v141 = vsel %vm77, %v137, -inf
  %142 = vmax.xlane.f32.xlu0 %v141
  %v143 = vpop.xlane.xlu0 %142
  %v144 = vmax.f32 %v140, %v143
  %v145 = vrot.slane %v144, 4
  %v146 = vmax.f32 %v144, %v145
  %v147 = vrot.slane %v146, 2
  %v148 = vmax.f32 %v146, %v147
  %v149 = vrot.slane %v148, 1
  %v150 = vmax.f32 %v148, %v149
  %v151 = vmul.f32 %v150, 2.0
  %v152 = vrcp.pop 511.0
  %v153 = vmul.f32 %v151, %v152
  %vm154 = vcmp.eq.f32.partialorder %v153, 0.0
  %v155 = vsel %vm154, 1e-05, %v153
  %v156 = vrcp.pop %v155
  %v157 = vmul.f32 1.0, %v156
  %v158 = vmul.f32 %v134, %v157
  %v159 = vmul.f32 %v135, %v157
  %v160 = vround.ne.pseudo %v158
  %v161 = vround.ne.pseudo %v159
  %v162 = vmax.f32 %v160, -256.0
  %v163 = vmax.f32 %v161, -256.0
  %v164 = vmin.f32 %v162, 255.0
  %v165 = vmin.f32 %v163, 255.0
  %v166 = vmul.f32 %v164, %v155
  %v167 = vmul.f32 %v165, %v155
  %v168 = vld [vmem:[%s4] sm:$0xff]
  %v169 = vld [vmem:[%s4 + $0x8] sm:$0xff]
  %v170 = vld [vmem:[%s4 + $0x10] sm:$0xff]
  %v171 = vld [vmem:[%s4 + $0x18] sm:$0xff]
  %v172 = vld [vmem:[%s5] sm:$0x1]
  %v174 = vlaneseq
  %v175 = vshrl.u32 %v174, 7
  %v176 = vsub.s32 0, %v175
  %v177 = vrot.slane %v172, %v176
  %v180 = vsel %vm77, %v166, 0
  %v183 = vsel %vm77, %v167, 0
  %185 = vmatprep.subr.mxu0 0.0
  %186 = vmatpush1.msra.mxu0 %v168
  %187 = vmatprep.subr.mxu0 0.0
  %188 = vmatpush1.msra.mxu0 %v169
  %189 = vmatprep.subr.mxu0 0.0
  %190 = vmatpush1.msra.mxu0 %v170
  %191 = vmatprep.subr.mxu0 0.0
  %192 = vmatpush1.msra.mxu0 %v171
  %193 = vmatprep.subr.mxu0 0.0
  %194 = vmatpush1.msra.mxu0 0.0
  %195 = vmatprep.subr.mxu0 0.0
  %196 = vmatpush1.msra.mxu0 0.0
  %197 = vmatprep.subr.mxu0 0.0
  %198 = vmatpush1.msra.mxu0 0.0
  %199 = vmatprep.subr.mxu0 0.0
  %200 = vmatpush1.msra.mxu0 0.0
  %201 = vmatprep.subr.mxu0 0.0
  %202 = vmatpush1.msra.mxu0 0.0
  %203 = vmatprep.subr.mxu0 0.0
  %204 = vmatpush1.msra.mxu0 0.0
  %205 = vmatprep.subr.mxu0 0.0
  %206 = vmatpush1.msra.mxu0 0.0
  %207 = vmatprep.subr.mxu0 0.0
  %208 = vmatpush1.msra.mxu0 0.0
  %209 = vmatprep.subr.mxu0 0.0
  %210 = vmatpush1.msra.mxu0 0.0
  %211 = vmatprep.subr.mxu0 0.0
  %212 = vmatpush1.msra.mxu0 0.0
  %213 = vmatprep.subr.mxu0 0.0
  %214 = vmatpush1.msra.mxu0 0.0
  %215 = vmatprep.subr.mxu0 0.0
  %216 = vmatpush1.msra.mxu0 0.0
  %217 = vmatprep.subr.mxu0 0.0
  %218 = vmatpush1.msra.mxu0 0.0
  %219 = vmatprep.subr.mxu0 0.0
  %220 = vmatpush1.msra.mxu0 0.0
  %221 = vmatprep.subr.mxu0 0.0
  %222 = vmatpush1.msra.mxu0 0.0
  %223 = vmatprep.subr.mxu0 0.0
  %224 = vmatpush1.msra.mxu0 0.0
  %225 = vmatprep.subr.mxu0 0.0
  %226 = vmatpush1.msra.mxu0 0.0
  %227 = vmatprep.subr.mxu0 0.0
  %228 = vmatpush1.msra.mxu0 0.0
  %229 = vmatprep.subr.mxu0 0.0
  %230 = vmatpush1.msra.mxu0 0.0
  %231 = vmatprep.subr.mxu0 0.0
  %232 = vmatpush1.msra.mxu0 0.0
  %233 = vmatprep.subr.mxu0 0.0
  %234 = vmatpush1.msra.mxu0 0.0
  %235 = vmatprep.subr.mxu0 0.0
  %236 = vmatpush1.msra.mxu0 0.0
  %237 = vmatprep.subr.mxu0 0.0
  %238 = vmatpush1.msra.mxu0 0.0
  %239 = vmatprep.subr.mxu0 0.0
  %240 = vmatpush1.msra.mxu0 0.0
  %241 = vmatprep.subr.mxu0 0.0
  %242 = vmatpush1.msra.mxu0 0.0
  %243 = vmatprep.subr.mxu0 0.0
  %244 = vmatpush1.msra.mxu0 0.0
  %245 = vmatprep.subr.mxu0 0.0
  %246 = vmatpush1.msra.mxu0 0.0
  %247 = vmatprep.subr.mxu0 0.0
  %248 = vmatpush1.msra.mxu0 0.0
  %249 = vmatprep.mubr.f32.mxu0 0.0
  %250 = vmatmul.mubr.f32.gmra.mrb[0].mxu0 %v180
  %v251 = vpop.f32.mrb[0].mxu0
  %v252 = vadd.f32 %v177, %v251
  %v253 = vpop.f32.mrb[0].mxu0
  %254 = vmatprep.mubr.f32.mxu0 0.0
  %255 = vmatmul.mubr.f32.gmra.mrb[0].mxu0 %v183
  %v256 = vpop.f32.mrb[0].mxu0
  %v257 = vadd.f32 %v177, %v256
  %v258 = vpop.f32.mrb[0].mxu0
  %259 = vdwg.mxu0
  %v260 = vld [vmem:[%s6] sm:$0xff]
  %v261 = vld [vmem:[%s6 + $0x8] sm:$0xff]
  %v262 = vld [vmem:[%s6 + $0x10] sm:$0xff]
  %v263 = vld [vmem:[%s6 + $0x18] sm:$0xff]
  %v264 = vld [vmem:[%s7] sm:$0x1]
  %v266 = vlaneseq
  %v267 = vshrl.u32 %v266, 7
  %v268 = vsub.s32 0, %v267
  %v269 = vrot.slane %v264, %v268
  %271 = vmatprep.subr.mxu0 0.0
  %272 = vmatpush1.msra.mxu0 %v260
  %273 = vmatprep.subr.mxu0 0.0
  %274 = vmatpush1.msra.mxu0 %v261
  %275 = vmatprep.subr.mxu0 0.0
  %276 = vmatpush1.msra.mxu0 %v262
  %277 = vmatprep.subr.mxu0 0.0
  %278 = vmatpush1.msra.mxu0 %v263
  %279 = vmatprep.subr.mxu0 0.0
  %280 = vmatpush1.msra.mxu0 0.0
  %281 = vmatprep.subr.mxu0 0.0
  %282 = vmatpush1.msra.mxu0 0.0
  %283 = vmatprep.subr.mxu0 0.0
  %284 = vmatpush1.msra.mxu0 0.0
  %285 = vmatprep.subr.mxu0 0.0
  %286 = vmatpush1.msra.mxu0 0.0
  %287 = vmatprep.subr.mxu0 0.0
  %288 = vmatpush1.msra.mxu0 0.0
  %289 = vmatprep.subr.mxu0 0.0
  %290 = vmatpush1.msra.mxu0 0.0
  %291 = vmatprep.subr.mxu0 0.0
  %292 = vmatpush1.msra.mxu0 0.0
  %293 = vmatprep.subr.mxu0 0.0
  %294 = vmatpush1.msra.mxu0 0.0
  %295 = vmatprep.subr.mxu0 0.0
  %296 = vmatpush1.msra.mxu0 0.0
  %297 = vmatprep.subr.mxu0 0.0
  %298 = vmatpush1.msra.mxu0 0.0
  %299 = vmatprep.subr.mxu0 0.0
  %300 = vmatpush1.msra.mxu0 0.0
  %301 = vmatprep.subr.mxu0 0.0
  %302 = vmatpush1.msra.mxu0 0.0
  %303 = vmatprep.subr.mxu0 0.0
  %304 = vmatpush1.msra.mxu0 0.0
  %305 = vmatprep.subr.mxu0 0.0
  %306 = vmatpush1.msra.mxu0 0.0
  %307 = vmatprep.subr.mxu0 0.0
  %308 = vmatpush1.msra.mxu0 0.0
  %309 = vmatprep.subr.mxu0 0.0
  %310 = vmatpush1.msra.mxu0 0.0
  %311 = vmatprep.subr.mxu0 0.0
  %312 = vmatpush1.msra.mxu0 0.0
  %313 = vmatprep.subr.mxu0 0.0
  %314 = vmatpush1.msra.mxu0 0.0
  %315 = vmatprep.subr.mxu0 0.0
  %316 = vmatpush1.msra.mxu0 0.0
  %317 = vmatprep.subr.mxu0 0.0
  %318 = vmatpush1.msra.mxu0 0.0
  %319 = vmatprep.subr.mxu0 0.0
  %320 = vmatpush1.msra.mxu0 0.0
  %321 = vmatprep.subr.mxu0 0.0
  %322 = vmatpush1.msra.mxu0 0.0
  %323 = vmatprep.subr.mxu0 0.0
  %324 = vmatpush1.msra.mxu0 0.0
  %325 = vmatprep.subr.mxu0 0.0
  %326 = vmatpush1.msra.mxu0 0.0
  %327 = vmatprep.subr.mxu0 0.0
  %328 = vmatpush1.msra.mxu0 0.0
  %329 = vmatprep.subr.mxu0 0.0
  %330 = vmatpush1.msra.mxu0 0.0
  %331 = vmatprep.subr.mxu0 0.0
  %332 = vmatpush1.msra.mxu0 0.0
  %333 = vmatprep.subr.mxu0 0.0
  %334 = vmatpush1.msra.mxu0 0.0
  %335 = vmatprep.mubr.f32.mxu0 0.0
  %336 = vmatmul.mubr.f32.gmra.mrb[0].mxu0 %v180
  %v337 = vpop.f32.mrb[0].mxu0
  %v338 = vadd.f32 %v269, %v337
  %v339 = vpop.f32.mrb[0].mxu0
  %340 = vmatprep.mubr.f32.mxu0 0.0
  %341 = vmatmul.mubr.f32.gmra.mrb[0].mxu0 %v183
  %v342 = vpop.f32.mrb[0].mxu0
  %v343 = vadd.f32 %v269, %v342
  %v344 = vpop.f32.mrb[0].mxu0
  %345 = vdwg.mxu0
  %v346 = vld [vmem:[%s8] sm:$0xff]
  %v347 = vld [vmem:[%s8 + $0x8] sm:$0xff]
  %v348 = vld [vmem:[%s8 + $0x10] sm:$0xff]
  %v349 = vld [vmem:[%s8 + $0x18] sm:$0xff]
  %v350 = vld [vmem:[%s9] sm:$0x1]
  %v352 = vlaneseq
  %v353 = vshrl.u32 %v352, 7
  %v354 = vsub.s32 0, %v353
  %v355 = vrot.slane %v350, %v354
  %357 = vmatprep.subr.mxu0 0.0
  %358 = vmatpush1.msra.mxu0 %v346
  %359 = vmatprep.subr.mxu0 0.0
  %360 = vmatpush1.msra.mxu0 %v347
  %361 = vmatprep.subr.mxu0 0.0
  %362 = vmatpush1.msra.mxu0 %v348
  %363 = vmatprep.subr.mxu0 0.0
  %364 = vmatpush1.msra.mxu0 %v349
  %365 = vmatprep.subr.mxu0 0.0
  %366 = vmatpush1.msra.mxu0 0.0
  %367 = vmatprep.subr.mxu0 0.0
  %368 = vmatpush1.msra.mxu0 0.0
  %369 = vmatprep.subr.mxu0 0.0
  %370 = vmatpush1.msra.mxu0 0.0
  %371 = vmatprep.subr.mxu0 0.0
  %372 = vmatpush1.msra.mxu0 0.0
  %373 = vmatprep.subr.mxu0 0.0
  %374 = vmatpush1.msra.mxu0 0.0
  %375 = vmatprep.subr.mxu0 0.0
  %376 = vmatpush1.msra.mxu0 0.0
  %377 = vmatprep.subr.mxu0 0.0
  %378 = vmatpush1.msra.mxu0 0.0
  %379 = vmatprep.subr.mxu0 0.0
  %380 = vmatpush1.msra.mxu0 0.0
  %381 = vmatprep.subr.mxu0 0.0
  %382 = vmatpush1.msra.mxu0 0.0
  %383 = vmatprep.subr.mxu0 0.0
  %384 = vmatpush1.msra.mxu0 0.0
  %385 = vmatprep.subr.mxu0 0.0
  %386 = vmatpush1.msra.mxu0 0.0
  %387 = vmatprep.subr.mxu0 0.0
  %388 = vmatpush1.msra.mxu0 0.0
  %389 = vmatprep.subr.mxu0 0.0
  %390 = vmatpush1.msra.mxu0 0.0
  %391 = vmatprep.subr.mxu0 0.0
  %392 = vmatpush1.msra.mxu0 0.0
  %393 = vmatprep.subr.mxu0 0.0
  %394 = vmatpush1.msra.mxu0 0.0
  %395 = vmatprep.subr.mxu0 0.0
  %396 = vmatpush1.msra.mxu0 0.0
  %397 = vmatprep.subr.mxu0 0.0
  %398 = vmatpush1.msra.mxu0 0.0
  %399 = vmatprep.subr.mxu0 0.0
  %400 = vmatpush1.msra.mxu0 0.0
  %401 = vmatprep.subr.mxu0 0.0
  %402 = vmatpush1.msra.mxu0 0.0
  %403 = vmatprep.subr.mxu0 0.0
  %404 = vmatpush1.msra.mxu0 0.0
  %405 = vmatprep.subr.mxu0 0.0
  %406 = vmatpush1.msra.mxu0 0.0
  %407 = vmatprep.subr.mxu0 0.0
  %408 = vmatpush1.msra.mxu0 0.0
  %409 = vmatprep.subr.mxu0 0.0
  %410 = vmatpush1.msra.mxu0 0.0
  %411 = vmatprep.subr.mxu0 0.0
  %412 = vmatpush1.msra.mxu0 0.0
  %413 = vmatprep.subr.mxu0 0.0
  %414 = vmatpush1.msra.mxu0 0.0
  %415 = vmatprep.subr.mxu0 0.0
  %416 = vmatpush1.msra.mxu0 0.0
  %417 = vmatprep.subr.mxu0 0.0
  %418 = vmatpush1.msra.mxu0 0.0
  %419 = vmatprep.subr.mxu0 0.0
  %420 = vmatpush1.msra.mxu0 0.0
  %421 = vmatprep.mubr.f32.mxu0 0.0
  %422 = vmatmul.mubr.f32.gmra.mrb[0].mxu0 %v180
  %v423 = vpop.f32.mrb[0].mxu0
  %v424 = vadd.f32 %v355, %v423
  %v425 = vpop.f32.mrb[0].mxu0
  %426 = vmatprep.mubr.f32.mxu0 0.0
  %427 = vmatmul.mubr.f32.gmra.mrb[0].mxu0 %v183
  %v428 = vpop.f32.mrb[0].mxu0
  %v429 = vadd.f32 %v355, %v428
  %v430 = vpop.f32.mrb[0].mxu0
  %431 = vdwg.mxu0
  %433 = vrot.lane.b32.xlu0 %v252, 120
  %v434 = vpop.permute.xlu0 %433
  %436 = vrot.lane.b32.xlu0 %v252, 112
  %v437 = vpop.permute.xlu0 %436
  %439 = vrot.lane.b32.xlu0 %v252, 104
  %v440 = vpop.permute.xlu0 %439
  %443 = vrot.lane.b32.xlu0 %v257, 120
  %v444 = vpop.permute.xlu0 %443
  %446 = vrot.lane.b32.xlu0 %v257, 112
  %v447 = vpop.permute.xlu0 %446
  %449 = vrot.lane.b32.xlu0 %v257, 104
  %v450 = vpop.permute.xlu0 %449
  %v452 = vmul.f32 %v252, 0.35355338
  %v453 = vmul.f32 %v434, 0.35355338
  %v454 = vmul.f32 %v437, 0.35355338
  %v455 = vmul.f32 %v440, 0.35355338
  %v456 = vmul.f32 %v257, 0.35355338
  %v457 = vmul.f32 %v444, 0.35355338
  %v458 = vmul.f32 %v447, 0.35355338
  %v459 = vmul.f32 %v450, 0.35355338
  %461 = vrot.lane.b32.xlu0 %v338, 120
  %v462 = vpop.permute.xlu0 %461
  %463 = vrot.lane.b32.xlu0 %v338, 112
  %v464 = vpop.permute.xlu0 %463
  %465 = vrot.lane.b32.xlu0 %v338, 104
  %v466 = vpop.permute.xlu0 %465
  %468 = vrot.lane.b32.xlu0 %v343, 120
  %v469 = vpop.permute.xlu0 %468
  %470 = vrot.lane.b32.xlu0 %v343, 112
  %v471 = vpop.permute.xlu0 %470
  %472 = vrot.lane.b32.xlu0 %v343, 104
  %v473 = vpop.permute.xlu0 %472
  %475 = vrot.lane.b32.xlu0 %v424, 120
  %v476 = vpop.permute.xlu0 %475
  %478 = vrot.lane.b32.xlu0 %v424, 112
  %v479 = vpop.permute.xlu0 %478
  %481 = vrot.lane.b32.xlu0 %v424, 104
  %v482 = vpop.permute.xlu0 %481
  %485 = vrot.lane.b32.xlu0 %v429, 120
  %v486 = vpop.permute.xlu0 %485
  %488 = vrot.lane.b32.xlu0 %v429, 112
  %v489 = vpop.permute.xlu0 %488
  %491 = vrot.lane.b32.xlu0 %v429, 104
  %v492 = vpop.permute.xlu0 %491
  %vm494 = vcmask 64512
  %v496 = vsel %vm494, %v452, 0
  %v498 = vsel %vm494, %v338, 0
  %500 = vmatprep.subr.mxu0 0.0
  %501 = vmatpush1.xpose.msra.mxu0 %v498
  %502 = vmatprep.subr.mxu0 0.0
  %503 = vmatpush1.xpose.msra.mxu0 0.0
  %504 = vmatprep.subr.mxu0 0.0
  %505 = vmatpush1.xpose.msra.mxu0 0.0
  %506 = vmatprep.subr.mxu0 0.0
  %507 = vmatpush1.xpose.msra.mxu0 0.0
  %508 = vmatprep.subr.mxu0 0.0
  %509 = vmatpush1.xpose.msra.mxu0 0.0
  %510 = vmatprep.subr.mxu0 0.0
  %511 = vmatpush1.xpose.msra.mxu0 0.0
  %512 = vmatprep.subr.mxu0 0.0
  %513 = vmatpush1.xpose.msra.mxu0 0.0
  %514 = vmatprep.subr.mxu0 0.0
  %515 = vmatpush1.xpose.msra.mxu0 0.0
  %516 = vmatprep.subr.mxu0 0.0
  %517 = vmatpush1.xpose.msra.mxu0 0.0
  %518 = vmatprep.subr.mxu0 0.0
  %519 = vmatpush1.xpose.msra.mxu0 0.0
  %520 = vmatprep.subr.mxu0 0.0
  %521 = vmatpush1.xpose.msra.mxu0 0.0
  %522 = vmatprep.subr.mxu0 0.0
  %523 = vmatpush1.xpose.msra.mxu0 0.0
  %524 = vmatprep.subr.mxu0 0.0
  %525 = vmatpush1.xpose.msra.mxu0 0.0
  %526 = vmatprep.subr.mxu0 0.0
  %527 = vmatpush1.xpose.msra.mxu0 0.0
  %528 = vmatprep.subr.mxu0 0.0
  %529 = vmatpush1.xpose.msra.mxu0 0.0
  %530 = vmatprep.subr.mxu0 0.0
  %531 = vmatpush1.xpose.msra.mxu0 0.0
  %532 = vmatprep.subr.mxu0 0.0
  %533 = vmatpush1.xpose.msra.mxu0 0.0
  %534 = vmatprep.subr.mxu0 0.0
  %535 = vmatpush1.xpose.msra.mxu0 0.0
  %536 = vmatprep.subr.mxu0 0.0
  %537 = vmatpush1.xpose.msra.mxu0 0.0
  %538 = vmatprep.subr.mxu0 0.0
  %539 = vmatpush1.xpose.msra.mxu0 0.0
  %540 = vmatprep.subr.mxu0 0.0
  %541 = vmatpush1.xpose.msra.mxu0 0.0
  %542 = vmatprep.subr.mxu0 0.0
  %543 = vmatpush1.xpose.msra.mxu0 0.0
  %544 = vmatprep.subr.mxu0 0.0
  %545 = vmatpush1.xpose.msra.mxu0 0.0
  %546 = vmatprep.subr.mxu0 0.0
  %547 = vmatpush1.xpose.msra.mxu0 0.0
  %548 = vmatprep.subr.mxu0 0.0
  %549 = vmatpush1.xpose.msra.mxu0 0.0
  %550 = vmatprep.subr.mxu0 0.0
  %551 = vmatpush1.xpose.msra.mxu0 0.0
  %552 = vmatprep.subr.mxu0 0.0
  %553 = vmatpush1.xpose.msra.mxu0 0.0
  %554 = vmatprep.subr.mxu0 0.0
  %555 = vmatpush1.xpose.msra.mxu0 0.0
  %556 = vmatprep.subr.mxu0 0.0
  %557 = vmatpush1.xpose.msra.mxu0 0.0
  %558 = vmatprep.subr.mxu0 0.0
  %559 = vmatpush1.xpose.msra.mxu0 0.0
  %560 = vmatprep.subr.mxu0 0.0
  %561 = vmatpush1.xpose.msra.mxu0 0.0
  %562 = vmatprep.subr.mxu0 0.0
  %563 = vmatpush1.xpose.msra.mxu0 0.0
  %564 = vmatprep.mubr.f32.mxu0 0.0
  %565 = vmatmul.mubr.f32.gmra.mrb[0].mxu0 %v496
  %v566 = vpop.f32.mrb[0].mxu0
  %v567 = vadd.f32 0.0, %v566
  %v568 = vpop.f32.mrb[0].mxu0
  %569 = vdwg.mxu0
  %v571 = vsel %vm494, %v453, 0
  %v573 = vsel %vm494, %v462, 0
  %575 = vmatprep.subr.mxu0 0.0
  %576 = vmatpush1.xpose.msra.mxu0 %v573
  %577 = vmatprep.subr.mxu0 0.0
  %578 = vmatpush1.xpose.msra.mxu0 0.0
  %579 = vmatprep.subr.mxu0 0.0
  %580 = vmatpush1.xpose.msra.mxu0 0.0
  %581 = vmatprep.subr.mxu0 0.0
  %582 = vmatpush1.xpose.msra.mxu0 0.0
  %583 = vmatprep.subr.mxu0 0.0
  %584 = vmatpush1.xpose.msra.mxu0 0.0
  %585 = vmatprep.subr.mxu0 0.0
  %586 = vmatpush1.xpose.msra.mxu0 0.0
  %587 = vmatprep.subr.mxu0 0.0
  %588 = vmatpush1.xpose.msra.mxu0 0.0
  %589 = vmatprep.subr.mxu0 0.0
  %590 = vmatpush1.xpose.msra.mxu0 0.0
  %591 = vmatprep.subr.mxu0 0.0
  %592 = vmatpush1.xpose.msra.mxu0 0.0
  %593 = vmatprep.subr.mxu0 0.0
  %594 = vmatpush1.xpose.msra.mxu0 0.0
  %595 = vmatprep.subr.mxu0 0.0
  %596 = vmatpush1.xpose.msra.mxu0 0.0
  %597 = vmatprep.subr.mxu0 0.0
  %598 = vmatpush1.xpose.msra.mxu0 0.0
  %599 = vmatprep.subr.mxu0 0.0
  %600 = vmatpush1.xpose.msra.mxu0 0.0
  %601 = vmatprep.subr.mxu0 0.0
  %602 = vmatpush1.xpose.msra.mxu0 0.0
  %603 = vmatprep.subr.mxu0 0.0
  %604 = vmatpush1.xpose.msra.mxu0 0.0
  %605 = vmatprep.subr.mxu0 0.0
  %606 = vmatpush1.xpose.msra.mxu0 0.0
  %607 = vmatprep.subr.mxu0 0.0
  %608 = vmatpush1.xpose.msra.mxu0 0.0
  %609 = vmatprep.subr.mxu0 0.0
  %610 = vmatpush1.xpose.msra.mxu0 0.0
  %611 = vmatprep.subr.mxu0 0.0
  %612 = vmatpush1.xpose.msra.mxu0 0.0
  %613 = vmatprep.subr.mxu0 0.0
  %614 = vmatpush1.xpose.msra.mxu0 0.0
  %615 = vmatprep.subr.mxu0 0.0
  %616 = vmatpush1.xpose.msra.mxu0 0.0
  %617 = vmatprep.subr.mxu0 0.0
  %618 = vmatpush1.xpose.msra.mxu0 0.0
  %619 = vmatprep.subr.mxu0 0.0
  %620 = vmatpush1.xpose.msra.mxu0 0.0
  %621 = vmatprep.subr.mxu0 0.0
  %622 = vmatpush1.xpose.msra.mxu0 0.0
  %623 = vmatprep.subr.mxu0 0.0
  %624 = vmatpush1.xpose.msra.mxu0 0.0
  %625 = vmatprep.subr.mxu0 0.0
  %626 = vmatpush1.xpose.msra.mxu0 0.0
  %627 = vmatprep.subr.mxu0 0.0
  %628 = vmatpush1.xpose.msra.mxu0 0.0
  %629 = vmatprep.subr.mxu0 0.0
  %630 = vmatpush1.xpose.msra.mxu0 0.0
  %631 = vmatprep.subr.mxu0 0.0
  %632 = vmatpush1.xpose.msra.mxu0 0.0
  %633 = vmatprep.subr.mxu0 0.0
  %634 = vmatpush1.xpose.msra.mxu0 0.0
  %635 = vmatprep.subr.mxu0 0.0
  %636 = vmatpush1.xpose.msra.mxu0 0.0
  %637 = vmatprep.subr.mxu0 0.0
  %638 = vmatpush1.xpose.msra.mxu0 0.0
  %639 = vmatprep.mubr.f32.mxu0 0.0
  %640 = vmatmul.mubr.f32.gmra.mrb[0].mxu0 %v571
  %v641 = vpop.f32.mrb[0].mxu0
  %v642 = vadd.f32 0.0, %v641
  %v643 = vpop.f32.mrb[0].mxu0
  %644 = vdwg.mxu0
  %v646 = vsel %vm494, %v454, 0
  %v648 = vsel %vm494, %v464, 0
  %650 = vmatprep.subr.mxu0 0.0
  %651 = vmatpush1.xpose.msra.mxu0 %v648
  %652 = vmatprep.subr.mxu0 0.0
  %653 = vmatpush1.xpose.msra.mxu0 0.0
  %654 = vmatprep.subr.mxu0 0.0
  %655 = vmatpush1.xpose.msra.mxu0 0.0
  %656 = vmatprep.subr.mxu0 0.0
  %657 = vmatpush1.xpose.msra.mxu0 0.0
  %658 = vmatprep.subr.mxu0 0.0
  %659 = vmatpush1.xpose.msra.mxu0 0.0
  %660 = vmatprep.subr.mxu0 0.0
  %661 = vmatpush1.xpose.msra.mxu0 0.0
  %662 = vmatprep.subr.mxu0 0.0
  %663 = vmatpush1.xpose.msra.mxu0 0.0
  %664 = vmatprep.subr.mxu0 0.0
  %665 = vmatpush1.xpose.msra.mxu0 0.0
  %666 = vmatprep.subr.mxu0 0.0
  %667 = vmatpush1.xpose.msra.mxu0 0.0
  %668 = vmatprep.subr.mxu0 0.0
  %669 = vmatpush1.xpose.msra.mxu0 0.0
  %670 = vmatprep.subr.mxu0 0.0
  %671 = vmatpush1.xpose.msra.mxu0 0.0
  %672 = vmatprep.subr.mxu0 0.0
  %673 = vmatpush1.xpose.msra.mxu0 0.0
  %674 = vmatprep.subr.mxu0 0.0
  %675 = vmatpush1.xpose.msra.mxu0 0.0
  %676 = vmatprep.subr.mxu0 0.0
  %677 = vmatpush1.xpose.msra.mxu0 0.0
  %678 = vmatprep.subr.mxu0 0.0
  %679 = vmatpush1.xpose.msra.mxu0 0.0
  %680 = vmatprep.subr.mxu0 0.0
  %681 = vmatpush1.xpose.msra.mxu0 0.0
  %682 = vmatprep.subr.mxu0 0.0
  %683 = vmatpush1.xpose.msra.mxu0 0.0
  %684 = vmatprep.subr.mxu0 0.0
  %685 = vmatpush1.xpose.msra.mxu0 0.0
  %686 = vmatprep.subr.mxu0 0.0
  %687 = vmatpush1.xpose.msra.mxu0 0.0
  %688 = vmatprep.subr.mxu0 0.0
  %689 = vmatpush1.xpose.msra.mxu0 0.0
  %690 = vmatprep.subr.mxu0 0.0
  %691 = vmatpush1.xpose.msra.mxu0 0.0
  %692 = vmatprep.subr.mxu0 0.0
  %693 = vmatpush1.xpose.msra.mxu0 0.0
  %694 = vmatprep.subr.mxu0 0.0
  %695 = vmatpush1.xpose.msra.mxu0 0.0
  %696 = vmatprep.subr.mxu0 0.0
  %697 = vmatpush1.xpose.msra.mxu0 0.0
  %698 = vmatprep.subr.mxu0 0.0
  %699 = vmatpush1.xpose.msra.mxu0 0.0
  %700 = vmatprep.subr.mxu0 0.0
  %701 = vmatpush1.xpose.msra.mxu0 0.0
  %702 = vmatprep.subr.mxu0 0.0
  %703 = vmatpush1.xpose.msra.mxu0 0.0
  %704 = vmatprep.subr.mxu0 0.0
  %705 = vmatpush1.xpose.msra.mxu0 0.0
  %706 = vmatprep.subr.mxu0 0.0
  %707 = vmatpush1.xpose.msra.mxu0 0.0
  %708 = vmatprep.subr.mxu0 0.0
  %709 = vmatpush1.xpose.msra.mxu0 0.0
  %710 = vmatprep.subr.mxu0 0.0
  %711 = vmatpush1.xpose.msra.mxu0 0.0
  %712 = vmatprep.subr.mxu0 0.0
  %713 = vmatpush1.xpose.msra.mxu0 0.0
  %714 = vmatprep.mubr.f32.mxu0 0.0
  %715 = vmatmul.mubr.f32.gmra.mrb[0].mxu0 %v646
  %v716 = vpop.f32.mrb[0].mxu0
  %v717 = vadd.f32 0.0, %v716
  %v718 = vpop.f32.mrb[0].mxu0
  %719 = vdwg.mxu0
  %v721 = vsel %vm494, %v455, 0
  %v723 = vsel %vm494, %v466, 0
  %725 = vmatprep.subr.mxu0 0.0
  %726 = vmatpush1.xpose.msra.mxu0 %v723
  %727 = vmatprep.subr.mxu0 0.0
  %728 = vmatpush1.xpose.msra.mxu0 0.0
  %729 = vmatprep.subr.mxu0 0.0
  %730 = vmatpush1.xpose.msra.mxu0 0.0
  %731 = vmatprep.subr.mxu0 0.0
  %732 = vmatpush1.xpose.msra.mxu0 0.0
  %733 = vmatprep.subr.mxu0 0.0
  %734 = vmatpush1.xpose.msra.mxu0 0.0
  %735 = vmatprep.subr.mxu0 0.0
  %736 = vmatpush1.xpose.msra.mxu0 0.0
  %737 = vmatprep.subr.mxu0 0.0
  %738 = vmatpush1.xpose.msra.mxu0 0.0
  %739 = vmatprep.subr.mxu0 0.0
  %740 = vmatpush1.xpose.msra.mxu0 0.0
  %741 = vmatprep.subr.mxu0 0.0
  %742 = vmatpush1.xpose.msra.mxu0 0.0
  %743 = vmatprep.subr.mxu0 0.0
  %744 = vmatpush1.xpose.msra.mxu0 0.0
  %745 = vmatprep.subr.mxu0 0.0
  %746 = vmatpush1.xpose.msra.mxu0 0.0
  %747 = vmatprep.subr.mxu0 0.0
  %748 = vmatpush1.xpose.msra.mxu0 0.0
  %749 = vmatprep.subr.mxu0 0.0
  %750 = vmatpush1.xpose.msra.mxu0 0.0
  %751 = vmatprep.subr.mxu0 0.0
  %752 = vmatpush1.xpose.msra.mxu0 0.0
  %753 = vmatprep.subr.mxu0 0.0
  %754 = vmatpush1.xpose.msra.mxu0 0.0
  %755 = vmatprep.subr.mxu0 0.0
  %756 = vmatpush1.xpose.msra.mxu0 0.0
  %757 = vmatprep.subr.mxu0 0.0
  %758 = vmatpush1.xpose.msra.mxu0 0.0
  %759 = vmatprep.subr.mxu0 0.0
  %760 = vmatpush1.xpose.msra.mxu0 0.0
  %761 = vmatprep.subr.mxu0 0.0
  %762 = vmatpush1.xpose.msra.mxu0 0.0
  %763 = vmatprep.subr.mxu0 0.0
  %764 = vmatpush1.xpose.msra.mxu0 0.0
  %765 = vmatprep.subr.mxu0 0.0
  %766 = vmatpush1.xpose.msra.mxu0 0.0
  %767 = vmatprep.subr.mxu0 0.0
  %768 = vmatpush1.xpose.msra.mxu0 0.0
  %769 = vmatprep.subr.mxu0 0.0
  %770 = vmatpush1.xpose.msra.mxu0 0.0
  %771 = vmatprep.subr.mxu0 0.0
  %772 = vmatpush1.xpose.msra.mxu0 0.0
  %773 = vmatprep.subr.mxu0 0.0
  %774 = vmatpush1.xpose.msra.mxu0 0.0
  %775 = vmatprep.subr.mxu0 0.0
  %776 = vmatpush1.xpose.msra.mxu0 0.0
  %777 = vmatprep.subr.mxu0 0.0
  %778 = vmatpush1.xpose.msra.mxu0 0.0
  %779 = vmatprep.subr.mxu0 0.0
  %780 = vmatpush1.xpose.msra.mxu0 0.0
  %781 = vmatprep.subr.mxu0 0.0
  %782 = vmatpush1.xpose.msra.mxu0 0.0
  %783 = vmatprep.subr.mxu0 0.0
  %784 = vmatpush1.xpose.msra.mxu0 0.0
  %785 = vmatprep.subr.mxu0 0.0
  %786 = vmatpush1.xpose.msra.mxu0 0.0
  %787 = vmatprep.subr.mxu0 0.0
  %788 = vmatpush1.xpose.msra.mxu0 0.0
  %789 = vmatprep.mubr.f32.mxu0 0.0
  %790 = vmatmul.mubr.f32.gmra.mrb[0].mxu0 %v721
  %v791 = vpop.f32.mrb[0].mxu0
  %v792 = vadd.f32 0.0, %v791
  %v793 = vpop.f32.mrb[0].mxu0
  %794 = vdwg.mxu0
  %v796 = vsel %vm494, %v456, 0
  %v798 = vsel %vm494, %v343, 0
  %800 = vmatprep.subr.mxu0 0.0
  %801 = vmatpush1.xpose.msra.mxu0 %v798
  %802 = vmatprep.subr.mxu0 0.0
  %803 = vmatpush1.xpose.msra.mxu0 0.0
  %804 = vmatprep.subr.mxu0 0.0
  %805 = vmatpush1.xpose.msra.mxu0 0.0
  %806 = vmatprep.subr.mxu0 0.0
  %807 = vmatpush1.xpose.msra.mxu0 0.0
  %808 = vmatprep.subr.mxu0 0.0
  %809 = vmatpush1.xpose.msra.mxu0 0.0
  %810 = vmatprep.subr.mxu0 0.0
  %811 = vmatpush1.xpose.msra.mxu0 0.0
  %812 = vmatprep.subr.mxu0 0.0
  %813 = vmatpush1.xpose.msra.mxu0 0.0
  %814 = vmatprep.subr.mxu0 0.0
  %815 = vmatpush1.xpose.msra.mxu0 0.0
  %816 = vmatprep.subr.mxu0 0.0
  %817 = vmatpush1.xpose.msra.mxu0 0.0
  %818 = vmatprep.subr.mxu0 0.0
  %819 = vmatpush1.xpose.msra.mxu0 0.0
  %820 = vmatprep.subr.mxu0 0.0
  %821 = vmatpush1.xpose.msra.mxu0 0.0
  %822 = vmatprep.subr.mxu0 0.0
  %823 = vmatpush1.xpose.msra.mxu0 0.0
  %824 = vmatprep.subr.mxu0 0.0
  %825 = vmatpush1.xpose.msra.mxu0 0.0
  %826 = vmatprep.subr.mxu0 0.0
  %827 = vmatpush1.xpose.msra.mxu0 0.0
  %828 = vmatprep.subr.mxu0 0.0
  %829 = vmatpush1.xpose.msra.mxu0 0.0
  %830 = vmatprep.subr.mxu0 0.0
  %831 = vmatpush1.xpose.msra.mxu0 0.0
  %832 = vmatprep.subr.mxu0 0.0
  %833 = vmatpush1.xpose.msra.mxu0 0.0
  %834 = vmatprep.subr.mxu0 0.0
  %835 = vmatpush1.xpose.msra.mxu0 0.0
  %836 = vmatprep.subr.mxu0 0.0
  %837 = vmatpush1.xpose.msra.mxu0 0.0
  %838 = vmatprep.subr.mxu0 0.0
  %839 = vmatpush1.xpose.msra.mxu0 0.0
  %840 = vmatprep.subr.mxu0 0.0
  %841 = vmatpush1.xpose.msra.mxu0 0.0
  %842 = vmatprep.subr.mxu0 0.0
  %843 = vmatpush1.xpose.msra.mxu0 0.0
  %844 = vmatprep.subr.mxu0 0.0
  %845 = vmatpush1.xpose.msra.mxu0 0.0
  %846 = vmatprep.subr.mxu0 0.0
  %847 = vmatpush1.xpose.msra.mxu0 0.0
  %848 = vmatprep.subr.mxu0 0.0
  %849 = vmatpush1.xpose.msra.mxu0 0.0
  %850 = vmatprep.subr.mxu0 0.0
  %851 = vmatpush1.xpose.msra.mxu0 0.0
  %852 = vmatprep.subr.mxu0 0.0
  %853 = vmatpush1.xpose.msra.mxu0 0.0
  %854 = vmatprep.subr.mxu0 0.0
  %855 = vmatpush1.xpose.msra.mxu0 0.0
  %856 = vmatprep.subr.mxu0 0.0
  %857 = vmatpush1.xpose.msra.mxu0 0.0
  %858 = vmatprep.subr.mxu0 0.0
  %859 = vmatpush1.xpose.msra.mxu0 0.0
  %860 = vmatprep.subr.mxu0 0.0
  %861 = vmatpush1.xpose.msra.mxu0 0.0
  %862 = vmatprep.subr.mxu0 0.0
  %863 = vmatpush1.xpose.msra.mxu0 0.0
  %864 = vmatprep.mubr.f32.mxu0 0.0
  %865 = vmatmul.mubr.f32.gmra.mrb[0].mxu0 %v796
  %v866 = vpop.f32.mrb[0].mxu0
  %v867 = vadd.f32 0.0, %v866
  %v868 = vpop.f32.mrb[0].mxu0
  %869 = vdwg.mxu0
  %v871 = vsel %vm494, %v457, 0
  %v873 = vsel %vm494, %v469, 0
  %875 = vmatprep.subr.mxu0 0.0
  %876 = vmatpush1.xpose.msra.mxu0 %v873
  %877 = vmatprep.subr.mxu0 0.0
  %878 = vmatpush1.xpose.msra.mxu0 0.0
  %879 = vmatprep.subr.mxu0 0.0
  %880 = vmatpush1.xpose.msra.mxu0 0.0
  %881 = vmatprep.subr.mxu0 0.0
  %882 = vmatpush1.xpose.msra.mxu0 0.0
  %883 = vmatprep.subr.mxu0 0.0
  %884 = vmatpush1.xpose.msra.mxu0 0.0
  %885 = vmatprep.subr.mxu0 0.0
  %886 = vmatpush1.xpose.msra.mxu0 0.0
  %887 = vmatprep.subr.mxu0 0.0
  %888 = vmatpush1.xpose.msra.mxu0 0.0
  %889 = vmatprep.subr.mxu0 0.0
  %890 = vmatpush1.xpose.msra.mxu0 0.0
  %891 = vmatprep.subr.mxu0 0.0
  %892 = vmatpush1.xpose.msra.mxu0 0.0
  %893 = vmatprep.subr.mxu0 0.0
  %894 = vmatpush1.xpose.msra.mxu0 0.0
  %895 = vmatprep.subr.mxu0 0.0
  %896 = vmatpush1.xpose.msra.mxu0 0.0
  %897 = vmatprep.subr.mxu0 0.0
  %898 = vmatpush1.xpose.msra.mxu0 0.0
  %899 = vmatprep.subr.mxu0 0.0
  %900 = vmatpush1.xpose.msra.mxu0 0.0
  %901 = vmatprep.subr.mxu0 0.0
  %902 = vmatpush1.xpose.msra.mxu0 0.0
  %903 = vmatprep.subr.mxu0 0.0
  %904 = vmatpush1.xpose.msra.mxu0 0.0
  %905 = vmatprep.subr.mxu0 0.0
  %906 = vmatpush1.xpose.msra.mxu0 0.0
  %907 = vmatprep.subr.mxu0 0.0
  %908 = vmatpush1.xpose.msra.mxu0 0.0
  %909 = vmatprep.subr.mxu0 0.0
  %910 = vmatpush1.xpose.msra.mxu0 0.0
  %911 = vmatprep.subr.mxu0 0.0
  %912 = vmatpush1.xpose.msra.mxu0 0.0
  %913 = vmatprep.subr.mxu0 0.0
  %914 = vmatpush1.xpose.msra.mxu0 0.0
  %915 = vmatprep.subr.mxu0 0.0
  %916 = vmatpush1.xpose.msra.mxu0 0.0
  %917 = vmatprep.subr.mxu0 0.0
  %918 = vmatpush1.xpose.msra.mxu0 0.0
  %919 = vmatprep.subr.mxu0 0.0
  %920 = vmatpush1.xpose.msra.mxu0 0.0
  %921 = vmatprep.subr.mxu0 0.0
  %922 = vmatpush1.xpose.msra.mxu0 0.0
  %923 = vmatprep.subr.mxu0 0.0
  %924 = vmatpush1.xpose.msra.mxu0 0.0
  %925 = vmatprep.subr.mxu0 0.0
  %926 = vmatpush1.xpose.msra.mxu0 0.0
  %927 = vmatprep.subr.mxu0 0.0
  %928 = vmatpush1.xpose.msra.mxu0 0.0
  %929 = vmatprep.subr.mxu0 0.0
  %930 = vmatpush1.xpose.msra.mxu0 0.0
  %931 = vmatprep.subr.mxu0 0.0
  %932 = vmatpush1.xpose.msra.mxu0 0.0
  %933 = vmatprep.subr.mxu0 0.0
  %934 = vmatpush1.xpose.msra.mxu0 0.0
  %935 = vmatprep.subr.mxu0 0.0
  %936 = vmatpush1.xpose.msra.mxu0 0.0
  %937 = vmatprep.subr.mxu0 0.0
  %938 = vmatpush1.xpose.msra.mxu0 0.0
  %939 = vmatprep.mubr.f32.mxu0 0.0
  %940 = vmatmul.mubr.f32.gmra.mrb[0].mxu0 %v871
  %v941 = vpop.f32.mrb[0].mxu0
  %v942 = vadd.f32 0.0, %v941
  %v943 = vpop.f32.mrb[0].mxu0
  %944 = vdwg.mxu0
  %v946 = vsel %vm494, %v458, 0
  %v948 = vsel %vm494, %v471, 0
  %950 = vmatprep.subr.mxu0 0.0
  %951 = vmatpush1.xpose.msra.mxu0 %v948
  %952 = vmatprep.subr.mxu0 0.0
  %953 = vmatpush1.xpose.msra.mxu0 0.0
  %954 = vmatprep.subr.mxu0 0.0
  %955 = vmatpush1.xpose.msra.mxu0 0.0
  %956 = vmatprep.subr.mxu0 0.0
  %957 = vmatpush1.xpose.msra.mxu0 0.0
  %958 = vmatprep.subr.mxu0 0.0
  %959 = vmatpush1.xpose.msra.mxu0 0.0
  %960 = vmatprep.subr.mxu0 0.0
  %961 = vmatpush1.xpose.msra.mxu0 0.0
  %962 = vmatprep.subr.mxu0 0.0
  %963 = vmatpush1.xpose.msra.mxu0 0.0
  %964 = vmatprep.subr.mxu0 0.0
  %965 = vmatpush1.xpose.msra.mxu0 0.0
  %966 = vmatprep.subr.mxu0 0.0
  %967 = vmatpush1.xpose.msra.mxu0 0.0
  %968 = vmatprep.subr.mxu0 0.0
  %969 = vmatpush1.xpose.msra.mxu0 0.0
  %970 = vmatprep.subr.mxu0 0.0
  %971 = vmatpush1.xpose.msra.mxu0 0.0
  %972 = vmatprep.subr.mxu0 0.0
  %973 = vmatpush1.xpose.msra.mxu0 0.0
  %974 = vmatprep.subr.mxu0 0.0
  %975 = vmatpush1.xpose.msra.mxu0 0.0
  %976 = vmatprep.subr.mxu0 0.0
  %977 = vmatpush1.xpose.msra.mxu0 0.0
  %978 = vmatprep.subr.mxu0 0.0
  %979 = vmatpush1.xpose.msra.mxu0 0.0
  %980 = vmatprep.subr.mxu0 0.0
  %981 = vmatpush1.xpose.msra.mxu0 0.0
  %982 = vmatprep.subr.mxu0 0.0
  %983 = vmatpush1.xpose.msra.mxu0 0.0
  %984 = vmatprep.subr.mxu0 0.0
  %985 = vmatpush1.xpose.msra.mxu0 0.0
  %986 = vmatprep.subr.mxu0 0.0
  %987 = vmatpush1.xpose.msra.mxu0 0.0
  %988 = vmatprep.subr.mxu0 0.0
  %989 = vmatpush1.xpose.msra.mxu0 0.0
  %990 = vmatprep.subr.mxu0 0.0
  %991 = vmatpush1.xpose.msra.mxu0 0.0
  %992 = vmatprep.subr.mxu0 0.0
  %993 = vmatpush1.xpose.msra.mxu0 0.0
  %994 = vmatprep.subr.mxu0 0.0
  %995 = vmatpush1.xpose.msra.mxu0 0.0
  %996 = vmatprep.subr.mxu0 0.0
  %997 = vmatpush1.xpose.msra.mxu0 0.0
  %998 = vmatprep.subr.mxu0 0.0
  %999 = vmatpush1.xpose.msra.mxu0 0.0
  %1000 = vmatprep.subr.mxu0 0.0
  %1001 = vmatpush1.xpose.msra.mxu0 0.0
  %1002 = vmatprep.subr.mxu0 0.0
  %1003 = vmatpush1.xpose.msra.mxu0 0.0
  %1004 = vmatprep.subr.mxu0 0.0
  %1005 = vmatpush1.xpose.msra.mxu0 0.0
  %1006 = vmatprep.subr.mxu0 0.0
  %1007 = vmatpush1.xpose.msra.mxu0 0.0
  %1008 = vmatprep.subr.mxu0 0.0
  %1009 = vmatpush1.xpose.msra.mxu0 0.0
  %1010 = vmatprep.subr.mxu0 0.0
  %1011 = vmatpush1.xpose.msra.mxu0 0.0
  %1012 = vmatprep.subr.mxu0 0.0
  %1013 = vmatpush1.xpose.msra.mxu0 0.0
  %1014 = vmatprep.mubr.f32.mxu0 0.0
  %1015 = vmatmul.mubr.f32.gmra.mrb[0].mxu0 %v946
  %v1016 = vpop.f32.mrb[0].mxu0
  %v1017 = vadd.f32 0.0, %v1016
  %v1018 = vpop.f32.mrb[0].mxu0
  %1019 = vdwg.mxu0
  %v1021 = vsel %vm494, %v459, 0
  %v1023 = vsel %vm494, %v473, 0
  %1025 = vmatprep.subr.mxu0 0.0
  %1026 = vmatpush1.xpose.msra.mxu0 %v1023
  %1027 = vmatprep.subr.mxu0 0.0
  %1028 = vmatpush1.xpose.msra.mxu0 0.0
  %1029 = vmatprep.subr.mxu0 0.0
  %1030 = vmatpush1.xpose.msra.mxu0 0.0
  %1031 = vmatprep.subr.mxu0 0.0
  %1032 = vmatpush1.xpose.msra.mxu0 0.0
  %1033 = vmatprep.subr.mxu0 0.0
  %1034 = vmatpush1.xpose.msra.mxu0 0.0
  %1035 = vmatprep.subr.mxu0 0.0
  %1036 = vmatpush1.xpose.msra.mxu0 0.0
  %1037 = vmatprep.subr.mxu0 0.0
  %1038 = vmatpush1.xpose.msra.mxu0 0.0
  %1039 = vmatprep.subr.mxu0 0.0
  %1040 = vmatpush1.xpose.msra.mxu0 0.0
  %1041 = vmatprep.subr.mxu0 0.0
  %1042 = vmatpush1.xpose.msra.mxu0 0.0
  %1043 = vmatprep.subr.mxu0 0.0
  %1044 = vmatpush1.xpose.msra.mxu0 0.0
  %1045 = vmatprep.subr.mxu0 0.0
  %1046 = vmatpush1.xpose.msra.mxu0 0.0
  %1047 = vmatprep.subr.mxu0 0.0
  %1048 = vmatpush1.xpose.msra.mxu0 0.0
  %1049 = vmatprep.subr.mxu0 0.0
  %1050 = vmatpush1.xpose.msra.mxu0 0.0
  %1051 = vmatprep.subr.mxu0 0.0
  %1052 = vmatpush1.xpose.msra.mxu0 0.0
  %1053 = vmatprep.subr.mxu0 0.0
  %1054 = vmatpush1.xpose.msra.mxu0 0.0
  %1055 = vmatprep.subr.mxu0 0.0
  %1056 = vmatpush1.xpose.msra.mxu0 0.0
  %1057 = vmatprep.subr.mxu0 0.0
  %1058 = vmatpush1.xpose.msra.mxu0 0.0
  %1059 = vmatprep.subr.mxu0 0.0
  %1060 = vmatpush1.xpose.msra.mxu0 0.0
  %1061 = vmatprep.subr.mxu0 0.0
  %1062 = vmatpush1.xpose.msra.mxu0 0.0
  %1063 = vmatprep.subr.mxu0 0.0
  %1064 = vmatpush1.xpose.msra.mxu0 0.0
  %1065 = vmatprep.subr.mxu0 0.0
  %1066 = vmatpush1.xpose.msra.mxu0 0.0
  %1067 = vmatprep.subr.mxu0 0.0
  %1068 = vmatpush1.xpose.msra.mxu0 0.0
  %1069 = vmatprep.subr.mxu0 0.0
  %1070 = vmatpush1.xpose.msra.mxu0 0.0
  %1071 = vmatprep.subr.mxu0 0.0
  %1072 = vmatpush1.xpose.msra.mxu0 0.0
  %1073 = vmatprep.subr.mxu0 0.0
  %1074 = vmatpush1.xpose.msra.mxu0 0.0
  %1075 = vmatprep.subr.mxu0 0.0
  %1076 = vmatpush1.xpose.msra.mxu0 0.0
  %1077 = vmatprep.subr.mxu0 0.0
  %1078 = vmatpush1.xpose.msra.mxu0 0.0
  %1079 = vmatprep.subr.mxu0 0.0
  %1080 = vmatpush1.xpose.msra.mxu0 0.0
  %1081 = vmatprep.subr.mxu0 0.0
  %1082 = vmatpush1.xpose.msra.mxu0 0.0
  %1083 = vmatprep.subr.mxu0 0.0
  %1084 = vmatpush1.xpose.msra.mxu0 0.0
  %1085 = vmatprep.subr.mxu0 0.0
  %1086 = vmatpush1.xpose.msra.mxu0 0.0
  %1087 = vmatprep.subr.mxu0 0.0
  %1088 = vmatpush1.xpose.msra.mxu0 0.0
  %1089 = vmatprep.mubr.f32.mxu0 0.0
  %1090 = vmatmul.mubr.f32.gmra.mrb[0].mxu0 %v1021
  %v1091 = vpop.f32.mrb[0].mxu0
  %v1092 = vadd.f32 0.0, %v1091
  %v1093 = vpop.f32.mrb[0].mxu0
  %1094 = vdwg.mxu0
  %vm1095 = vcmp.eq.f32.partialorder %v67, 0.0
  %vm1096 = vcmp.eq.f32.partialorder %v68, 0.0
  %vm1097 = vcmp.eq.f32.partialorder %v69, 0.0
  %vm1098 = vcmp.eq.f32.partialorder %v70, 0.0
  %vm1099 = vcmp.eq.f32.partialorder %v71, 0.0
  %vm1100 = vcmp.eq.f32.partialorder %v72, 0.0
  %vm1101 = vcmp.eq.f32.partialorder %v73, 0.0
  %vm1102 = vcmp.eq.f32.partialorder %v74, 0.0
  %v1103 = vsel %vm1095, 1, 0
  %v1104 = vsel %vm1096, 1, 0
  %v1105 = vsel %vm1097, 1, 0
  %v1106 = vsel %vm1098, 1, 0
  %v1107 = vsel %vm1099, 1, 0
  %v1108 = vsel %vm1100, 1, 0
  %v1109 = vsel %vm1101, 1, 0
  %v1110 = vsel %vm1102, 1, 0
  %v1111 = vlaneseq
  %v1112 = vshrl.u32 %v1111, 7
  %v1113 = vsub.s32 0, %v1112
  %v1114 = vrot.slane %v1103, %v1113
  %v1115 = vlaneseq
  %v1116 = vshrl.u32 %v1115, 7
  %v1117 = vsub.s32 0, %v1116
  %v1118 = vrot.slane %v1104, %v1117
  %v1119 = vlaneseq
  %v1120 = vshrl.u32 %v1119, 7
  %v1121 = vsub.s32 0, %v1120
  %v1122 = vrot.slane %v1105, %v1121
  %v1123 = vlaneseq
  %v1124 = vshrl.u32 %v1123, 7
  %v1125 = vsub.s32 0, %v1124
  %v1126 = vrot.slane %v1106, %v1125
  %v1127 = vlaneseq
  %v1128 = vshrl.u32 %v1127, 7
  %v1129 = vsub.s32 0, %v1128
  %v1130 = vrot.slane %v1107, %v1129
  %v1131 = vlaneseq
  %v1132 = vshrl.u32 %v1131, 7
  %v1133 = vsub.s32 0, %v1132
  %v1134 = vrot.slane %v1108, %v1133
  %v1135 = vlaneseq
  %v1136 = vshrl.u32 %v1135, 7
  %v1137 = vsub.s32 0, %v1136
  %v1138 = vrot.slane %v1109, %v1137
  %v1139 = vlaneseq
  %v1140 = vshrl.u32 %v1139, 7
  %v1141 = vsub.s32 0, %v1140
  %v1142 = vrot.slane %v1110, %v1141
  %vm1143 = vcmp.eq.s32.totalorder %v1114, 1
  %vm1144 = vcmp.eq.s32.totalorder %v1118, 1
  %vm1145 = vcmp.eq.s32.totalorder %v1122, 1
  %vm1146 = vcmp.eq.s32.totalorder %v1126, 1
  %vm1147 = vcmp.eq.s32.totalorder %v1130, 1
  %vm1148 = vcmp.eq.s32.totalorder %v1134, 1
  %vm1149 = vcmp.eq.s32.totalorder %v1138, 1
  %vm1150 = vcmp.eq.s32.totalorder %v1142, 1
  %v1151 = vsel %vm1143, -1e+09, %v567
  %v1152 = vsel %vm1144, -1e+09, %v642
  %v1153 = vsel %vm1145, -1e+09, %v717
  %v1154 = vsel %vm1146, -1e+09, %v792
  %v1155 = vsel %vm1147, -1e+09, %v867
  %v1156 = vsel %vm1148, -1e+09, %v942
  %v1157 = vsel %vm1149, -1e+09, %v1017
  %v1158 = vsel %vm1150, -1e+09, %v1092
  %v1159 = vsel %vm494, %v1151, -inf
  %1160 = vmax.xlane.f32.xlu0 %v1159
  %v1161 = vpop.xlane.xlu0 %1160
  %v1162 = vsel %vm494, %v1152, -inf
  %1163 = vmax.xlane.f32.xlu0 %v1162
  %v1164 = vpop.xlane.xlu0 %1163
  %v1165 = vsel %vm494, %v1153, -inf
  %1166 = vmax.xlane.f32.xlu0 %v1165
  %v1167 = vpop.xlane.xlu0 %1166
  %v1168 = vsel %vm494, %v1154, -inf
  %1169 = vmax.xlane.f32.xlu0 %v1168
  %v1170 = vpop.xlane.xlu0 %1169
  %v1171 = vsel %vm494, %v1155, -inf
  %1172 = vmax.xlane.f32.xlu0 %v1171
  %v1173 = vpop.xlane.xlu0 %1172
  %v1174 = vsel %vm494, %v1156, -inf
  %1175 = vmax.xlane.f32.xlu0 %v1174
  %v1176 = vpop.xlane.xlu0 %1175
  %v1177 = vsel %vm494, %v1157, -inf
  %1178 = vmax.xlane.f32.xlu0 %v1177
  %v1179 = vpop.xlane.xlu0 %1178
  %v1180 = vsel %vm494, %v1158, -inf
  %1181 = vmax.xlane.f32.xlu0 %v1180
  %v1182 = vpop.xlane.xlu0 %1181
  %v1183 = vsub.f32 %v1151, %v1161
  %v1184 = vsub.f32 %v1152, %v1164
  %v1185 = vsub.f32 %v1153, %v1167
  %v1186 = vsub.f32 %v1154, %v1170
  %v1187 = vsub.f32 %v1155, %v1173
  %v1188 = vsub.f32 %v1156, %v1176
  %v1189 = vsub.f32 %v1157, %v1179
  %v1190 = vsub.f32 %v1158, %v1182
  %v1191 = vmul.f32 %v1183, 1.442695
  %v1192 = vpow.pop %v1191
  %v1193 = vmul.f32 %v1184, 1.442695
  %v1194 = vpow.pop %v1193
  %v1195 = vmul.f32 %v1185, 1.442695
  %v1196 = vpow.pop %v1195
  %v1197 = vmul.f32 %v1186, 1.442695
  %v1198 = vpow.pop %v1197
  %v1199 = vmul.f32 %v1187, 1.442695
  %v1200 = vpow.pop %v1199
  %v1201 = vmul.f32 %v1188, 1.442695
  %v1202 = vpow.pop %v1201
  %v1203 = vmul.f32 %v1189, 1.442695
  %v1204 = vpow.pop %v1203
  %v1205 = vmul.f32 %v1190, 1.442695
  %v1206 = vpow.pop %v1205
  %v1207 = vsel %vm494, %v1192, 0.0
  %1208 = vadd.xlane.f32.xlu0 %v1207
  %v1209 = vpop.xlane.xlu0 %1208
  %v1210 = vsel %vm494, %v1194, 0.0
  %1211 = vadd.xlane.f32.xlu0 %v1210
  %v1212 = vpop.xlane.xlu0 %1211
  %v1213 = vsel %vm494, %v1196, 0.0
  %1214 = vadd.xlane.f32.xlu0 %v1213
  %v1215 = vpop.xlane.xlu0 %1214
  %v1216 = vsel %vm494, %v1198, 0.0
  %1217 = vadd.xlane.f32.xlu0 %v1216
  %v1218 = vpop.xlane.xlu0 %1217
  %v1219 = vsel %vm494, %v1200, 0.0
  %1220 = vadd.xlane.f32.xlu0 %v1219
  %v1221 = vpop.xlane.xlu0 %1220
  %v1222 = vsel %vm494, %v1202, 0.0
  %1223 = vadd.xlane.f32.xlu0 %v1222
  %v1224 = vpop.xlane.xlu0 %1223
  %v1225 = vsel %vm494, %v1204, 0.0
  %1226 = vadd.xlane.f32.xlu0 %v1225
  %v1227 = vpop.xlane.xlu0 %1226
  %v1228 = vsel %vm494, %v1206, 0.0
  %1229 = vadd.xlane.f32.xlu0 %v1228
  %v1230 = vpop.xlane.xlu0 %1229
  %v1231 = vrcp.pop %v1209
  %v1232 = vmul.f32 1.0, %v1231
  %v1233 = vrcp.pop %v1212
  %v1234 = vmul.f32 1.0, %v1233
  %v1235 = vrcp.pop %v1215
  %v1236 = vmul.f32 1.0, %v1235
  %v1237 = vrcp.pop %v1218
  %v1238 = vmul.f32 1.0, %v1237
  %v1239 = vrcp.pop %v1221
  %v1240 = vmul.f32 1.0, %v1239
  %v1241 = vrcp.pop %v1224
  %v1242 = vmul.f32 1.0, %v1241
  %v1243 = vrcp.pop %v1227
  %v1244 = vmul.f32 1.0, %v1243
  %v1245 = vrcp.pop %v1230
  %v1246 = vmul.f32 1.0, %v1245
  %v1247 = vmul.f32 %v1192, %v1232
  %v1248 = vmul.f32 %v1194, %v1234
  %v1249 = vmul.f32 %v1196, %v1236
  %v1250 = vmul.f32 %v1198, %v1238
  %v1251 = vmul.f32 %v1200, %v1240
  %v1252 = vmul.f32 %v1202, %v1242
  %v1253 = vmul.f32 %v1204, %v1244
  %v1254 = vmul.f32 %v1206, %v1246
  %v1256 = vsel %vm494, %v1247, 0
  %1258 = vmatprep.subr.mxu0 0.0
  %1259 = vmatpush1.msra.mxu0 %v424
  %1260 = vmatprep.subr.mxu0 0.0
  %1261 = vmatpush1.msra.mxu0 0.0
  %1262 = vmatprep.subr.mxu0 0.0
  %1263 = vmatpush1.msra.mxu0 0.0
  %1264 = vmatprep.subr.mxu0 0.0
  %1265 = vmatpush1.msra.mxu0 0.0
  %1266 = vmatprep.subr.mxu0 0.0
  %1267 = vmatpush1.msra.mxu0 0.0
  %1268 = vmatprep.subr.mxu0 0.0
  %1269 = vmatpush1.msra.mxu0 0.0
  %1270 = vmatprep.subr.mxu0 0.0
  %1271 = vmatpush1.msra.mxu0 0.0
  %1272 = vmatprep.subr.mxu0 0.0
  %1273 = vmatpush1.msra.mxu0 0.0
  %1274 = vmatprep.subr.mxu0 0.0
  %1275 = vmatpush1.msra.mxu0 0.0
  %1276 = vmatprep.subr.mxu0 0.0
  %1277 = vmatpush1.msra.mxu0 0.0
  %1278 = vmatprep.subr.mxu0 0.0
  %1279 = vmatpush1.msra.mxu0 0.0
  %1280 = vmatprep.subr.mxu0 0.0
  %1281 = vmatpush1.msra.mxu0 0.0
  %1282 = vmatprep.subr.mxu0 0.0
  %1283 = vmatpush1.msra.mxu0 0.0
  %1284 = vmatprep.subr.mxu0 0.0
  %1285 = vmatpush1.msra.mxu0 0.0
  %1286 = vmatprep.subr.mxu0 0.0
  %1287 = vmatpush1.msra.mxu0 0.0
  %1288 = vmatprep.subr.mxu0 0.0
  %1289 = vmatpush1.msra.mxu0 0.0
  %1290 = vmatprep.subr.mxu0 0.0
  %1291 = vmatpush1.msra.mxu0 0.0
  %1292 = vmatprep.subr.mxu0 0.0
  %1293 = vmatpush1.msra.mxu0 0.0
  %1294 = vmatprep.subr.mxu0 0.0
  %1295 = vmatpush1.msra.mxu0 0.0
  %1296 = vmatprep.subr.mxu0 0.0
  %1297 = vmatpush1.msra.mxu0 0.0
  %1298 = vmatprep.subr.mxu0 0.0
  %1299 = vmatpush1.msra.mxu0 0.0
  %1300 = vmatprep.subr.mxu0 0.0
  %1301 = vmatpush1.msra.mxu0 0.0
  %1302 = vmatprep.subr.mxu0 0.0
  %1303 = vmatpush1.msra.mxu0 0.0
  %1304 = vmatprep.subr.mxu0 0.0
  %1305 = vmatpush1.msra.mxu0 0.0
  %1306 = vmatprep.subr.mxu0 0.0
  %1307 = vmatpush1.msra.mxu0 0.0
  %1308 = vmatprep.subr.mxu0 0.0
  %1309 = vmatpush1.msra.mxu0 0.0
  %1310 = vmatprep.subr.mxu0 0.0
  %1311 = vmatpush1.msra.mxu0 0.0
  %1312 = vmatprep.subr.mxu0 0.0
  %1313 = vmatpush1.msra.mxu0 0.0
  %1314 = vmatprep.subr.mxu0 0.0
  %1315 = vmatpush1.msra.mxu0 0.0
  %1316 = vmatprep.subr.mxu0 0.0
  %1317 = vmatpush1.msra.mxu0 0.0
  %1318 = vmatprep.subr.mxu0 0.0
  %1319 = vmatpush1.msra.mxu0 0.0
  %1320 = vmatprep.subr.mxu0 0.0
  %1321 = vmatpush1.msra.mxu0 0.0
  %1322 = vmatprep.mubr.f32.mxu0 0.0
  %1323 = vmatmul.mubr.f32.gmra.mrb[0].mxu0 %v1256
  %v1324 = vpop.f32.mrb[0].mxu0
  %v1325 = vadd.f32 0.0, %v1324
  %v1326 = vpop.f32.mrb[0].mxu0
  %1327 = vdwg.mxu0
  %v1329 = vsel %vm494, %v1248, 0
  %1331 = vmatprep.subr.mxu0 0.0
  %1332 = vmatpush1.msra.mxu0 %v476
  %1333 = vmatprep.subr.mxu0 0.0
  %1334 = vmatpush1.msra.mxu0 0.0
  %1335 = vmatprep.subr.mxu0 0.0
  %1336 = vmatpush1.msra.mxu0 0.0
  %1337 = vmatprep.subr.mxu0 0.0
  %1338 = vmatpush1.msra.mxu0 0.0
  %1339 = vmatprep.subr.mxu0 0.0
  %1340 = vmatpush1.msra.mxu0 0.0
  %1341 = vmatprep.subr.mxu0 0.0
  %1342 = vmatpush1.msra.mxu0 0.0
  %1343 = vmatprep.subr.mxu0 0.0
  %1344 = vmatpush1.msra.mxu0 0.0
  %1345 = vmatprep.subr.mxu0 0.0
  %1346 = vmatpush1.msra.mxu0 0.0
  %1347 = vmatprep.subr.mxu0 0.0
  %1348 = vmatpush1.msra.mxu0 0.0
  %1349 = vmatprep.subr.mxu0 0.0
  %1350 = vmatpush1.msra.mxu0 0.0
  %1351 = vmatprep.subr.mxu0 0.0
  %1352 = vmatpush1.msra.mxu0 0.0
  %1353 = vmatprep.subr.mxu0 0.0
  %1354 = vmatpush1.msra.mxu0 0.0
  %1355 = vmatprep.subr.mxu0 0.0
  %1356 = vmatpush1.msra.mxu0 0.0
  %1357 = vmatprep.subr.mxu0 0.0
  %1358 = vmatpush1.msra.mxu0 0.0
  %1359 = vmatprep.subr.mxu0 0.0
  %1360 = vmatpush1.msra.mxu0 0.0
  %1361 = vmatprep.subr.mxu0 0.0
  %1362 = vmatpush1.msra.mxu0 0.0
  %1363 = vmatprep.subr.mxu0 0.0
  %1364 = vmatpush1.msra.mxu0 0.0
  %1365 = vmatprep.subr.mxu0 0.0
  %1366 = vmatpush1.msra.mxu0 0.0
  %1367 = vmatprep.subr.mxu0 0.0
  %1368 = vmatpush1.msra.mxu0 0.0
  %1369 = vmatprep.subr.mxu0 0.0
  %1370 = vmatpush1.msra.mxu0 0.0
  %1371 = vmatprep.subr.mxu0 0.0
  %1372 = vmatpush1.msra.mxu0 0.0
  %1373 = vmatprep.subr.mxu0 0.0
  %1374 = vmatpush1.msra.mxu0 0.0
  %1375 = vmatprep.subr.mxu0 0.0
  %1376 = vmatpush1.msra.mxu0 0.0
  %1377 = vmatprep.subr.mxu0 0.0
  %1378 = vmatpush1.msra.mxu0 0.0
  %1379 = vmatprep.subr.mxu0 0.0
  %1380 = vmatpush1.msra.mxu0 0.0
  %1381 = vmatprep.subr.mxu0 0.0
  %1382 = vmatpush1.msra.mxu0 0.0
  %1383 = vmatprep.subr.mxu0 0.0
  %1384 = vmatpush1.msra.mxu0 0.0
  %1385 = vmatprep.subr.mxu0 0.0
  %1386 = vmatpush1.msra.mxu0 0.0
  %1387 = vmatprep.subr.mxu0 0.0
  %1388 = vmatpush1.msra.mxu0 0.0
  %1389 = vmatprep.subr.mxu0 0.0
  %1390 = vmatpush1.msra.mxu0 0.0
  %1391 = vmatprep.subr.mxu0 0.0
  %1392 = vmatpush1.msra.mxu0 0.0
  %1393 = vmatprep.subr.mxu0 0.0
  %1394 = vmatpush1.msra.mxu0 0.0
  %1395 = vmatprep.mubr.f32.mxu0 0.0
  %1396 = vmatmul.mubr.f32.gmra.mrb[0].mxu0 %v1329
  %v1397 = vpop.f32.mrb[0].mxu0
  %v1398 = vadd.f32 0.0, %v1397
  %v1399 = vpop.f32.mrb[0].mxu0
  %1400 = vdwg.mxu0
  %v1402 = vsel %vm494, %v1249, 0
  %1404 = vmatprep.subr.mxu0 0.0
  %1405 = vmatpush1.msra.mxu0 %v479
  %1406 = vmatprep.subr.mxu0 0.0
  %1407 = vmatpush1.msra.mxu0 0.0
  %1408 = vmatprep.subr.mxu0 0.0
  %1409 = vmatpush1.msra.mxu0 0.0
  %1410 = vmatprep.subr.mxu0 0.0
  %1411 = vmatpush1.msra.mxu0 0.0
  %1412 = vmatprep.subr.mxu0 0.0
  %1413 = vmatpush1.msra.mxu0 0.0
  %1414 = vmatprep.subr.mxu0 0.0
  %1415 = vmatpush1.msra.mxu0 0.0
  %1416 = vmatprep.subr.mxu0 0.0
  %1417 = vmatpush1.msra.mxu0 0.0
  %1418 = vmatprep.subr.mxu0 0.0
  %1419 = vmatpush1.msra.mxu0 0.0
  %1420 = vmatprep.subr.mxu0 0.0
  %1421 = vmatpush1.msra.mxu0 0.0
  %1422 = vmatprep.subr.mxu0 0.0
  %1423 = vmatpush1.msra.mxu0 0.0
  %1424 = vmatprep.subr.mxu0 0.0
  %1425 = vmatpush1.msra.mxu0 0.0
  %1426 = vmatprep.subr.mxu0 0.0
  %1427 = vmatpush1.msra.mxu0 0.0
  %1428 = vmatprep.subr.mxu0 0.0
  %1429 = vmatpush1.msra.mxu0 0.0
  %1430 = vmatprep.subr.mxu0 0.0
  %1431 = vmatpush1.msra.mxu0 0.0
  %1432 = vmatprep.subr.mxu0 0.0
  %1433 = vmatpush1.msra.mxu0 0.0
  %1434 = vmatprep.subr.mxu0 0.0
  %1435 = vmatpush1.msra.mxu0 0.0
  %1436 = vmatprep.subr.mxu0 0.0
  %1437 = vmatpush1.msra.mxu0 0.0
  %1438 = vmatprep.subr.mxu0 0.0
  %1439 = vmatpush1.msra.mxu0 0.0
  %1440 = vmatprep.subr.mxu0 0.0
  %1441 = vmatpush1.msra.mxu0 0.0
  %1442 = vmatprep.subr.mxu0 0.0
  %1443 = vmatpush1.msra.mxu0 0.0
  %1444 = vmatprep.subr.mxu0 0.0
  %1445 = vmatpush1.msra.mxu0 0.0
  %1446 = vmatprep.subr.mxu0 0.0
  %1447 = vmatpush1.msra.mxu0 0.0
  %1448 = vmatprep.subr.mxu0 0.0
  %1449 = vmatpush1.msra.mxu0 0.0
  %1450 = vmatprep.subr.mxu0 0.0
  %1451 = vmatpush1.msra.mxu0 0.0
  %1452 = vmatprep.subr.mxu0 0.0
  %1453 = vmatpush1.msra.mxu0 0.0
  %1454 = vmatprep.subr.mxu0 0.0
  %1455 = vmatpush1.msra.mxu0 0.0
  %1456 = vmatprep.subr.mxu0 0.0
  %1457 = vmatpush1.msra.mxu0 0.0
  %1458 = vmatprep.subr.mxu0 0.0
  %1459 = vmatpush1.msra.mxu0 0.0
  %1460 = vmatprep.subr.mxu0 0.0
  %1461 = vmatpush1.msra.mxu0 0.0
  %1462 = vmatprep.subr.mxu0 0.0
  %1463 = vmatpush1.msra.mxu0 0.0
  %1464 = vmatprep.subr.mxu0 0.0
  %1465 = vmatpush1.msra.mxu0 0.0
  %1466 = vmatprep.subr.mxu0 0.0
  %1467 = vmatpush1.msra.mxu0 0.0
  %1468 = vmatprep.mubr.f32.mxu0 0.0
  %1469 = vmatmul.mubr.f32.gmra.mrb[0].mxu0 %v1402
  %v1470 = vpop.f32.mrb[0].mxu0
  %v1471 = vadd.f32 0.0, %v1470
  %v1472 = vpop.f32.mrb[0].mxu0
  %1473 = vdwg.mxu0
  %v1475 = vsel %vm494, %v1250, 0
  %1477 = vmatprep.subr.mxu0 0.0
  %1478 = vmatpush1.msra.mxu0 %v482
  %1479 = vmatprep.subr.mxu0 0.0
  %1480 = vmatpush1.msra.mxu0 0.0
  %1481 = vmatprep.subr.mxu0 0.0
  %1482 = vmatpush1.msra.mxu0 0.0
  %1483 = vmatprep.subr.mxu0 0.0
  %1484 = vmatpush1.msra.mxu0 0.0
  %1485 = vmatprep.subr.mxu0 0.0
  %1486 = vmatpush1.msra.mxu0 0.0
  %1487 = vmatprep.subr.mxu0 0.0
  %1488 = vmatpush1.msra.mxu0 0.0
  %1489 = vmatprep.subr.mxu0 0.0
  %1490 = vmatpush1.msra.mxu0 0.0
  %1491 = vmatprep.subr.mxu0 0.0
  %1492 = vmatpush1.msra.mxu0 0.0
  %1493 = vmatprep.subr.mxu0 0.0
  %1494 = vmatpush1.msra.mxu0 0.0
  %1495 = vmatprep.subr.mxu0 0.0
  %1496 = vmatpush1.msra.mxu0 0.0
  %1497 = vmatprep.subr.mxu0 0.0
  %1498 = vmatpush1.msra.mxu0 0.0
  %1499 = vmatprep.subr.mxu0 0.0
  %1500 = vmatpush1.msra.mxu0 0.0
  %1501 = vmatprep.subr.mxu0 0.0
  %1502 = vmatpush1.msra.mxu0 0.0
  %1503 = vmatprep.subr.mxu0 0.0
  %1504 = vmatpush1.msra.mxu0 0.0
  %1505 = vmatprep.subr.mxu0 0.0
  %1506 = vmatpush1.msra.mxu0 0.0
  %1507 = vmatprep.subr.mxu0 0.0
  %1508 = vmatpush1.msra.mxu0 0.0
  %1509 = vmatprep.subr.mxu0 0.0
  %1510 = vmatpush1.msra.mxu0 0.0
  %1511 = vmatprep.subr.mxu0 0.0
  %1512 = vmatpush1.msra.mxu0 0.0
  %1513 = vmatprep.subr.mxu0 0.0
  %1514 = vmatpush1.msra.mxu0 0.0
  %1515 = vmatprep.subr.mxu0 0.0
  %1516 = vmatpush1.msra.mxu0 0.0
  %1517 = vmatprep.subr.mxu0 0.0
  %1518 = vmatpush1.msra.mxu0 0.0
  %1519 = vmatprep.subr.mxu0 0.0
  %1520 = vmatpush1.msra.mxu0 0.0
  %1521 = vmatprep.subr.mxu0 0.0
  %1522 = vmatpush1.msra.mxu0 0.0
  %1523 = vmatprep.subr.mxu0 0.0
  %1524 = vmatpush1.msra.mxu0 0.0
  %1525 = vmatprep.subr.mxu0 0.0
  %1526 = vmatpush1.msra.mxu0 0.0
  %1527 = vmatprep.subr.mxu0 0.0
  %1528 = vmatpush1.msra.mxu0 0.0
  %1529 = vmatprep.subr.mxu0 0.0
  %1530 = vmatpush1.msra.mxu0 0.0
  %1531 = vmatprep.subr.mxu0 0.0
  %1532 = vmatpush1.msra.mxu0 0.0
  %1533 = vmatprep.subr.mxu0 0.0
  %1534 = vmatpush1.msra.mxu0 0.0
  %1535 = vmatprep.subr.mxu0 0.0
  %1536 = vmatpush1.msra.mxu0 0.0
  %1537 = vmatprep.subr.mxu0 0.0
  %1538 = vmatpush1.msra.mxu0 0.0
  %1539 = vmatprep.subr.mxu0 0.0
  %1540 = vmatpush1.msra.mxu0 0.0
  %1541 = vmatprep.mubr.f32.mxu0 0.0
  %1542 = vmatmul.mubr.f32.gmra.mrb[0].mxu0 %v1475
  %v1543 = vpop.f32.mrb[0].mxu0
  %v1544 = vadd.f32 0.0, %v1543
  %v1545 = vpop.f32.mrb[0].mxu0
  %1546 = vdwg.mxu0
  %v1548 = vsel %vm494, %v1251, 0
  %1550 = vmatprep.subr.mxu0 0.0
  %1551 = vmatpush1.msra.mxu0 %v429
  %1552 = vmatprep.subr.mxu0 0.0
  %1553 = vmatpush1.msra.mxu0 0.0
  %1554 = vmatprep.subr.mxu0 0.0
  %1555 = vmatpush1.msra.mxu0 0.0
  %1556 = vmatprep.subr.mxu0 0.0
  %1557 = vmatpush1.msra.mxu0 0.0
  %1558 = vmatprep.subr.mxu0 0.0
  %1559 = vmatpush1.msra.mxu0 0.0
  %1560 = vmatprep.subr.mxu0 0.0
  %1561 = vmatpush1.msra.mxu0 0.0
  %1562 = vmatprep.subr.mxu0 0.0
  %1563 = vmatpush1.msra.mxu0 0.0
  %1564 = vmatprep.subr.mxu0 0.0
  %1565 = vmatpush1.msra.mxu0 0.0
  %1566 = vmatprep.subr.mxu0 0.0
  %1567 = vmatpush1.msra.mxu0 0.0
  %1568 = vmatprep.subr.mxu0 0.0
  %1569 = vmatpush1.msra.mxu0 0.0
  %1570 = vmatprep.subr.mxu0 0.0
  %1571 = vmatpush1.msra.mxu0 0.0
  %1572 = vmatprep.subr.mxu0 0.0
  %1573 = vmatpush1.msra.mxu0 0.0
  %1574 = vmatprep.subr.mxu0 0.0
  %1575 = vmatpush1.msra.mxu0 0.0
  %1576 = vmatprep.subr.mxu0 0.0
  %1577 = vmatpush1.msra.mxu0 0.0
  %1578 = vmatprep.subr.mxu0 0.0
  %1579 = vmatpush1.msra.mxu0 0.0
  %1580 = vmatprep.subr.mxu0 0.0
  %1581 = vmatpush1.msra.mxu0 0.0
  %1582 = vmatprep.subr.mxu0 0.0
  %1583 = vmatpush1.msra.mxu0 0.0
  %1584 = vmatprep.subr.mxu0 0.0
  %1585 = vmatpush1.msra.mxu0 0.0
  %1586 = vmatprep.subr.mxu0 0.0
  %1587 = vmatpush1.msra.mxu0 0.0
  %1588 = vmatprep.subr.mxu0 0.0
  %1589 = vmatpush1.msra.mxu0 0.0
  %1590 = vmatprep.subr.mxu0 0.0
  %1591 = vmatpush1.msra.mxu0 0.0
  %1592 = vmatprep.subr.mxu0 0.0
  %1593 = vmatpush1.msra.mxu0 0.0
  %1594 = vmatprep.subr.mxu0 0.0
  %1595 = vmatpush1.msra.mxu0 0.0
  %1596 = vmatprep.subr.mxu0 0.0
  %1597 = vmatpush1.msra.mxu0 0.0
  %1598 = vmatprep.subr.mxu0 0.0
  %1599 = vmatpush1.msra.mxu0 0.0
  %1600 = vmatprep.subr.mxu0 0.0
  %1601 = vmatpush1.msra.mxu0 0.0
  %1602 = vmatprep.subr.mxu0 0.0
  %1603 = vmatpush1.msra.mxu0 0.0
  %1604 = vmatprep.subr.mxu0 0.0
  %1605 = vmatpush1.msra.mxu0 0.0
  %1606 = vmatprep.subr.mxu0 0.0
  %1607 = vmatpush1.msra.mxu0 0.0
  %1608 = vmatprep.subr.mxu0 0.0
  %1609 = vmatpush1.msra.mxu0 0.0
  %1610 = vmatprep.subr.mxu0 0.0
  %1611 = vmatpush1.msra.mxu0 0.0
  %1612 = vmatprep.subr.mxu0 0.0
  %1613 = vmatpush1.msra.mxu0 0.0
  %1614 = vmatprep.mubr.f32.mxu0 0.0
  %1615 = vmatmul.mubr.f32.gmra.mrb[0].mxu0 %v1548
  %v1616 = vpop.f32.mrb[0].mxu0
  %v1617 = vadd.f32 0.0, %v1616
  %v1618 = vpop.f32.mrb[0].mxu0
  %1619 = vdwg.mxu0
  %v1621 = vsel %vm494, %v1252, 0
  %1623 = vmatprep.subr.mxu0 0.0
  %1624 = vmatpush1.msra.mxu0 %v486
  %1625 = vmatprep.subr.mxu0 0.0
  %1626 = vmatpush1.msra.mxu0 0.0
  %1627 = vmatprep.subr.mxu0 0.0
  %1628 = vmatpush1.msra.mxu0 0.0
  %1629 = vmatprep.subr.mxu0 0.0
  %1630 = vmatpush1.msra.mxu0 0.0
  %1631 = vmatprep.subr.mxu0 0.0
  %1632 = vmatpush1.msra.mxu0 0.0
  %1633 = vmatprep.subr.mxu0 0.0
  %1634 = vmatpush1.msra.mxu0 0.0
  %1635 = vmatprep.subr.mxu0 0.0
  %1636 = vmatpush1.msra.mxu0 0.0
  %1637 = vmatprep.subr.mxu0 0.0
  %1638 = vmatpush1.msra.mxu0 0.0
  %1639 = vmatprep.subr.mxu0 0.0
  %1640 = vmatpush1.msra.mxu0 0.0
  %1641 = vmatprep.subr.mxu0 0.0
  %1642 = vmatpush1.msra.mxu0 0.0
  %1643 = vmatprep.subr.mxu0 0.0
  %1644 = vmatpush1.msra.mxu0 0.0
  %1645 = vmatprep.subr.mxu0 0.0
  %1646 = vmatpush1.msra.mxu0 0.0
  %1647 = vmatprep.subr.mxu0 0.0
  %1648 = vmatpush1.msra.mxu0 0.0
  %1649 = vmatprep.subr.mxu0 0.0
  %1650 = vmatpush1.msra.mxu0 0.0
  %1651 = vmatprep.subr.mxu0 0.0
  %1652 = vmatpush1.msra.mxu0 0.0
  %1653 = vmatprep.subr.mxu0 0.0
  %1654 = vmatpush1.msra.mxu0 0.0
  %1655 = vmatprep.subr.mxu0 0.0
  %1656 = vmatpush1.msra.mxu0 0.0
  %1657 = vmatprep.subr.mxu0 0.0
  %1658 = vmatpush1.msra.mxu0 0.0
  %1659 = vmatprep.subr.mxu0 0.0
  %1660 = vmatpush1.msra.mxu0 0.0
  %1661 = vmatprep.subr.mxu0 0.0
  %1662 = vmatpush1.msra.mxu0 0.0
  %1663 = vmatprep.subr.mxu0 0.0
  %1664 = vmatpush1.msra.mxu0 0.0
  %1665 = vmatprep.subr.mxu0 0.0
  %1666 = vmatpush1.msra.mxu0 0.0
  %1667 = vmatprep.subr.mxu0 0.0
  %1668 = vmatpush1.msra.mxu0 0.0
  %1669 = vmatprep.subr.mxu0 0.0
  %1670 = vmatpush1.msra.mxu0 0.0
  %1671 = vmatprep.subr.mxu0 0.0
  %1672 = vmatpush1.msra.mxu0 0.0
  %1673 = vmatprep.subr.mxu0 0.0
  %1674 = vmatpush1.msra.mxu0 0.0
  %1675 = vmatprep.subr.mxu0 0.0
  %1676 = vmatpush1.msra.mxu0 0.0
  %1677 = vmatprep.subr.mxu0 0.0
  %1678 = vmatpush1.msra.mxu0 0.0
  %1679 = vmatprep.subr.mxu0 0.0
  %1680 = vmatpush1.msra.mxu0 0.0
  %1681 = vmatprep.subr.mxu0 0.0
  %1682 = vmatpush1.msra.mxu0 0.0
  %1683 = vmatprep.subr.mxu0 0.0
  %1684 = vmatpush1.msra.mxu0 0.0
  %1685 = vmatprep.subr.mxu0 0.0
  %1686 = vmatpush1.msra.mxu0 0.0
  %1687 = vmatprep.mubr.f32.mxu0 0.0
  %1688 = vmatmul.mubr.f32.gmra.mrb[0].mxu0 %v1621
  %v1689 = vpop.f32.mrb[0].mxu0
  %v1690 = vadd.f32 0.0, %v1689
  %v1691 = vpop.f32.mrb[0].mxu0
  %1692 = vdwg.mxu0
  %v1694 = vsel %vm494, %v1253, 0
  %1696 = vmatprep.subr.mxu0 0.0
  %1697 = vmatpush1.msra.mxu0 %v489
  %1698 = vmatprep.subr.mxu0 0.0
  %1699 = vmatpush1.msra.mxu0 0.0
  %1700 = vmatprep.subr.mxu0 0.0
  %1701 = vmatpush1.msra.mxu0 0.0
  %1702 = vmatprep.subr.mxu0 0.0
  %1703 = vmatpush1.msra.mxu0 0.0
  %1704 = vmatprep.subr.mxu0 0.0
  %1705 = vmatpush1.msra.mxu0 0.0
  %1706 = vmatprep.subr.mxu0 0.0
  %1707 = vmatpush1.msra.mxu0 0.0
  %1708 = vmatprep.subr.mxu0 0.0
  %1709 = vmatpush1.msra.mxu0 0.0
  %1710 = vmatprep.subr.mxu0 0.0
  %1711 = vmatpush1.msra.mxu0 0.0
  %1712 = vmatprep.subr.mxu0 0.0
  %1713 = vmatpush1.msra.mxu0 0.0
  %1714 = vmatprep.subr.mxu0 0.0
  %1715 = vmatpush1.msra.mxu0 0.0
  %1716 = vmatprep.subr.mxu0 0.0
  %1717 = vmatpush1.msra.mxu0 0.0
  %1718 = vmatprep.subr.mxu0 0.0
  %1719 = vmatpush1.msra.mxu0 0.0
  %1720 = vmatprep.subr.mxu0 0.0
  %1721 = vmatpush1.msra.mxu0 0.0
  %1722 = vmatprep.subr.mxu0 0.0
  %1723 = vmatpush1.msra.mxu0 0.0
  %1724 = vmatprep.subr.mxu0 0.0
  %1725 = vmatpush1.msra.mxu0 0.0
  %1726 = vmatprep.subr.mxu0 0.0
  %1727 = vmatpush1.msra.mxu0 0.0
  %1728 = vmatprep.subr.mxu0 0.0
  %1729 = vmatpush1.msra.mxu0 0.0
  %1730 = vmatprep.subr.mxu0 0.0
  %1731 = vmatpush1.msra.mxu0 0.0
  %1732 = vmatprep.subr.mxu0 0.0
  %1733 = vmatpush1.msra.mxu0 0.0
  %1734 = vmatprep.subr.mxu0 0.0
  %1735 = vmatpush1.msra.mxu0 0.0
  %1736 = vmatprep.subr.mxu0 0.0
  %1737 = vmatpush1.msra.mxu0 0.0
  %1738 = vmatprep.subr.mxu0 0.0
  %1739 = vmatpush1.msra.mxu0 0.0
  %1740 = vmatprep.subr.mxu0 0.0
  %1741 = vmatpush1.msra.mxu0 0.0
  %1742 = vmatprep.subr.mxu0 0.0
  %1743 = vmatpush1.msra.mxu0 0.0
  %1744 = vmatprep.subr.mxu0 0.0
  %1745 = vmatpush1.msra.mxu0 0.0
  %1746 = vmatprep.subr.mxu0 0.0
  %1747 = vmatpush1.msra.mxu0 0.0
  %1748 = vmatprep.subr.mxu0 0.0
  %1749 = vmatpush1.msra.mxu0 0.0
  %1750 = vmatprep.subr.mxu0 0.0
  %1751 = vmatpush1.msra.mxu0 0.0
  %1752 = vmatprep.subr.mxu0 0.0
  %1753 = vmatpush1.msra.mxu0 0.0
  %1754 = vmatprep.subr.mxu0 0.0
  %1755 = vmatpush1.msra.mxu0 0.0
  %1756 = vmatprep.subr.mxu0 0.0
  %1757 = vmatpush1.msra.mxu0 0.0
  %1758 = vmatprep.subr.mxu0 0.0
  %1759 = vmatpush1.msra.mxu0 0.0
  %1760 = vmatprep.mubr.f32.mxu0 0.0
  %1761 = vmatmul.mubr.f32.gmra.mrb[0].mxu0 %v1694
  %v1762 = vpop.f32.mrb[0].mxu0
  %v1763 = vadd.f32 0.0, %v1762
  %v1764 = vpop.f32.mrb[0].mxu0
  %1765 = vdwg.mxu0
  %v1767 = vsel %vm494, %v1254, 0
  %1769 = vmatprep.subr.mxu0 0.0
  %1770 = vmatpush1.msra.mxu0 %v492
  %1771 = vmatprep.subr.mxu0 0.0
  %1772 = vmatpush1.msra.mxu0 0.0
  %1773 = vmatprep.subr.mxu0 0.0
  %1774 = vmatpush1.msra.mxu0 0.0
  %1775 = vmatprep.subr.mxu0 0.0
  %1776 = vmatpush1.msra.mxu0 0.0
  %1777 = vmatprep.subr.mxu0 0.0
  %1778 = vmatpush1.msra.mxu0 0.0
  %1779 = vmatprep.subr.mxu0 0.0
  %1780 = vmatpush1.msra.mxu0 0.0
  %1781 = vmatprep.subr.mxu0 0.0
  %1782 = vmatpush1.msra.mxu0 0.0
  %1783 = vmatprep.subr.mxu0 0.0
  %1784 = vmatpush1.msra.mxu0 0.0
  %1785 = vmatprep.subr.mxu0 0.0
  %1786 = vmatpush1.msra.mxu0 0.0
  %1787 = vmatprep.subr.mxu0 0.0
  %1788 = vmatpush1.msra.mxu0 0.0
  %1789 = vmatprep.subr.mxu0 0.0
  %1790 = vmatpush1.msra.mxu0 0.0
  %1791 = vmatprep.subr.mxu0 0.0
  %1792 = vmatpush1.msra.mxu0 0.0
  %1793 = vmatprep.subr.mxu0 0.0
  %1794 = vmatpush1.msra.mxu0 0.0
  %1795 = vmatprep.subr.mxu0 0.0
  %1796 = vmatpush1.msra.mxu0 0.0
  %1797 = vmatprep.subr.mxu0 0.0
  %1798 = vmatpush1.msra.mxu0 0.0
  %1799 = vmatprep.subr.mxu0 0.0
  %1800 = vmatpush1.msra.mxu0 0.0
  %1801 = vmatprep.subr.mxu0 0.0
  %1802 = vmatpush1.msra.mxu0 0.0
  %1803 = vmatprep.subr.mxu0 0.0
  %1804 = vmatpush1.msra.mxu0 0.0
  %1805 = vmatprep.subr.mxu0 0.0
  %1806 = vmatpush1.msra.mxu0 0.0
  %1807 = vmatprep.subr.mxu0 0.0
  %1808 = vmatpush1.msra.mxu0 0.0
  %1809 = vmatprep.subr.mxu0 0.0
  %1810 = vmatpush1.msra.mxu0 0.0
  %1811 = vmatprep.subr.mxu0 0.0
  %1812 = vmatpush1.msra.mxu0 0.0
  %1813 = vmatprep.subr.mxu0 0.0
  %1814 = vmatpush1.msra.mxu0 0.0
  %1815 = vmatprep.subr.mxu0 0.0
  %1816 = vmatpush1.msra.mxu0 0.0
  %1817 = vmatprep.subr.mxu0 0.0
  %1818 = vmatpush1.msra.mxu0 0.0
  %1819 = vmatprep.subr.mxu0 0.0
  %1820 = vmatpush1.msra.mxu0 0.0
  %1821 = vmatprep.subr.mxu0 0.0
  %1822 = vmatpush1.msra.mxu0 0.0
  %1823 = vmatprep.subr.mxu0 0.0
  %1824 = vmatpush1.msra.mxu0 0.0
  %1825 = vmatprep.subr.mxu0 0.0
  %1826 = vmatpush1.msra.mxu0 0.0
  %1827 = vmatprep.subr.mxu0 0.0
  %1828 = vmatpush1.msra.mxu0 0.0
  %1829 = vmatprep.subr.mxu0 0.0
  %1830 = vmatpush1.msra.mxu0 0.0
  %1831 = vmatprep.subr.mxu0 0.0
  %1832 = vmatpush1.msra.mxu0 0.0
  %1833 = vmatprep.mubr.f32.mxu0 0.0
  %1834 = vmatmul.mubr.f32.gmra.mrb[0].mxu0 %v1767
  %v1835 = vpop.f32.mrb[0].mxu0
  %v1836 = vadd.f32 0.0, %v1835
  %v1837 = vpop.f32.mrb[0].mxu0
  %1838 = vdwg.mxu0
  %v1839 = vand.u32 2147483647, %v1325
  %v1840 = vand.u32 2147483647, %v1398
  %v1841 = vand.u32 2147483647, %v1471
  %v1842 = vand.u32 2147483647, %v1544
  %v1843 = vand.u32 2147483647, %v1617
  %v1844 = vand.u32 2147483647, %v1690
  %v1845 = vand.u32 2147483647, %v1763
  %v1846 = vand.u32 2147483647, %v1836
  %v1847 = vsel %vm494, %v1839, -inf
  %1848 = vmax.xlane.f32.xlu0 %v1847
  %v1849 = vpop.xlane.xlu0 %1848
  %v1850 = vsel %vm494, %v1840, -inf
  %1851 = vmax.xlane.f32.xlu0 %v1850
  %v1852 = vpop.xlane.xlu0 %1851
  %v1853 = vsel %vm494, %v1841, -inf
  %1854 = vmax.xlane.f32.xlu0 %v1853
  %v1855 = vpop.xlane.xlu0 %1854
  %v1856 = vsel %vm494, %v1842, -inf
  %1857 = vmax.xlane.f32.xlu0 %v1856
  %v1858 = vpop.xlane.xlu0 %1857
  %v1859 = vsel %vm494, %v1843, -inf
  %1860 = vmax.xlane.f32.xlu0 %v1859
  %v1861 = vpop.xlane.xlu0 %1860
  %v1862 = vsel %vm494, %v1844, -inf
  %1863 = vmax.xlane.f32.xlu0 %v1862
  %v1864 = vpop.xlane.xlu0 %1863
  %v1865 = vsel %vm494, %v1845, -inf
  %1866 = vmax.xlane.f32.xlu0 %v1865
  %v1867 = vpop.xlane.xlu0 %1866
  %v1868 = vsel %vm494, %v1846, -inf
  %1869 = vmax.xlane.f32.xlu0 %v1868
  %v1870 = vpop.xlane.xlu0 %1869
  %v1871 = vrot.slane %v1849, 4
  %v1872 = vmax.f32 %v1849, %v1871
  %v1873 = vrot.slane %v1872, 2
  %v1874 = vmax.f32 %v1872, %v1873
  %v1875 = vrot.slane %v1874, 1
  %v1876 = vmax.f32 %v1874, %v1875
  %v1877 = vrot.slane %v1852, 4
  %v1878 = vmax.f32 %v1852, %v1877
  %v1879 = vrot.slane %v1878, 2
  %v1880 = vmax.f32 %v1878, %v1879
  %v1881 = vrot.slane %v1880, 1
  %v1882 = vmax.f32 %v1880, %v1881
  %v1883 = vrot.slane %v1855, 4
  %v1884 = vmax.f32 %v1855, %v1883
  %v1885 = vrot.slane %v1884, 2
  %v1886 = vmax.f32 %v1884, %v1885
  %v1887 = vrot.slane %v1886, 1
  %v1888 = vmax.f32 %v1886, %v1887
  %v1889 = vrot.slane %v1858, 4
  %v1890 = vmax.f32 %v1858, %v1889
  %v1891 = vrot.slane %v1890, 2
  %v1892 = vmax.f32 %v1890, %v1891
  %v1893 = vrot.slane %v1892, 1
  %v1894 = vmax.f32 %v1892, %v1893
  %v1895 = vrot.slane %v1861, 4
  %v1896 = vmax.f32 %v1861, %v1895
  %v1897 = vrot.slane %v1896, 2
  %v1898 = vmax.f32 %v1896, %v1897
  %v1899 = vrot.slane %v1898, 1
  %v1900 = vmax.f32 %v1898, %v1899
  %v1901 = vrot.slane %v1864, 4
  %v1902 = vmax.f32 %v1864, %v1901
  %v1903 = vrot.slane %v1902, 2
  %v1904 = vmax.f32 %v1902, %v1903
  %v1905 = vrot.slane %v1904, 1
  %v1906 = vmax.f32 %v1904, %v1905
  %v1907 = vrot.slane %v1867, 4
  %v1908 = vmax.f32 %v1867, %v1907
  %v1909 = vrot.slane %v1908, 2
  %v1910 = vmax.f32 %v1908, %v1909
  %v1911 = vrot.slane %v1910, 1
  %v1912 = vmax.f32 %v1910, %v1911
  %v1913 = vrot.slane %v1870, 4
  %v1914 = vmax.f32 %v1870, %v1913
  %v1915 = vrot.slane %v1914, 2
  %v1916 = vmax.f32 %v1914, %v1915
  %v1917 = vrot.slane %v1916, 1
  %v1918 = vmax.f32 %v1916, %v1917
  %v1919 = vmax.f32 %v1876, %v1900
  %v1920 = vmax.f32 %v1882, %v1906
  %v1921 = vmax.f32 %v1888, %v1912
  %v1922 = vmax.f32 %v1894, %v1918
  %v1923 = vmax.f32 %v1919, %v1920
  %v1924 = vmax.f32 %v1921, %v1922
  %v1925 = vmax.f32 %v1923, %v1924
  %v1926 = vmul.f32 %v1925, 2.0
  %v1927 = vmul.f32 %v1926, %v152
  %vm1928 = vcmp.eq.f32.partialorder %v1927, 0.0
  %v1929 = vsel %vm1928, 1e-05, %v1927
  %v1930 = vrcp.pop %v1929
  %v1931 = vmul.f32 1.0, %v1930
  %v1932 = vmul.f32 %v1325, %v1931
  %v1933 = vmul.f32 %v1398, %v1931
  %v1934 = vmul.f32 %v1471, %v1931
  %v1935 = vmul.f32 %v1544, %v1931
  %v1936 = vmul.f32 %v1617, %v1931
  %v1937 = vmul.f32 %v1690, %v1931
  %v1938 = vmul.f32 %v1763, %v1931
  %v1939 = vmul.f32 %v1836, %v1931
  %v1940 = vround.ne.pseudo %v1932
  %v1941 = vround.ne.pseudo %v1933
  %v1942 = vround.ne.pseudo %v1934
  %v1943 = vround.ne.pseudo %v1935
  %v1944 = vround.ne.pseudo %v1936
  %v1945 = vround.ne.pseudo %v1937
  %v1946 = vround.ne.pseudo %v1938
  %v1947 = vround.ne.pseudo %v1939
  %v1948 = vmax.f32 %v1940, -256.0
  %v1949 = vmax.f32 %v1941, -256.0
  %v1950 = vmax.f32 %v1942, -256.0
  %v1951 = vmax.f32 %v1943, -256.0
  %v1952 = vmax.f32 %v1944, -256.0
  %v1953 = vmax.f32 %v1945, -256.0
  %v1954 = vmax.f32 %v1946, -256.0
  %v1955 = vmax.f32 %v1947, -256.0
  %v1956 = vmin.f32 %v1948, 255.0
  %v1957 = vmin.f32 %v1949, 255.0
  %v1958 = vmin.f32 %v1950, 255.0
  %v1959 = vmin.f32 %v1951, 255.0
  %v1960 = vmin.f32 %v1952, 255.0
  %v1961 = vmin.f32 %v1953, 255.0
  %v1962 = vmin.f32 %v1954, 255.0
  %v1963 = vmin.f32 %v1955, 255.0
  %v1964 = vmul.f32 %v1956, %v1929
  %v1965 = vmul.f32 %v1957, %v1929
  %v1966 = vmul.f32 %v1958, %v1929
  %v1967 = vmul.f32 %v1959, %v1929
  %v1968 = vmul.f32 %v1960, %v1929
  %v1969 = vmul.f32 %v1961, %v1929
  %v1970 = vmul.f32 %v1962, %v1929
  %v1971 = vmul.f32 %v1963, %v1929
  %1973 = vrot.lane.b32.xlu0 %v1965, 8
  %v1974 = vpop.permute.xlu0 %1973
  %1977 = vrot.lane.b32.xlu0 %v1966, 16
  %v1978 = vpop.permute.xlu0 %1977
  %1981 = vrot.lane.b32.xlu0 %v1967, 24
  %v1982 = vpop.permute.xlu0 %1981
  %v1984 = vsel %vm494, %v1964, %v1974
  %vm1985 = vcmask 130048
  %v1986 = vsel %vm1985, %v1984, %v1978
  %vm1987 = vcmask 195584
  %v1988 = vsel %vm1987, %v1986, %v1982
  %1990 = vrot.lane.b32.xlu0 %v1969, 8
  %v1991 = vpop.permute.xlu0 %1990
  %1994 = vrot.lane.b32.xlu0 %v1970, 16
  %v1995 = vpop.permute.xlu0 %1994
  %1998 = vrot.lane.b32.xlu0 %v1971, 24
  %v1999 = vpop.permute.xlu0 %1998
  %v2001 = vsel %vm494, %v1968, %v1991
  %v2002 = vsel %vm1985, %v2001, %v1995
  %v2003 = vsel %vm1987, %v2002, %v1999
  %v2004 = vld [vmem:[%s10] sm:$0xff]
  %v2005 = vld [vmem:[%s10 + $0x8] sm:$0xff]
  %v2006 = vld [vmem:[%s10 + $0x10] sm:$0xff]
  %v2007 = vld [vmem:[%s10 + $0x18] sm:$0xff]
  %v2009 = vsel %vm77, %v1988, 0
  %v2012 = vsel %vm77, %v2003, 0
  %2014 = vmatprep.subr.mxu0 0.0
  %2015 = vmatpush1.msra.mxu0 %v2004
  %2016 = vmatprep.subr.mxu0 0.0
  %2017 = vmatpush1.msra.mxu0 %v2005
  %2018 = vmatprep.subr.mxu0 0.0
  %2019 = vmatpush1.msra.mxu0 %v2006
  %2020 = vmatprep.subr.mxu0 0.0
  %2021 = vmatpush1.msra.mxu0 %v2007
  %2022 = vmatprep.subr.mxu0 0.0
  %2023 = vmatpush1.msra.mxu0 0.0
  %2024 = vmatprep.subr.mxu0 0.0
  %2025 = vmatpush1.msra.mxu0 0.0
  %2026 = vmatprep.subr.mxu0 0.0
  %2027 = vmatpush1.msra.mxu0 0.0
  %2028 = vmatprep.subr.mxu0 0.0
  %2029 = vmatpush1.msra.mxu0 0.0
  %2030 = vmatprep.subr.mxu0 0.0
  %2031 = vmatpush1.msra.mxu0 0.0
  %2032 = vmatprep.subr.mxu0 0.0
  %2033 = vmatpush1.msra.mxu0 0.0
  %2034 = vmatprep.subr.mxu0 0.0
  %2035 = vmatpush1.msra.mxu0 0.0
  %2036 = vmatprep.subr.mxu0 0.0
  %2037 = vmatpush1.msra.mxu0 0.0
  %2038 = vmatprep.subr.mxu0 0.0
  %2039 = vmatpush1.msra.mxu0 0.0
  %2040 = vmatprep.subr.mxu0 0.0
  %2041 = vmatpush1.msra.mxu0 0.0
  %2042 = vmatprep.subr.mxu0 0.0
  %2043 = vmatpush1.msra.mxu0 0.0
  %2044 = vmatprep.subr.mxu0 0.0
  %2045 = vmatpush1.msra.mxu0 0.0
  %2046 = vmatprep.subr.mxu0 0.0
  %2047 = vmatpush1.msra.mxu0 0.0
  %2048 = vmatprep.subr.mxu0 0.0
  %2049 = vmatpush1.msra.mxu0 0.0
  %2050 = vmatprep.subr.mxu0 0.0
  %2051 = vmatpush1.msra.mxu0 0.0
  %2052 = vmatprep.subr.mxu0 0.0
  %2053 = vmatpush1.msra.mxu0 0.0
  %2054 = vmatprep.subr.mxu0 0.0
  %2055 = vmatpush1.msra.mxu0 0.0
  %2056 = vmatprep.subr.mxu0 0.0
  %2057 = vmatpush1.msra.mxu0 0.0
  %2058 = vmatprep.subr.mxu0 0.0
  %2059 = vmatpush1.msra.mxu0 0.0
  %2060 = vmatprep.subr.mxu0 0.0
  %2061 = vmatpush1.msra.mxu0 0.0
  %2062 = vmatprep.subr.mxu0 0.0
  %2063 = vmatpush1.msra.mxu0 0.0
  %2064 = vmatprep.subr.mxu0 0.0
  %2065 = vmatpush1.msra.mxu0 0.0
  %2066 = vmatprep.subr.mxu0 0.0
  %2067 = vmatpush1.msra.mxu0 0.0
  %2068 = vmatprep.subr.mxu0 0.0
  %2069 = vmatpush1.msra.mxu0 0.0
  %2070 = vmatprep.subr.mxu0 0.0
  %2071 = vmatpush1.msra.mxu0 0.0
  %2072 = vmatprep.subr.mxu0 0.0
  %2073 = vmatpush1.msra.mxu0 0.0
  %2074 = vmatprep.subr.mxu0 0.0
  %2075 = vmatpush1.msra.mxu0 0.0
  %2076 = vmatprep.subr.mxu0 0.0
  %2077 = vmatpush1.msra.mxu0 0.0
  %2078 = vmatprep.mubr.f32.mxu0 0.0
  %2079 = vmatmul.mubr.f32.gmra.mrb[0].mxu0 %v2009
  %v2080 = vpop.f32.mrb[0].mxu0
  %v2081 = vadd.f32 0.0, %v2080
  %v2082 = vpop.f32.mrb[0].mxu0
  %2083 = vmatprep.mubr.f32.mxu0 0.0
  %2084 = vmatmul.mubr.f32.gmra.mrb[0].mxu0 %v2012
  %v2085 = vpop.f32.mrb[0].mxu0
  %v2086 = vadd.f32 0.0, %v2085
  %v2087 = vpop.f32.mrb[0].mxu0
  %2088 = vdwg.mxu0
  %v2089 = vadd.f32 %v65, %v2081
  %v2090 = vadd.f32 %v66, %v2086
  %v2091 = vld [vmem:[%s11] sm:$0x1]
  %v2093 = vlaneseq
  %v2094 = vshrl.u32 %v2093, 7
  %v2095 = vsub.s32 0, %v2094
  %v2096 = vrot.slane %v2091, %v2095
  %v2098 = vadd.f32 %v2089, %v2096
  %v2099 = vadd.f32 %v2090, %v2096
  %v2100 = vld [vmem:[%s12] sm:$0x1]
  %v2101 = vld [vmem:[%s13] sm:$0x1]
  %v2102 = vsel %vm77, %v2098, 0.0
  %2103 = vadd.xlane.f32.xlu0 %v2102
  %v2104 = vpop.xlane.xlu0 %2103
  %v2105 = vsel %vm77, %v2099, 0.0
  %2106 = vadd.xlane.f32.xlu0 %v2105
  %v2107 = vpop.xlane.xlu0 %2106
  %v2108 = vmul.f32 %v2104, %v84
  %v2109 = vmul.f32 %v2107, %v84
  %v2110 = vsub.f32 %v2098, %v2108
  %v2111 = vsub.f32 %v2099, %v2109
  %v2112 = vmul.f32 %v2110, %v2110
  %v2113 = vmul.f32 %v2111, %v2111
  %v2114 = vsel %vm77, %v2112, 0.0
  %2115 = vadd.xlane.f32.xlu0 %v2114
  %v2116 = vpop.xlane.xlu0 %2115
  %v2117 = vsel %vm77, %v2113, 0.0
  %2118 = vadd.xlane.f32.xlu0 %v2117
  %v2119 = vpop.xlane.xlu0 %2118
  %v2120 = vmul.f32 %v2116, %v97
  %v2121 = vmul.f32 %v2119, %v97
  %v2123 = vlaneseq
  %v2124 = vshrl.u32 %v2123, 7
  %v2125 = vsub.s32 0, %v2124
  %v2126 = vrot.slane %v2100, %v2125
  %v2128 = vmul.f32 %v2126, %v2110
  %v2129 = vmul.f32 %v2126, %v2111
  %v2130 = vrsqrt.pop %v2120
  %v2131 = vmul.f32 %v2120, %v2130
  %vm2132 = vcmp.eq.f32.partialorder %v2120, inf
  %v2133 = vsel %vm2132, %v2120, %v2131
  %vm2134 = vcmp.eq.f32.partialorder %v2120, 0.0
  %v2135 = vand.u32 %v2120, 2147483648
  %v2136 = vsel %vm2134, %v2135, %v2133
  %v2137 = vrsqrt.pop %v2121
  %v2138 = vmul.f32 %v2121, %v2137
  %vm2139 = vcmp.eq.f32.partialorder %v2121, inf
  %v2140 = vsel %vm2139, %v2121, %v2138
  %vm2141 = vcmp.eq.f32.partialorder %v2121, 0.0
  %v2142 = vand.u32 %v2121, 2147483648
  %v2143 = vsel %vm2141, %v2142, %v2140
  %v2144 = vadd.f32 %v2136, 1e-06
  %v2145 = vadd.f32 %v2143, 1e-06
  %v2146 = vrcp.pop %v2144
  %v2147 = vmul.f32 %v2128, %v2146
  %v2148 = vrcp.pop %v2145
  %v2149 = vmul.f32 %v2129, %v2148
  %v2151 = vlaneseq
  %v2152 = vshrl.u32 %v2151, 7
  %v2153 = vsub.s32 0, %v2152
  %v2154 = vrot.slane %v2101, %v2153
  %v2156 = vadd.f32 %v2147, %v2154
  %v2157 = vadd.f32 %v2149, %v2154
  %v2158 = vand.u32 2147483647, %v2156
  %v2159 = vand.u32 2147483647, %v2157
  %v2160 = vsel %vm77, %v2158, -inf
  %2161 = vmax.xlane.f32.xlu0 %v2160
  %v2162 = vpop.xlane.xlu0 %2161
  %v2163 = vsel %vm77, %v2159, -inf
  %2164 = vmax.xlane.f32.xlu0 %v2163
  %v2165 = vpop.xlane.xlu0 %2164
  %v2166 = vmax.f32 %v2162, %v2165
  %v2167 = vrot.slane %v2166, 4
  %v2168 = vmax.f32 %v2166, %v2167
  %v2169 = vrot.slane %v2168, 2
  %v2170 = vmax.f32 %v2168, %v2169
  %v2171 = vrot.slane %v2170, 1
  %v2172 = vmax.f32 %v2170, %v2171
  %v2173 = vmul.f32 %v2172, 2.0
  %v2174 = vmul.f32 %v2173, %v152
  %vm2175 = vcmp.eq.f32.partialorder %v2174, 0.0
  %v2176 = vsel %vm2175, 1e-05, %v2174
  %v2177 = vrcp.pop %v2176
  %v2178 = vmul.f32 1.0, %v2177
  %v2179 = vmul.f32 %v2156, %v2178
  %v2180 = vmul.f32 %v2157, %v2178
  %v2181 = vround.ne.pseudo %v2179
  %v2182 = vround.ne.pseudo %v2180
  %v2183 = vmax.f32 %v2181, -256.0
  %v2184 = vmax.f32 %v2182, -256.0
  %v2185 = vmin.f32 %v2183, 255.0
  %v2186 = vmin.f32 %v2184, 255.0
  %v2187 = vmul.f32 %v2185, %v2176
  %v2188 = vmul.f32 %v2186, %v2176
  %v2189 = vld [vmem:[%s14] sm:$0xff]
  %v2190 = vld [vmem:[%s14 + $0x8] sm:$0xff]
  %v2191 = vld [vmem:[%s14 + $0x10] sm:$0xff]
  %v2192 = vld [vmem:[%s14 + $0x18] sm:$0xff]
  %v2193 = vld [vmem:[%s15] sm:$0x1]
  %v2195 = vlaneseq
  %v2196 = vshrl.u32 %v2195, 7
  %v2197 = vsub.s32 0, %v2196
  %v2198 = vrot.slane %v2193, %v2197
  %v2201 = vsel %vm77, %v2187, 0
  %v2204 = vsel %vm77, %v2188, 0
  %2206 = vmatprep.subr.mxu0 0.0
  %2207 = vmatpush1.msra.mxu0 %v2189
  %2208 = vmatprep.subr.mxu0 0.0
  %2209 = vmatpush1.msra.mxu0 %v2190
  %2210 = vmatprep.subr.mxu0 0.0
  %2211 = vmatpush1.msra.mxu0 %v2191
  %2212 = vmatprep.subr.mxu0 0.0
  %2213 = vmatpush1.msra.mxu0 %v2192
  %2214 = vmatprep.subr.mxu0 0.0
  %2215 = vmatpush1.msra.mxu0 0.0
  %2216 = vmatprep.subr.mxu0 0.0
  %2217 = vmatpush1.msra.mxu0 0.0
  %2218 = vmatprep.subr.mxu0 0.0
  %2219 = vmatpush1.msra.mxu0 0.0
  %2220 = vmatprep.subr.mxu0 0.0
  %2221 = vmatpush1.msra.mxu0 0.0
  %2222 = vmatprep.subr.mxu0 0.0
  %2223 = vmatpush1.msra.mxu0 0.0
  %2224 = vmatprep.subr.mxu0 0.0
  %2225 = vmatpush1.msra.mxu0 0.0
  %2226 = vmatprep.subr.mxu0 0.0
  %2227 = vmatpush1.msra.mxu0 0.0
  %2228 = vmatprep.subr.mxu0 0.0
  %2229 = vmatpush1.msra.mxu0 0.0
  %2230 = vmatprep.subr.mxu0 0.0
  %2231 = vmatpush1.msra.mxu0 0.0
  %2232 = vmatprep.subr.mxu0 0.0
  %2233 = vmatpush1.msra.mxu0 0.0
  %2234 = vmatprep.subr.mxu0 0.0
  %2235 = vmatpush1.msra.mxu0 0.0
  %2236 = vmatprep.subr.mxu0 0.0
  %2237 = vmatpush1.msra.mxu0 0.0
  %2238 = vmatprep.subr.mxu0 0.0
  %2239 = vmatpush1.msra.mxu0 0.0
  %2240 = vmatprep.subr.mxu0 0.0
  %2241 = vmatpush1.msra.mxu0 0.0
  %2242 = vmatprep.subr.mxu0 0.0
  %2243 = vmatpush1.msra.mxu0 0.0
  %2244 = vmatprep.subr.mxu0 0.0
  %2245 = vmatpush1.msra.mxu0 0.0
  %2246 = vmatprep.subr.mxu0 0.0
  %2247 = vmatpush1.msra.mxu0 0.0
  %2248 = vmatprep.subr.mxu0 0.0
  %2249 = vmatpush1.msra.mxu0 0.0
  %2250 = vmatprep.subr.mxu0 0.0
  %2251 = vmatpush1.msra.mxu0 0.0
  %2252 = vmatprep.subr.mxu0 0.0
  %2253 = vmatpush1.msra.mxu0 0.0
  %2254 = vmatprep.subr.mxu0 0.0
  %2255 = vmatpush1.msra.mxu0 0.0
  %2256 = vmatprep.subr.mxu0 0.0
  %2257 = vmatpush1.msra.mxu0 0.0
  %2258 = vmatprep.subr.mxu0 0.0
  %2259 = vmatpush1.msra.mxu0 0.0
  %2260 = vmatprep.subr.mxu0 0.0
  %2261 = vmatpush1.msra.mxu0 0.0
  %2262 = vmatprep.subr.mxu0 0.0
  %2263 = vmatpush1.msra.mxu0 0.0
  %2264 = vmatprep.subr.mxu0 0.0
  %2265 = vmatpush1.msra.mxu0 0.0
  %2266 = vmatprep.subr.mxu0 0.0
  %2267 = vmatpush1.msra.mxu0 0.0
  %2268 = vmatprep.subr.mxu0 0.0
  %2269 = vmatpush1.msra.mxu0 0.0
  %2270 = vmatprep.mubr.f32.mxu0 0.0
  %2271 = vmatmul.mubr.f32.gmra.mrb[0].mxu0 %v2201
  %v2272 = vpop.f32.mrb[0].mxu0
  %v2273 = vadd.f32 %v2198, %v2272
  %v2274 = vpop.f32.mrb[0].mxu0
  %2275 = vmatprep.mubr.f32.mxu0 0.0
  %2276 = vmatmul.mubr.f32.gmra.mrb[0].mxu0 %v2204
  %v2277 = vpop.f32.mrb[0].mxu0
  %v2278 = vadd.f32 %v2198, %v2277
  %v2279 = vpop.f32.mrb[0].mxu0
  %2280 = vdwg.mxu0
  %v2281 = vmul.f32 %v2273, 0.5
  %v2282 = vmul.f32 %v2278, 0.5
  %v2283 = vmul.f32 %v2273, %v2273
  %v2284 = vmul.f32 %v2278, %v2278
  %v2285 = vmul.f32 %v2273, %v2283
  %v2286 = vmul.f32 %v2278, %v2284
  %v2287 = vmul.f32 %v2285, 0.044715
  %v2288 = vmul.f32 %v2286, 0.044715
  %v2289 = vadd.f32 %v2273, %v2287
  %v2290 = vadd.f32 %v2278, %v2288
  %v2291 = vmul.f32 %v2289, 0.7978846
  %v2292 = vmul.f32 %v2290, 0.7978846
  %v2293 = vtanh.pop %v2291
  %v2294 = vtanh.pop %v2292
  %v2295 = vadd.f32 %v2293, 1.0
  %v2296 = vadd.f32 %v2294, 1.0
  %v2297 = vmul.f32 %v2281, %v2295
  %v2298 = vmul.f32 %v2282, %v2296
  %v2299 = vld [vmem:[%s16] sm:$0xff]
  %v2300 = vld [vmem:[%s16 + $0x8] sm:$0xff]
  %v2301 = vld [vmem:[%s16 + $0x10] sm:$0xff]
  %v2302 = vld [vmem:[%s16 + $0x18] sm:$0xff]
  %v2303 = vld [vmem:[%s16 + $0x20] sm:$0xff]
  %v2304 = vld [vmem:[%s16 + $0x28] sm:$0xff]
  %v2305 = vld [vmem:[%s16 + $0x30] sm:$0xff]
  %v2306 = vld [vmem:[%s16 + $0x38] sm:$0xff]
  %v2307 = vld [vmem:[%s16 + $0x40] sm:$0xff]
  %v2308 = vld [vmem:[%s16 + $0x48] sm:$0xff]
  %v2309 = vld [vmem:[%s16 + $0x50] sm:$0xff]
  %v2310 = vld [vmem:[%s16 + $0x58] sm:$0xff]
  %v2311 = vld [vmem:[%s16 + $0x60] sm:$0xff]
  %v2312 = vld [vmem:[%s16 + $0x68] sm:$0xff]
  %v2313 = vld [vmem:[%s16 + $0x70] sm:$0xff]
  %v2314 = vld [vmem:[%s16 + $0x78] sm:$0xff]
  %v2315 = vld [vmem:[%s17] sm:$0x1]
  %v2317 = vlaneseq
  %v2318 = vshrl.u32 %v2317, 7
  %v2319 = vsub.s32 0, %v2318
  %v2320 = vrot.slane %v2315, %v2319
  %2322 = vmatprep.subr.mxu0 0.0
  %2323 = vmatpush1.msra.mxu0 %v2299
  %2324 = vmatprep.subr.mxu0 0.0
  %2325 = vmatpush1.msra.mxu0 %v2300
  %2326 = vmatprep.subr.mxu0 0.0
  %2327 = vmatpush1.msra.mxu0 %v2301
  %2328 = vmatprep.subr.mxu0 0.0
  %2329 = vmatpush1.msra.mxu0 %v2302
  %2330 = vmatprep.subr.mxu0 0.0
  %2331 = vmatpush1.msra.mxu0 %v2303
  %2332 = vmatprep.subr.mxu0 0.0
  %2333 = vmatpush1.msra.mxu0 %v2304
  %2334 = vmatprep.subr.mxu0 0.0
  %2335 = vmatpush1.msra.mxu0 %v2305
  %2336 = vmatprep.subr.mxu0 0.0
  %2337 = vmatpush1.msra.mxu0 %v2306
  %2338 = vmatprep.subr.mxu0 0.0
  %2339 = vmatpush1.msra.mxu0 %v2307
  %2340 = vmatprep.subr.mxu0 0.0
  %2341 = vmatpush1.msra.mxu0 %v2308
  %2342 = vmatprep.subr.mxu0 0.0
  %2343 = vmatpush1.msra.mxu0 %v2309
  %2344 = vmatprep.subr.mxu0 0.0
  %2345 = vmatpush1.msra.mxu0 %v2310
  %2346 = vmatprep.subr.mxu0 0.0
  %2347 = vmatpush1.msra.mxu0 %v2311
  %2348 = vmatprep.subr.mxu0 0.0
  %2349 = vmatpush1.msra.mxu0 %v2312
  %2350 = vmatprep.subr.mxu0 0.0
  %2351 = vmatpush1.msra.mxu0 %v2313
  %2352 = vmatprep.subr.mxu0 0.0
  %2353 = vmatpush1.msra.mxu0 %v2314
  %2354 = vmatprep.subr.mxu0 0.0
  %2355 = vmatpush1.msra.mxu0 0.0
  %2356 = vmatprep.subr.mxu0 0.0
  %2357 = vmatpush1.msra.mxu0 0.0
  %2358 = vmatprep.subr.mxu0 0.0
  %2359 = vmatpush1.msra.mxu0 0.0
  %2360 = vmatprep.subr.mxu0 0.0
  %2361 = vmatpush1.msra.mxu0 0.0
  %2362 = vmatprep.subr.mxu0 0.0
  %2363 = vmatpush1.msra.mxu0 0.0
  %2364 = vmatprep.subr.mxu0 0.0
  %2365 = vmatpush1.msra.mxu0 0.0
  %2366 = vmatprep.subr.mxu0 0.0
  %2367 = vmatpush1.msra.mxu0 0.0
  %2368 = vmatprep.subr.mxu0 0.0
  %2369 = vmatpush1.msra.mxu0 0.0
  %2370 = vmatprep.subr.mxu0 0.0
  %2371 = vmatpush1.msra.mxu0 0.0
  %2372 = vmatprep.subr.mxu0 0.0
  %2373 = vmatpush1.msra.mxu0 0.0
  %2374 = vmatprep.subr.mxu0 0.0
  %2375 = vmatpush1.msra.mxu0 0.0
  %2376 = vmatprep.subr.mxu0 0.0
  %2377 = vmatpush1.msra.mxu0 0.0
  %2378 = vmatprep.subr.mxu0 0.0
  %2379 = vmatpush1.msra.mxu0 0.0
  %2380 = vmatprep.subr.mxu0 0.0
  %2381 = vmatpush1.msra.mxu0 0.0
  %2382 = vmatprep.subr.mxu0 0.0
  %2383 = vmatpush1.msra.mxu0 0.0
  %2384 = vmatprep.subr.mxu0 0.0
  %2385 = vmatpush1.msra.mxu0 0.0
  %2386 = vmatprep.mubr.f32.mxu0 0.0
  %2387 = vmatmul.mubr.f32.gmra.mrb[0].mxu0 %v2297
  %v2388 = vpop.f32.mrb[0].mxu0
  %v2389 = vadd.f32 %v2320, %v2388
  %v2390 = vpop.f32.mrb[0].mxu0
  %2391 = vmatprep.mubr.f32.mxu0 0.0
  %2392 = vmatmul.mubr.f32.gmra.mrb[0].mxu0 %v2298
  %v2393 = vpop.f32.mrb[0].mxu0
  %v2394 = vadd.f32 %v2320, %v2393
  %v2395 = vpop.f32.mrb[0].mxu0
  %2396 = vdwg.mxu0
  %v2397 = vand.u32 2147483647, %v2389
  %v2398 = vand.u32 2147483647, %v2394
  %v2399 = vsel %vm77, %v2397, -inf
  %2400 = vmax.xlane.f32.xlu0 %v2399
  %v2401 = vpop.xlane.xlu0 %2400
  %v2402 = vsel %vm77, %v2398, -inf
  %2403 = vmax.xlane.f32.xlu0 %v2402
  %v2404 = vpop.xlane.xlu0 %2403
  %v2405 = vmax.f32 %v2401, %v2404
  %v2406 = vrot.slane %v2405, 4
  %v2407 = vmax.f32 %v2405, %v2406
  %v2408 = vrot.slane %v2407, 2
  %v2409 = vmax.f32 %v2407, %v2408
  %v2410 = vrot.slane %v2409, 1
  %v2411 = vmax.f32 %v2409, %v2410
  %v2412 = vmul.f32 %v2411, 2.0
  %v2413 = vmul.f32 %v2412, %v152
  %vm2414 = vcmp.eq.f32.partialorder %v2413, 0.0
  %v2415 = vsel %vm2414, 1e-05, %v2413
  %v2416 = vrcp.pop %v2415
  %v2417 = vmul.f32 1.0, %v2416
  %v2418 = vmul.f32 %v2389, %v2417
  %v2419 = vmul.f32 %v2394, %v2417
  %v2420 = vround.ne.pseudo %v2418
  %v2421 = vround.ne.pseudo %v2419
  %v2422 = vmax.f32 %v2420, -256.0
  %v2423 = vmax.f32 %v2421, -256.0
  %v2424 = vmin.f32 %v2422, 255.0
  %v2425 = vmin.f32 %v2423, 255.0
  %v2426 = vmul.f32 %v2424, %v2415
  %v2427 = vmul.f32 %v2425, %v2415
  %v2428 = vadd.f32 %v2098, %v2426
  %v2429 = vadd.f32 %v2099, %v2427
  %s2430 = scalar_lea.vmem %s2, 1
  %v2431 = vld [vmem:[%s2430] sm:$0x1]
  %s2432 = scalar_lea.vmem %s3, 1
  %v2433 = vld [vmem:[%s2432] sm:$0x1]
  %v2434 = vsel %vm77, %v2428, 0.0
  %2435 = vadd.xlane.f32.xlu0 %v2434
  %v2436 = vpop.xlane.xlu0 %2435
  %v2437 = vsel %vm77, %v2429, 0.0
  %2438 = vadd.xlane.f32.xlu0 %v2437
  %v2439 = vpop.xlane.xlu0 %2438
  %v2440 = vmul.f32 %v2436, %v84
  %v2441 = vmul.f32 %v2439, %v84
  %v2442 = vsub.f32 %v2428, %v2440
  %v2443 = vsub.f32 %v2429, %v2441
  %v2444 = vmul.f32 %v2442, %v2442
  %v2445 = vmul.f32 %v2443, %v2443
  %v2446 = vsel %vm77, %v2444, 0.0
  %2447 = vadd.xlane.f32.xlu0 %v2446
  %v2448 = vpop.xlane.xlu0 %2447
  %v2449 = vsel %vm77, %v2445, 0.0
  %2450 = vadd.xlane.f32.xlu0 %v2449
  %v2451 = vpop.xlane.xlu0 %2450
  %v2452 = vmul.f32 %v2448, %v97
  %v2453 = vmul.f32 %v2451, %v97
  %v2455 = vlaneseq
  %v2456 = vshrl.u32 %v2455, 7
  %v2457 = vsub.s32 0, %v2456
  %v2458 = vrot.slane %v2431, %v2457
  %v2460 = vmul.f32 %v2458, %v2442
  %v2461 = vmul.f32 %v2458, %v2443
  %v2462 = vrsqrt.pop %v2452
  %v2463 = vmul.f32 %v2452, %v2462
  %vm2464 = vcmp.eq.f32.partialorder %v2452, inf
  %v2465 = vsel %vm2464, %v2452, %v2463
  %vm2466 = vcmp.eq.f32.partialorder %v2452, 0.0
  %v2467 = vand.u32 %v2452, 2147483648
  %v2468 = vsel %vm2466, %v2467, %v2465
  %v2469 = vrsqrt.pop %v2453
  %v2470 = vmul.f32 %v2453, %v2469
  %vm2471 = vcmp.eq.f32.partialorder %v2453, inf
  %v2472 = vsel %vm2471, %v2453, %v2470
  %vm2473 = vcmp.eq.f32.partialorder %v2453, 0.0
  %v2474 = vand.u32 %v2453, 2147483648
  %v2475 = vsel %vm2473, %v2474, %v2472
  %v2476 = vadd.f32 %v2468, 1e-06
  %v2477 = vadd.f32 %v2475, 1e-06
  %v2478 = vrcp.pop %v2476
  %v2479 = vmul.f32 %v2460, %v2478
  %v2480 = vrcp.pop %v2477
  %v2481 = vmul.f32 %v2461, %v2480
  %v2483 = vlaneseq
  %v2484 = vshrl.u32 %v2483, 7
  %v2485 = vsub.s32 0, %v2484
  %v2486 = vrot.slane %v2433, %v2485
  %v2488 = vadd.f32 %v2479, %v2486
  %v2489 = vadd.f32 %v2481, %v2486
  %v2490 = vand.u32 2147483647, %v2488
  %v2491 = vand.u32 2147483647, %v2489
  %v2492 = vsel %vm77, %v2490, -inf
  %2493 = vmax.xlane.f32.xlu0 %v2492
  %v2494 = vpop.xlane.xlu0 %2493
  %v2495 = vsel %vm77, %v2491, -inf
  %2496 = vmax.xlane.f32.xlu0 %v2495
  %v2497 = vpop.xlane.xlu0 %2496
  %v2498 = vmax.f32 %v2494, %v2497
  %v2499 = vrot.slane %v2498, 4
  %v2500 = vmax.f32 %v2498, %v2499
  %v2501 = vrot.slane %v2500, 2
  %v2502 = vmax.f32 %v2500, %v2501
  %v2503 = vrot.slane %v2502, 1
  %v2504 = vmax.f32 %v2502, %v2503
  %v2505 = vmul.f32 %v2504, 2.0
  %v2506 = vmul.f32 %v2505, %v152
  %vm2507 = vcmp.eq.f32.partialorder %v2506, 0.0
  %v2508 = vsel %vm2507, 1e-05, %v2506
  %v2509 = vrcp.pop %v2508
  %v2510 = vmul.f32 1.0, %v2509
  %v2511 = vmul.f32 %v2488, %v2510
  %v2512 = vmul.f32 %v2489, %v2510
  %v2513 = vround.ne.pseudo %v2511
  %v2514 = vround.ne.pseudo %v2512
  %v2515 = vmax.f32 %v2513, -256.0
  %v2516 = vmax.f32 %v2514, -256.0
  %v2517 = vmin.f32 %v2515, 255.0
  %v2518 = vmin.f32 %v2516, 255.0
  %v2519 = vmul.f32 %v2517, %v2508
  %v2520 = vmul.f32 %v2518, %v2508
  %s2521 = scalar_lea.vmem %s4, 32
  %v2522 = vld [vmem:[%s2521] sm:$0xff]
  %v2523 = vld [vmem:[%s2521 + $0x8] sm:$0xff]
  %v2524 = vld [vmem:[%s2521 + $0x10] sm:$0xff]
  %v2525 = vld [vmem:[%s2521 + $0x18] sm:$0xff]
  %s2526 = scalar_lea.vmem %s5, 1
  %v2527 = vld [vmem:[%s2526] sm:$0x1]
  %v2529 = vlaneseq
  %v2530 = vshrl.u32 %v2529, 7
  %v2531 = vsub.s32 0, %v2530
  %v2532 = vrot.slane %v2527, %v2531
  %v2535 = vsel %vm77, %v2519, 0
  %v2538 = vsel %vm77, %v2520, 0
  %2540 = vmatprep.subr.mxu0 0.0
  %2541 = vmatpush1.msra.mxu0 %v2522
  %2542 = vmatprep.subr.mxu0 0.0
  %2543 = vmatpush1.msra.mxu0 %v2523
  %2544 = vmatprep.subr.mxu0 0.0
  %2545 = vmatpush1.msra.mxu0 %v2524
  %2546 = vmatprep.subr.mxu0 0.0
  %2547 = vmatpush1.msra.mxu0 %v2525
  %2548 = vmatprep.subr.mxu0 0.0
  %2549 = vmatpush1.msra.mxu0 0.0
  %2550 = vmatprep.subr.mxu0 0.0
  %2551 = vmatpush1.msra.mxu0 0.0
  %2552 = vmatprep.subr.mxu0 0.0
  %2553 = vmatpush1.msra.mxu0 0.0
  %2554 = vmatprep.subr.mxu0 0.0
  %2555 = vmatpush1.msra.mxu0 0.0
  %2556 = vmatprep.subr.mxu0 0.0
  %2557 = vmatpush1.msra.mxu0 0.0
  %2558 = vmatprep.subr.mxu0 0.0
  %2559 = vmatpush1.msra.mxu0 0.0
  %2560 = vmatprep.subr.mxu0 0.0
  %2561 = vmatpush1.msra.mxu0 0.0
  %2562 = vmatprep.subr.mxu0 0.0
  %2563 = vmatpush1.msra.mxu0 0.0
  %2564 = vmatprep.subr.mxu0 0.0
  %2565 = vmatpush1.msra.mxu0 0.0
  %2566 = vmatprep.subr.mxu0 0.0
  %2567 = vmatpush1.msra.mxu0 0.0
  %2568 = vmatprep.subr.mxu0 0.0
  %2569 = vmatpush1.msra.mxu0 0.0
  %2570 = vmatprep.subr.mxu0 0.0
  %2571 = vmatpush1.msra.mxu0 0.0
  %2572 = vmatprep.subr.mxu0 0.0
  %2573 = vmatpush1.msra.mxu0 0.0
  %2574 = vmatprep.subr.mxu0 0.0
  %2575 = vmatpush1.msra.mxu0 0.0
  %2576 = vmatprep.subr.mxu0 0.0
  %2577 = vmatpush1.msra.mxu0 0.0
  %2578 = vmatprep.subr.mxu0 0.0
  %2579 = vmatpush1.msra.mxu0 0.0
  %2580 = vmatprep.subr.mxu0 0.0
  %2581 = vmatpush1.msra.mxu0 0.0
  %2582 = vmatprep.subr.mxu0 0.0
  %2583 = vmatpush1.msra.mxu0 0.0
  %2584 = vmatprep.subr.mxu0 0.0
  %2585 = vmatpush1.msra.mxu0 0.0
  %2586 = vmatprep.subr.mxu0 0.0
  %2587 = vmatpush1.msra.mxu0 0.0
  %2588 = vmatprep.subr.mxu0 0.0
  %2589 = vmatpush1.msra.mxu0 0.0
  %2590 = vmatprep.subr.mxu0 0.0
  %2591 = vmatpush1.msra.mxu0 0.0
  %2592 = vmatprep.subr.mxu0 0.0
  %2593 = vmatpush1.msra.mxu0 0.0
  %2594 = vmatprep.subr.mxu0 0.0
  %2595 = vmatpush1.msra.mxu0 0.0
  %2596 = vmatprep.subr.mxu0 0.0
  %2597 = vmatpush1.msra.mxu0 0.0
  %2598 = vmatprep.subr.mxu0 0.0
  %2599 = vmatpush1.msra.mxu0 0.0
  %2600 = vmatprep.subr.mxu0 0.0
  %2601 = vmatpush1.msra.mxu0 0.0
  %2602 = vmatprep.subr.mxu0 0.0
  %2603 = vmatpush1.msra.mxu0 0.0
  %2604 = vmatprep.mubr.f32.mxu0 0.0
  %2605 = vmatmul.mubr.f32.gmra.mrb[0].mxu0 %v2535
  %v2606 = vpop.f32.mrb[0].mxu0
  %v2607 = vadd.f32 %v2532, %v2606
  %v2608 = vpop.f32.mrb[0].mxu0
  %2609 = vmatprep.mubr.f32.mxu0 0.0
  %2610 = vmatmul.mubr.f32.gmra.mrb[0].mxu0 %v2538
  %v2611 = vpop.f32.mrb[0].mxu0
  %v2612 = vadd.f32 %v2532, %v2611
  %v2613 = vpop.f32.mrb[0].mxu0
  %2614 = vdwg.mxu0
  %s2615 = scalar_lea.vmem %s6, 32
  %v2616 = vld [vmem:[%s2615] sm:$0xff]
  %v2617 = vld [vmem:[%s2615 + $0x8] sm:$0xff]
  %v2618 = vld [vmem:[%s2615 + $0x10] sm:$0xff]
  %v2619 = vld [vmem:[%s2615 + $0x18] sm:$0xff]
  %s2620 = scalar_lea.vmem %s7, 1
  %v2621 = vld [vmem:[%s2620] sm:$0x1]
  %v2623 = vlaneseq
  %v2624 = vshrl.u32 %v2623, 7
  %v2625 = vsub.s32 0, %v2624
  %v2626 = vrot.slane %v2621, %v2625
  %2628 = vmatprep.subr.mxu0 0.0
  %2629 = vmatpush1.msra.mxu0 %v2616
  %2630 = vmatprep.subr.mxu0 0.0
  %2631 = vmatpush1.msra.mxu0 %v2617
  %2632 = vmatprep.subr.mxu0 0.0
  %2633 = vmatpush1.msra.mxu0 %v2618
  %2634 = vmatprep.subr.mxu0 0.0
  %2635 = vmatpush1.msra.mxu0 %v2619
  %2636 = vmatprep.subr.mxu0 0.0
  %2637 = vmatpush1.msra.mxu0 0.0
  %2638 = vmatprep.subr.mxu0 0.0
  %2639 = vmatpush1.msra.mxu0 0.0
  %2640 = vmatprep.subr.mxu0 0.0
  %2641 = vmatpush1.msra.mxu0 0.0
  %2642 = vmatprep.subr.mxu0 0.0
  %2643 = vmatpush1.msra.mxu0 0.0
  %2644 = vmatprep.subr.mxu0 0.0
  %2645 = vmatpush1.msra.mxu0 0.0
  %2646 = vmatprep.subr.mxu0 0.0
  %2647 = vmatpush1.msra.mxu0 0.0
  %2648 = vmatprep.subr.mxu0 0.0
  %2649 = vmatpush1.msra.mxu0 0.0
  %2650 = vmatprep.subr.mxu0 0.0
  %2651 = vmatpush1.msra.mxu0 0.0
  %2652 = vmatprep.subr.mxu0 0.0
  %2653 = vmatpush1.msra.mxu0 0.0
  %2654 = vmatprep.subr.mxu0 0.0
  %2655 = vmatpush1.msra.mxu0 0.0
  %2656 = vmatprep.subr.mxu0 0.0
  %2657 = vmatpush1.msra.mxu0 0.0
  %2658 = vmatprep.subr.mxu0 0.0
  %2659 = vmatpush1.msra.mxu0 0.0
  %2660 = vmatprep.subr.mxu0 0.0
  %2661 = vmatpush1.msra.mxu0 0.0
  %2662 = vmatprep.subr.mxu0 0.0
  %2663 = vmatpush1.msra.mxu0 0.0
  %2664 = vmatprep.subr.mxu0 0.0
  %2665 = vmatpush1.msra.mxu0 0.0
  %2666 = vmatprep.subr.mxu0 0.0
  %2667 = vmatpush1.msra.mxu0 0.0
  %2668 = vmatprep.subr.mxu0 0.0
  %2669 = vmatpush1.msra.mxu0 0.0
  %2670 = vmatprep.subr.mxu0 0.0
  %2671 = vmatpush1.msra.mxu0 0.0
  %2672 = vmatprep.subr.mxu0 0.0
  %2673 = vmatpush1.msra.mxu0 0.0
  %2674 = vmatprep.subr.mxu0 0.0
  %2675 = vmatpush1.msra.mxu0 0.0
  %2676 = vmatprep.subr.mxu0 0.0
  %2677 = vmatpush1.msra.mxu0 0.0
  %2678 = vmatprep.subr.mxu0 0.0
  %2679 = vmatpush1.msra.mxu0 0.0
  %2680 = vmatprep.subr.mxu0 0.0
  %2681 = vmatpush1.msra.mxu0 0.0
  %2682 = vmatprep.subr.mxu0 0.0
  %2683 = vmatpush1.msra.mxu0 0.0
  %2684 = vmatprep.subr.mxu0 0.0
  %2685 = vmatpush1.msra.mxu0 0.0
  %2686 = vmatprep.subr.mxu0 0.0
  %2687 = vmatpush1.msra.mxu0 0.0
  %2688 = vmatprep.subr.mxu0 0.0
  %2689 = vmatpush1.msra.mxu0 0.0
  %2690 = vmatprep.subr.mxu0 0.0
  %2691 = vmatpush1.msra.mxu0 0.0
  %2692 = vmatprep.mubr.f32.mxu0 0.0
  %2693 = vmatmul.mubr.f32.gmra.mrb[0].mxu0 %v2535
  %v2694 = vpop.f32.mrb[0].mxu0
  %v2695 = vadd.f32 %v2626, %v2694
  %v2696 = vpop.f32.mrb[0].mxu0
  %2697 = vmatprep.mubr.f32.mxu0 0.0
  %2698 = vmatmul.mubr.f32.gmra.mrb[0].mxu0 %v2538
  %v2699 = vpop.f32.mrb[0].mxu0
  %v2700 = vadd.f32 %v2626, %v2699
  %v2701 = vpop.f32.mrb[0].mxu0
  %2702 = vdwg.mxu0
  %s2703 = scalar_lea.vmem %s8, 32
  %v2704 = vld [vmem:[%s2703] sm:$0xff]
  %v2705 = vld [vmem:[%s2703 + $0x8] sm:$0xff]
  %v2706 = vld [vmem:[%s2703 + $0x10] sm:$0xff]
  %v2707 = vld [vmem:[%s2703 + $0x18] sm:$0xff]
  %s2708 = scalar_lea.vmem %s9, 1
  %v2709 = vld [vmem:[%s2708] sm:$0x1]
  %v2711 = vlaneseq
  %v2712 = vshrl.u32 %v2711, 7
  %v2713 = vsub.s32 0, %v2712
  %v2714 = vrot.slane %v2709, %v2713
  %2716 = vmatprep.subr.mxu0 0.0
  %2717 = vmatpush1.msra.mxu0 %v2704
  %2718 = vmatprep.subr.mxu0 0.0
  %2719 = vmatpush1.msra.mxu0 %v2705
  %2720 = vmatprep.subr.mxu0 0.0
  %2721 = vmatpush1.msra.mxu0 %v2706
  %2722 = vmatprep.subr.mxu0 0.0
  %2723 = vmatpush1.msra.mxu0 %v2707
  %2724 = vmatprep.subr.mxu0 0.0
  %2725 = vmatpush1.msra.mxu0 0.0
  %2726 = vmatprep.subr.mxu0 0.0
  %2727 = vmatpush1.msra.mxu0 0.0
  %2728 = vmatprep.subr.mxu0 0.0
  %2729 = vmatpush1.msra.mxu0 0.0
  %2730 = vmatprep.subr.mxu0 0.0
  %2731 = vmatpush1.msra.mxu0 0.0
  %2732 = vmatprep.subr.mxu0 0.0
  %2733 = vmatpush1.msra.mxu0 0.0
  %2734 = vmatprep.subr.mxu0 0.0
  %2735 = vmatpush1.msra.mxu0 0.0
  %2736 = vmatprep.subr.mxu0 0.0
  %2737 = vmatpush1.msra.mxu0 0.0
  %2738 = vmatprep.subr.mxu0 0.0
  %2739 = vmatpush1.msra.mxu0 0.0
  %2740 = vmatprep.subr.mxu0 0.0
  %2741 = vmatpush1.msra.mxu0 0.0
  %2742 = vmatprep.subr.mxu0 0.0
  %2743 = vmatpush1.msra.mxu0 0.0
  %2744 = vmatprep.subr.mxu0 0.0
  %2745 = vmatpush1.msra.mxu0 0.0
  %2746 = vmatprep.subr.mxu0 0.0
  %2747 = vmatpush1.msra.mxu0 0.0
  %2748 = vmatprep.subr.mxu0 0.0
  %2749 = vmatpush1.msra.mxu0 0.0
  %2750 = vmatprep.subr.mxu0 0.0
  %2751 = vmatpush1.msra.mxu0 0.0
  %2752 = vmatprep.subr.mxu0 0.0
  %2753 = vmatpush1.msra.mxu0 0.0
  %2754 = vmatprep.subr.mxu0 0.0
  %2755 = vmatpush1.msra.mxu0 0.0
  %2756 = vmatprep.subr.mxu0 0.0
  %2757 = vmatpush1.msra.mxu0 0.0
  %2758 = vmatprep.subr.mxu0 0.0
  %2759 = vmatpush1.msra.mxu0 0.0
  %2760 = vmatprep.subr.mxu0 0.0
  %2761 = vmatpush1.msra.mxu0 0.0
  %2762 = vmatprep.subr.mxu0 0.0
  %2763 = vmatpush1.msra.mxu0 0.0
  %2764 = vmatprep.subr.mxu0 0.0
  %2765 = vmatpush1.msra.mxu0 0.0
  %2766 = vmatprep.subr.mxu0 0.0
  %2767 = vmatpush1.msra.mxu0 0.0
  %2768 = vmatprep.subr.mxu0 0.0
  %2769 = vmatpush1.msra.mxu0 0.0
  %2770 = vmatprep.subr.mxu0 0.0
  %2771 = vmatpush1.msra.mxu0 0.0
  %2772 = vmatprep.subr.mxu0 0.0
  %2773 = vmatpush1.msra.mxu0 0.0
  %2774 = vmatprep.subr.mxu0 0.0
  %2775 = vmatpush1.msra.mxu0 0.0
  %2776 = vmatprep.subr.mxu0 0.0
  %2777 = vmatpush1.msra.mxu0 0.0
  %2778 = vmatprep.subr.mxu0 0.0
  %2779 = vmatpush1.msra.mxu0 0.0
  %2780 = vmatprep.mubr.f32.mxu0 0.0
  %2781 = vmatmul.mubr.f32.gmra.mrb[0].mxu0 %v2535
  %v2782 = vpop.f32.mrb[0].mxu0
  %v2783 = vadd.f32 %v2714, %v2782
  %v2784 = vpop.f32.mrb[0].mxu0
  %2785 = vmatprep.mubr.f32.mxu0 0.0
  %2786 = vmatmul.mubr.f32.gmra.mrb[0].mxu0 %v2538
  %v2787 = vpop.f32.mrb[0].mxu0
  %v2788 = vadd.f32 %v2714, %v2787
  %v2789 = vpop.f32.mrb[0].mxu0
  %2790 = vdwg.mxu0
  %2792 = vrot.lane.b32.xlu0 %v2607, 120
  %v2793 = vpop.permute.xlu0 %2792
  %2795 = vrot.lane.b32.xlu0 %v2607, 112
  %v2796 = vpop.permute.xlu0 %2795
  %2798 = vrot.lane.b32.xlu0 %v2607, 104
  %v2799 = vpop.permute.xlu0 %2798
  %2802 = vrot.lane.b32.xlu0 %v2612, 120
  %v2803 = vpop.permute.xlu0 %2802
  %2805 = vrot.lane.b32.xlu0 %v2612, 112
  %v2806 = vpop.permute.xlu0 %2805
  %2808 = vrot.lane.b32.xlu0 %v2612, 104
  %v2809 = vpop.permute.xlu0 %2808
  %v2811 = vmul.f32 %v2607, 0.35355338
  %v2812 = vmul.f32 %v2793, 0.35355338
  %v2813 = vmul.f32 %v2796, 0.35355338
  %v2814 = vmul.f32 %v2799, 0.35355338
  %v2815 = vmul.f32 %v2612, 0.35355338
  %v2816 = vmul.f32 %v2803, 0.35355338
  %v2817 = vmul.f32 %v2806, 0.35355338
  %v2818 = vmul.f32 %v2809, 0.35355338
  %2820 = vrot.lane.b32.xlu0 %v2695, 120
  %v2821 = vpop.permute.xlu0 %2820
  %2822 = vrot.lane.b32.xlu0 %v2695, 112
  %v2823 = vpop.permute.xlu0 %2822
  %2824 = vrot.lane.b32.xlu0 %v2695, 104
  %v2825 = vpop.permute.xlu0 %2824
  %2827 = vrot.lane.b32.xlu0 %v2700, 120
  %v2828 = vpop.permute.xlu0 %2827
  %2829 = vrot.lane.b32.xlu0 %v2700, 112
  %v2830 = vpop.permute.xlu0 %2829
  %2831 = vrot.lane.b32.xlu0 %v2700, 104
  %v2832 = vpop.permute.xlu0 %2831
  %2834 = vrot.lane.b32.xlu0 %v2783, 120
  %v2835 = vpop.permute.xlu0 %2834
  %2837 = vrot.lane.b32.xlu0 %v2783, 112
  %v2838 = vpop.permute.xlu0 %2837
  %2840 = vrot.lane.b32.xlu0 %v2783, 104
  %v2841 = vpop.permute.xlu0 %2840
  %2844 = vrot.lane.b32.xlu0 %v2788, 120
  %v2845 = vpop.permute.xlu0 %2844
  %2847 = vrot.lane.b32.xlu0 %v2788, 112
  %v2848 = vpop.permute.xlu0 %2847
  %2850 = vrot.lane.b32.xlu0 %v2788, 104
  %v2851 = vpop.permute.xlu0 %2850
  %v2854 = vsel %vm494, %v2811, 0
  %v2856 = vsel %vm494, %v2695, 0
  %2858 = vmatprep.subr.mxu0 0.0
  %2859 = vmatpush1.xpose.msra.mxu0 %v2856
  %2860 = vmatprep.subr.mxu0 0.0
  %2861 = vmatpush1.xpose.msra.mxu0 0.0
  %2862 = vmatprep.subr.mxu0 0.0
  %2863 = vmatpush1.xpose.msra.mxu0 0.0
  %2864 = vmatprep.subr.mxu0 0.0
  %2865 = vmatpush1.xpose.msra.mxu0 0.0
  %2866 = vmatprep.subr.mxu0 0.0
  %2867 = vmatpush1.xpose.msra.mxu0 0.0
  %2868 = vmatprep.subr.mxu0 0.0
  %2869 = vmatpush1.xpose.msra.mxu0 0.0
  %2870 = vmatprep.subr.mxu0 0.0
  %2871 = vmatpush1.xpose.msra.mxu0 0.0
  %2872 = vmatprep.subr.mxu0 0.0
  %2873 = vmatpush1.xpose.msra.mxu0 0.0
  %2874 = vmatprep.subr.mxu0 0.0
  %2875 = vmatpush1.xpose.msra.mxu0 0.0
  %2876 = vmatprep.subr.mxu0 0.0
  %2877 = vmatpush1.xpose.msra.mxu0 0.0
  %2878 = vmatprep.subr.mxu0 0.0
  %2879 = vmatpush1.xpose.msra.mxu0 0.0
  %2880 = vmatprep.subr.mxu0 0.0
  %2881 = vmatpush1.xpose.msra.mxu0 0.0
  %2882 = vmatprep.subr.mxu0 0.0
  %2883 = vmatpush1.xpose.msra.mxu0 0.0
  %2884 = vmatprep.subr.mxu0 0.0
  %2885 = vmatpush1.xpose.msra.mxu0 0.0
  %2886 = vmatprep.subr.mxu0 0.0
  %2887 = vmatpush1.xpose.msra.mxu0 0.0
  %2888 = vmatprep.subr.mxu0 0.0
  %2889 = vmatpush1.xpose.msra.mxu0 0.0
  %2890 = vmatprep.subr.mxu0 0.0
  %2891 = vmatpush1.xpose.msra.mxu0 0.0
  %2892 = vmatprep.subr.mxu0 0.0
  %2893 = vmatpush1.xpose.msra.mxu0 0.0
  %2894 = vmatprep.subr.mxu0 0.0
  %2895 = vmatpush1.xpose.msra.mxu0 0.0
  %2896 = vmatprep.subr.mxu0 0.0
  %2897 = vmatpush1.xpose.msra.mxu0 0.0
  %2898 = vmatprep.subr.mxu0 0.0
  %2899 = vmatpush1.xpose.msra.mxu0 0.0
  %2900 = vmatprep.subr.mxu0 0.0
  %2901 = vmatpush1.xpose.msra.mxu0 0.0
  %2902 = vmatprep.subr.mxu0 0.0
  %2903 = vmatpush1.xpose.msra.mxu0 0.0
  %2904 = vmatprep.subr.mxu0 0.0
  %2905 = vmatpush1.xpose.msra.mxu0 0.0
  %2906 = vmatprep.subr.mxu0 0.0
  %2907 = vmatpush1.xpose.msra.mxu0 0.0
  %2908 = vmatprep.subr.mxu0 0.0
  %2909 = vmatpush1.xpose.msra.mxu0 0.0
  %2910 = vmatprep.subr.mxu0 0.0
  %2911 = vmatpush1.xpose.msra.mxu0 0.0
  %2912 = vmatprep.subr.mxu0 0.0
  %2913 = vmatpush1.xpose.msra.mxu0 0.0
  %2914 = vmatprep.subr.mxu0 0.0
  %2915 = vmatpush1.xpose.msra.mxu0 0.0
  %2916 = vmatprep.subr.mxu0 0.0
  %2917 = vmatpush1.xpose.msra.mxu0 0.0
  %2918 = vmatprep.subr.mxu0 0.0
  %2919 = vmatpush1.xpose.msra.mxu0 0.0
  %2920 = vmatprep.subr.mxu0 0.0
  %2921 = vmatpush1.xpose.msra.mxu0 0.0
  %2922 = vmatprep.mubr.f32.mxu0 0.0
  %2923 = vmatmul.mubr.f32.gmra.mrb[0].mxu0 %v2854
  %v2924 = vpop.f32.mrb[0].mxu0
  %v2925 = vadd.f32 0.0, %v2924
  %v2926 = vpop.f32.mrb[0].mxu0
  %2927 = vdwg.mxu0
  %v2929 = vsel %vm494, %v2812, 0
  %v2931 = vsel %vm494, %v2821, 0
  %2933 = vmatprep.subr.mxu0 0.0
  %2934 = vmatpush1.xpose.msra.mxu0 %v2931
  %2935 = vmatprep.subr.mxu0 0.0
  %2936 = vmatpush1.xpose.msra.mxu0 0.0
  %2937 = vmatprep.subr.mxu0 0.0
  %2938 = vmatpush1.xpose.msra.mxu0 0.0
  %2939 = vmatprep.subr.mxu0 0.0
  %2940 = vmatpush1.xpose.msra.mxu0 0.0
  %2941 = vmatprep.subr.mxu0 0.0
  %2942 = vmatpush1.xpose.msra.mxu0 0.0
  %2943 = vmatprep.subr.mxu0 0.0
  %2944 = vmatpush1.xpose.msra.mxu0 0.0
  %2945 = vmatprep.subr.mxu0 0.0
  %2946 = vmatpush1.xpose.msra.mxu0 0.0
  %2947 = vmatprep.subr.mxu0 0.0
  %2948 = vmatpush1.xpose.msra.mxu0 0.0
  %2949 = vmatprep.subr.mxu0 0.0
  %2950 = vmatpush1.xpose.msra.mxu0 0.0
  %2951 = vmatprep.subr.mxu0 0.0
  %2952 = vmatpush1.xpose.msra.mxu0 0.0
  %2953 = vmatprep.subr.mxu0 0.0
  %2954 = vmatpush1.xpose.msra.mxu0 0.0
  %2955 = vmatprep.subr.mxu0 0.0
  %2956 = vmatpush1.xpose.msra.mxu0 0.0
  %2957 = vmatprep.subr.mxu0 0.0
  %2958 = vmatpush1.xpose.msra.mxu0 0.0
  %2959 = vmatprep.subr.mxu0 0.0
  %2960 = vmatpush1.xpose.msra.mxu0 0.0
  %2961 = vmatprep.subr.mxu0 0.0
  %2962 = vmatpush1.xpose.msra.mxu0 0.0
  %2963 = vmatprep.subr.mxu0 0.0
  %2964 = vmatpush1.xpose.msra.mxu0 0.0
  %2965 = vmatprep.subr.mxu0 0.0
  %2966 = vmatpush1.xpose.msra.mxu0 0.0
  %2967 = vmatprep.subr.mxu0 0.0
  %2968 = vmatpush1.xpose.msra.mxu0 0.0
  %2969 = vmatprep.subr.mxu0 0.0
  %2970 = vmatpush1.xpose.msra.mxu0 0.0
  %2971 = vmatprep.subr.mxu0 0.0
  %2972 = vmatpush1.xpose.msra.mxu0 0.0
  %2973 = vmatprep.subr.mxu0 0.0
  %2974 = vmatpush1.xpose.msra.mxu0 0.0
  %2975 = vmatprep.subr.mxu0 0.0
  %2976 = vmatpush1.xpose.msra.mxu0 0.0
  %2977 = vmatprep.subr.mxu0 0.0
  %2978 = vmatpush1.xpose.msra.mxu0 0.0
  %2979 = vmatprep.subr.mxu0 0.0
  %2980 = vmatpush1.xpose.msra.mxu0 0.0
  %2981 = vmatprep.subr.mxu0 0.0
  %2982 = vmatpush1.xpose.msra.mxu0 0.0
  %2983 = vmatprep.subr.mxu0 0.0
  %2984 = vmatpush1.xpose.msra.mxu0 0.0
  %2985 = vmatprep.subr.mxu0 0.0
  %2986 = vmatpush1.xpose.msra.mxu0 0.0
  %2987 = vmatprep.subr.mxu0 0.0
  %2988 = vmatpush1.xpose.msra.mxu0 0.0
  %2989 = vmatprep.subr.mxu0 0.0
  %2990 = vmatpush1.xpose.msra.mxu0 0.0
  %2991 = vmatprep.subr.mxu0 0.0
  %2992 = vmatpush1.xpose.msra.mxu0 0.0
  %2993 = vmatprep.subr.mxu0 0.0
  %2994 = vmatpush1.xpose.msra.mxu0 0.0
  %2995 = vmatprep.subr.mxu0 0.0
  %2996 = vmatpush1.xpose.msra.mxu0 0.0
  %2997 = vmatprep.mubr.f32.mxu0 0.0
  %2998 = vmatmul.mubr.f32.gmra.mrb[0].mxu0 %v2929
  %v2999 = vpop.f32.mrb[0].mxu0
  %v3000 = vadd.f32 0.0, %v2999
  %v3001 = vpop.f32.mrb[0].mxu0
  %3002 = vdwg.mxu0
  %v3004 = vsel %vm494, %v2813, 0
  %v3006 = vsel %vm494, %v2823, 0
  %3008 = vmatprep.subr.mxu0 0.0
  %3009 = vmatpush1.xpose.msra.mxu0 %v3006
  %3010 = vmatprep.subr.mxu0 0.0
  %3011 = vmatpush1.xpose.msra.mxu0 0.0
  %3012 = vmatprep.subr.mxu0 0.0
  %3013 = vmatpush1.xpose.msra.mxu0 0.0
  %3014 = vmatprep.subr.mxu0 0.0
  %3015 = vmatpush1.xpose.msra.mxu0 0.0
  %3016 = vmatprep.subr.mxu0 0.0
  %3017 = vmatpush1.xpose.msra.mxu0 0.0
  %3018 = vmatprep.subr.mxu0 0.0
  %3019 = vmatpush1.xpose.msra.mxu0 0.0
  %3020 = vmatprep.subr.mxu0 0.0
  %3021 = vmatpush1.xpose.msra.mxu0 0.0
  %3022 = vmatprep.subr.mxu0 0.0
  %3023 = vmatpush1.xpose.msra.mxu0 0.0
  %3024 = vmatprep.subr.mxu0 0.0
  %3025 = vmatpush1.xpose.msra.mxu0 0.0
  %3026 = vmatprep.subr.mxu0 0.0
  %3027 = vmatpush1.xpose.msra.mxu0 0.0
  %3028 = vmatprep.subr.mxu0 0.0
  %3029 = vmatpush1.xpose.msra.mxu0 0.0
  %3030 = vmatprep.subr.mxu0 0.0
  %3031 = vmatpush1.xpose.msra.mxu0 0.0
  %3032 = vmatprep.subr.mxu0 0.0
  %3033 = vmatpush1.xpose.msra.mxu0 0.0
  %3034 = vmatprep.subr.mxu0 0.0
  %3035 = vmatpush1.xpose.msra.mxu0 0.0
  %3036 = vmatprep.subr.mxu0 0.0
  %3037 = vmatpush1.xpose.msra.mxu0 0.0
  %3038 = vmatprep.subr.mxu0 0.0
  %3039 = vmatpush1.xpose.msra.mxu0 0.0
  %3040 = vmatprep.subr.mxu0 0.0
  %3041 = vmatpush1.xpose.msra.mxu0 0.0
  %3042 = vmatprep.subr.mxu0 0.0
  %3043 = vmatpush1.xpose.msra.mxu0 0.0
  %3044 = vmatprep.subr.mxu0 0.0
  %3045 = vmatpush1.xpose.msra.mxu0 0.0
  %3046 = vmatprep.subr.mxu0 0.0
  %3047 = vmatpush1.xpose.msra.mxu0 0.0
  %3048 = vmatprep.subr.mxu0 0.0
  %3049 = vmatpush1.xpose.msra.mxu0 0.0
  %3050 = vmatprep.subr.mxu0 0.0
  %3051 = vmatpush1.xpose.msra.mxu0 0.0
  %3052 = vmatprep.subr.mxu0 0.0
  %3053 = vmatpush1.xpose.msra.mxu0 0.0
  %3054 = vmatprep.subr.mxu0 0.0
  %3055 = vmatpush1.xpose.msra.mxu0 0.0
  %3056 = vmatprep.subr.mxu0 0.0
  %3057 = vmatpush1.xpose.msra.mxu0 0.0
  %3058 = vmatprep.subr.mxu0 0.0
  %3059 = vmatpush1.xpose.msra.mxu0 0.0
  %3060 = vmatprep.subr.mxu0 0.0
  %3061 = vmatpush1.xpose.msra.mxu0 0.0
  %3062 = vmatprep.subr.mxu0 0.0
  %3063 = vmatpush1.xpose.msra.mxu0 0.0
  %3064 = vmatprep.subr.mxu0 0.0
  %3065 = vmatpush1.xpose.msra.mxu0 0.0
  %3066 = vmatprep.subr.mxu0 0.0
  %3067 = vmatpush1.xpose.msra.mxu0 0.0
  %3068 = vmatprep.subr.mxu0 0.0
  %3069 = vmatpush1.xpose.msra.mxu0 0.0
  %3070 = vmatprep.subr.mxu0 0.0
  %3071 = vmatpush1.xpose.msra.mxu0 0.0
  %3072 = vmatprep.mubr.f32.mxu0 0.0
  %3073 = vmatmul.mubr.f32.gmra.mrb[0].mxu0 %v3004
  %v3074 = vpop.f32.mrb[0].mxu0
  %v3075 = vadd.f32 0.0, %v3074
  %v3076 = vpop.f32.mrb[0].mxu0
  %3077 = vdwg.mxu0
  %v3079 = vsel %vm494, %v2814, 0
  %v3081 = vsel %vm494, %v2825, 0
  %3083 = vmatprep.subr.mxu0 0.0
  %3084 = vmatpush1.xpose.msra.mxu0 %v3081
  %3085 = vmatprep.subr.mxu0 0.0
  %3086 = vmatpush1.xpose.msra.mxu0 0.0
  %3087 = vmatprep.subr.mxu0 0.0
  %3088 = vmatpush1.xpose.msra.mxu0 0.0
  %3089 = vmatprep.subr.mxu0 0.0
  %3090 = vmatpush1.xpose.msra.mxu0 0.0
  %3091 = vmatprep.subr.mxu0 0.0
  %3092 = vmatpush1.xpose.msra.mxu0 0.0
  %3093 = vmatprep.subr.mxu0 0.0
  %3094 = vmatpush1.xpose.msra.mxu0 0.0
  %3095 = vmatprep.subr.mxu0 0.0
  %3096 = vmatpush1.xpose.msra.mxu0 0.0
  %3097 = vmatprep.subr.mxu0 0.0
  %3098 = vmatpush1.xpose.msra.mxu0 0.0
  %3099 = vmatprep.subr.mxu0 0.0
  %3100 = vmatpush1.xpose.msra.mxu0 0.0
  %3101 = vmatprep.subr.mxu0 0.0
  %3102 = vmatpush1.xpose.msra.mxu0 0.0
  %3103 = vmatprep.subr.mxu0 0.0
  %3104 = vmatpush1.xpose.msra.mxu0 0.0
  %3105 = vmatprep.subr.mxu0 0.0
  %3106 = vmatpush1.xpose.msra.mxu0 0.0
  %3107 = vmatprep.subr.mxu0 0.0
  %3108 = vmatpush1.xpose.msra.mxu0 0.0
  %3109 = vmatprep.subr.mxu0 0.0
  %3110 = vmatpush1.xpose.msra.mxu0 0.0
  %3111 = vmatprep.subr.mxu0 0.0
  %3112 = vmatpush1.xpose.msra.mxu0 0.0
  %3113 = vmatprep.subr.mxu0 0.0
  %3114 = vmatpush1.xpose.msra.mxu0 0.0
  %3115 = vmatprep.subr.mxu0 0.0
  %3116 = vmatpush1.xpose.msra.mxu0 0.0
  %3117 = vmatprep.subr.mxu0 0.0
  %3118 = vmatpush1.xpose.msra.mxu0 0.0
  %3119 = vmatprep.subr.mxu0 0.0
  %3120 = vmatpush1.xpose.msra.mxu0 0.0
  %3121 = vmatprep.subr.mxu0 0.0
  %3122 = vmatpush1.xpose.msra.mxu0 0.0
  %3123 = vmatprep.subr.mxu0 0.0
  %3124 = vmatpush1.xpose.msra.mxu0 0.0
  %3125 = vmatprep.subr.mxu0 0.0
  %3126 = vmatpush1.xpose.msra.mxu0 0.0
  %3127 = vmatprep.subr.mxu0 0.0
  %3128 = vmatpush1.xpose.msra.mxu0 0.0
  %3129 = vmatprep.subr.mxu0 0.0
  %3130 = vmatpush1.xpose.msra.mxu0 0.0
  %3131 = vmatprep.subr.mxu0 0.0
  %3132 = vmatpush1.xpose.msra.mxu0 0.0
  %3133 = vmatprep.subr.mxu0 0.0
  %3134 = vmatpush1.xpose.msra.mxu0 0.0
  %3135 = vmatprep.subr.mxu0 0.0
  %3136 = vmatpush1.xpose.msra.mxu0 0.0
  %3137 = vmatprep.subr.mxu0 0.0
  %3138 = vmatpush1.xpose.msra.mxu0 0.0
  %3139 = vmatprep.subr.mxu0 0.0
  %3140 = vmatpush1.xpose.msra.mxu0 0.0
  %3141 = vmatprep.subr.mxu0 0.0
  %3142 = vmatpush1.xpose.msra.mxu0 0.0
  %3143 = vmatprep.subr.mxu0 0.0
  %3144 = vmatpush1.xpose.msra.mxu0 0.0
  %3145 = vmatprep.subr.mxu0 0.0
  %3146 = vmatpush1.xpose.msra.mxu0 0.0
  %3147 = vmatprep.mubr.f32.mxu0 0.0
  %3148 = vmatmul.mubr.f32.gmra.mrb[0].mxu0 %v3079
  %v3149 = vpop.f32.mrb[0].mxu0
  %v3150 = vadd.f32 0.0, %v3149
  %v3151 = vpop.f32.mrb[0].mxu0
  %3152 = vdwg.mxu0
  %v3154 = vsel %vm494, %v2815, 0
  %v3156 = vsel %vm494, %v2700, 0
  %3158 = vmatprep.subr.mxu0 0.0
  %3159 = vmatpush1.xpose.msra.mxu0 %v3156
  %3160 = vmatprep.subr.mxu0 0.0
  %3161 = vmatpush1.xpose.msra.mxu0 0.0
  %3162 = vmatprep.subr.mxu0 0.0
  %3163 = vmatpush1.xpose.msra.mxu0 0.0
  %3164 = vmatprep.subr.mxu0 0.0
  %3165 = vmatpush1.xpose.msra.mxu0 0.0
  %3166 = vmatprep.subr.mxu0 0.0
  %3167 = vmatpush1.xpose.msra.mxu0 0.0
  %3168 = vmatprep.subr.mxu0 0.0
  %3169 = vmatpush1.xpose.msra.mxu0 0.0
  %3170 = vmatprep.subr.mxu0 0.0
  %3171 = vmatpush1.xpose.msra.mxu0 0.0
  %3172 = vmatprep.subr.mxu0 0.0
  %3173 = vmatpush1.xpose.msra.mxu0 0.0
  %3174 = vmatprep.subr.mxu0 0.0
  %3175 = vmatpush1.xpose.msra.mxu0 0.0
  %3176 = vmatprep.subr.mxu0 0.0
  %3177 = vmatpush1.xpose.msra.mxu0 0.0
  %3178 = vmatprep.subr.mxu0 0.0
  %3179 = vmatpush1.xpose.msra.mxu0 0.0
  %3180 = vmatprep.subr.mxu0 0.0
  %3181 = vmatpush1.xpose.msra.mxu0 0.0
  %3182 = vmatprep.subr.mxu0 0.0
  %3183 = vmatpush1.xpose.msra.mxu0 0.0
  %3184 = vmatprep.subr.mxu0 0.0
  %3185 = vmatpush1.xpose.msra.mxu0 0.0
  %3186 = vmatprep.subr.mxu0 0.0
  %3187 = vmatpush1.xpose.msra.mxu0 0.0
  %3188 = vmatprep.subr.mxu0 0.0
  %3189 = vmatpush1.xpose.msra.mxu0 0.0
  %3190 = vmatprep.subr.mxu0 0.0
  %3191 = vmatpush1.xpose.msra.mxu0 0.0
  %3192 = vmatprep.subr.mxu0 0.0
  %3193 = vmatpush1.xpose.msra.mxu0 0.0
  %3194 = vmatprep.subr.mxu0 0.0
  %3195 = vmatpush1.xpose.msra.mxu0 0.0
  %3196 = vmatprep.subr.mxu0 0.0
  %3197 = vmatpush1.xpose.msra.mxu0 0.0
  %3198 = vmatprep.subr.mxu0 0.0
  %3199 = vmatpush1.xpose.msra.mxu0 0.0
  %3200 = vmatprep.subr.mxu0 0.0
  %3201 = vmatpush1.xpose.msra.mxu0 0.0
  %3202 = vmatprep.subr.mxu0 0.0
  %3203 = vmatpush1.xpose.msra.mxu0 0.0
  %3204 = vmatprep.subr.mxu0 0.0
  %3205 = vmatpush1.xpose.msra.mxu0 0.0
  %3206 = vmatprep.subr.mxu0 0.0
  %3207 = vmatpush1.xpose.msra.mxu0 0.0
  %3208 = vmatprep.subr.mxu0 0.0
  %3209 = vmatpush1.xpose.msra.mxu0 0.0
  %3210 = vmatprep.subr.mxu0 0.0
  %3211 = vmatpush1.xpose.msra.mxu0 0.0
  %3212 = vmatprep.subr.mxu0 0.0
  %3213 = vmatpush1.xpose.msra.mxu0 0.0
  %3214 = vmatprep.subr.mxu0 0.0
  %3215 = vmatpush1.xpose.msra.mxu0 0.0
  %3216 = vmatprep.subr.mxu0 0.0
  %3217 = vmatpush1.xpose.msra.mxu0 0.0
  %3218 = vmatprep.subr.mxu0 0.0
  %3219 = vmatpush1.xpose.msra.mxu0 0.0
  %3220 = vmatprep.subr.mxu0 0.0
  %3221 = vmatpush1.xpose.msra.mxu0 0.0
  %3222 = vmatprep.mubr.f32.mxu0 0.0
  %3223 = vmatmul.mubr.f32.gmra.mrb[0].mxu0 %v3154
  %v3224 = vpop.f32.mrb[0].mxu0
  %v3225 = vadd.f32 0.0, %v3224
  %v3226 = vpop.f32.mrb[0].mxu0
  %3227 = vdwg.mxu0
  %v3229 = vsel %vm494, %v2816, 0
  %v3231 = vsel %vm494, %v2828, 0
  %3233 = vmatprep.subr.mxu0 0.0
  %3234 = vmatpush1.xpose.msra.mxu0 %v3231
  %3235 = vmatprep.subr.mxu0 0.0
  %3236 = vmatpush1.xpose.msra.mxu0 0.0
  %3237 = vmatprep.subr.mxu0 0.0
  %3238 = vmatpush1.xpose.msra.mxu0 0.0
  %3239 = vmatprep.subr.mxu0 0.0
  %3240 = vmatpush1.xpose.msra.mxu0 0.0
  %3241 = vmatprep.subr.mxu0 0.0
  %3242 = vmatpush1.xpose.msra.mxu0 0.0
  %3243 = vmatprep.subr.mxu0 0.0
  %3244 = vmatpush1.xpose.msra.mxu0 0.0
  %3245 = vmatprep.subr.mxu0 0.0
  %3246 = vmatpush1.xpose.msra.mxu0 0.0
  %3247 = vmatprep.subr.mxu0 0.0
  %3248 = vmatpush1.xpose.msra.mxu0 0.0
  %3249 = vmatprep.subr.mxu0 0.0
  %3250 = vmatpush1.xpose.msra.mxu0 0.0
  %3251 = vmatprep.subr.mxu0 0.0
  %3252 = vmatpush1.xpose.msra.mxu0 0.0
  %3253 = vmatprep.subr.mxu0 0.0
  %3254 = vmatpush1.xpose.msra.mxu0 0.0
  %3255 = vmatprep.subr.mxu0 0.0
  %3256 = vmatpush1.xpose.msra.mxu0 0.0
  %3257 = vmatprep.subr.mxu0 0.0
  %3258 = vmatpush1.xpose.msra.mxu0 0.0
  %3259 = vmatprep.subr.mxu0 0.0
  %3260 = vmatpush1.xpose.msra.mxu0 0.0
  %3261 = vmatprep.subr.mxu0 0.0
  %3262 = vmatpush1.xpose.msra.mxu0 0.0
  %3263 = vmatprep.subr.mxu0 0.0
  %3264 = vmatpush1.xpose.msra.mxu0 0.0
  %3265 = vmatprep.subr.mxu0 0.0
  %3266 = vmatpush1.xpose.msra.mxu0 0.0
  %3267 = vmatprep.subr.mxu0 0.0
  %3268 = vmatpush1.xpose.msra.mxu0 0.0
  %3269 = vmatprep.subr.mxu0 0.0
  %3270 = vmatpush1.xpose.msra.mxu0 0.0
  %3271 = vmatprep.subr.mxu0 0.0
  %3272 = vmatpush1.xpose.msra.mxu0 0.0
  %3273 = vmatprep.subr.mxu0 0.0
  %3274 = vmatpush1.xpose.msra.mxu0 0.0
  %3275 = vmatprep.subr.mxu0 0.0
  %3276 = vmatpush1.xpose.msra.mxu0 0.0
  %3277 = vmatprep.subr.mxu0 0.0
  %3278 = vmatpush1.xpose.msra.mxu0 0.0
  %3279 = vmatprep.subr.mxu0 0.0
  %3280 = vmatpush1.xpose.msra.mxu0 0.0
  %3281 = vmatprep.subr.mxu0 0.0
  %3282 = vmatpush1.xpose.msra.mxu0 0.0
  %3283 = vmatprep.subr.mxu0 0.0
  %3284 = vmatpush1.xpose.msra.mxu0 0.0
  %3285 = vmatprep.subr.mxu0 0.0
  %3286 = vmatpush1.xpose.msra.mxu0 0.0
  %3287 = vmatprep.subr.mxu0 0.0
  %3288 = vmatpush1.xpose.msra.mxu0 0.0
  %3289 = vmatprep.subr.mxu0 0.0
  %3290 = vmatpush1.xpose.msra.mxu0 0.0
  %3291 = vmatprep.subr.mxu0 0.0
  %3292 = vmatpush1.xpose.msra.mxu0 0.0
  %3293 = vmatprep.subr.mxu0 0.0
  %3294 = vmatpush1.xpose.msra.mxu0 0.0
  %3295 = vmatprep.subr.mxu0 0.0
  %3296 = vmatpush1.xpose.msra.mxu0 0.0
  %3297 = vmatprep.mubr.f32.mxu0 0.0
  %3298 = vmatmul.mubr.f32.gmra.mrb[0].mxu0 %v3229
  %v3299 = vpop.f32.mrb[0].mxu0
  %v3300 = vadd.f32 0.0, %v3299
  %v3301 = vpop.f32.mrb[0].mxu0
  %3302 = vdwg.mxu0
  %v3304 = vsel %vm494, %v2817, 0
  %v3306 = vsel %vm494, %v2830, 0
  %3308 = vmatprep.subr.mxu0 0.0
  %3309 = vmatpush1.xpose.msra.mxu0 %v3306
  %3310 = vmatprep.subr.mxu0 0.0
  %3311 = vmatpush1.xpose.msra.mxu0 0.0
  %3312 = vmatprep.subr.mxu0 0.0
  %3313 = vmatpush1.xpose.msra.mxu0 0.0
  %3314 = vmatprep.subr.mxu0 0.0
  %3315 = vmatpush1.xpose.msra.mxu0 0.0
  %3316 = vmatprep.subr.mxu0 0.0
  %3317 = vmatpush1.xpose.msra.mxu0 0.0
  %3318 = vmatprep.subr.mxu0 0.0
  %3319 = vmatpush1.xpose.msra.mxu0 0.0
  %3320 = vmatprep.subr.mxu0 0.0
  %3321 = vmatpush1.xpose.msra.mxu0 0.0
  %3322 = vmatprep.subr.mxu0 0.0
  %3323 = vmatpush1.xpose.msra.mxu0 0.0
  %3324 = vmatprep.subr.mxu0 0.0
  %3325 = vmatpush1.xpose.msra.mxu0 0.0
  %3326 = vmatprep.subr.mxu0 0.0
  %3327 = vmatpush1.xpose.msra.mxu0 0.0
  %3328 = vmatprep.subr.mxu0 0.0
  %3329 = vmatpush1.xpose.msra.mxu0 0.0
  %3330 = vmatprep.subr.mxu0 0.0
  %3331 = vmatpush1.xpose.msra.mxu0 0.0
  %3332 = vmatprep.subr.mxu0 0.0
  %3333 = vmatpush1.xpose.msra.mxu0 0.0
  %3334 = vmatprep.subr.mxu0 0.0
  %3335 = vmatpush1.xpose.msra.mxu0 0.0
  %3336 = vmatprep.subr.mxu0 0.0
  %3337 = vmatpush1.xpose.msra.mxu0 0.0
  %3338 = vmatprep.subr.mxu0 0.0
  %3339 = vmatpush1.xpose.msra.mxu0 0.0
  %3340 = vmatprep.subr.mxu0 0.0
  %3341 = vmatpush1.xpose.msra.mxu0 0.0
  %3342 = vmatprep.subr.mxu0 0.0
  %3343 = vmatpush1.xpose.msra.mxu0 0.0
  %3344 = vmatprep.subr.mxu0 0.0
  %3345 = vmatpush1.xpose.msra.mxu0 0.0
  %3346 = vmatprep.subr.mxu0 0.0
  %3347 = vmatpush1.xpose.msra.mxu0 0.0
  %3348 = vmatprep.subr.mxu0 0.0
  %3349 = vmatpush1.xpose.msra.mxu0 0.0
  %3350 = vmatprep.subr.mxu0 0.0
  %3351 = vmatpush1.xpose.msra.mxu0 0.0
  %3352 = vmatprep.subr.mxu0 0.0
  %3353 = vmatpush1.xpose.msra.mxu0 0.0
  %3354 = vmatprep.subr.mxu0 0.0
  %3355 = vmatpush1.xpose.msra.mxu0 0.0
  %3356 = vmatprep.subr.mxu0 0.0
  %3357 = vmatpush1.xpose.msra.mxu0 0.0
  %3358 = vmatprep.subr.mxu0 0.0
  %3359 = vmatpush1.xpose.msra.mxu0 0.0
  %3360 = vmatprep.subr.mxu0 0.0
  %3361 = vmatpush1.xpose.msra.mxu0 0.0
  %3362 = vmatprep.subr.mxu0 0.0
  %3363 = vmatpush1.xpose.msra.mxu0 0.0
  %3364 = vmatprep.subr.mxu0 0.0
  %3365 = vmatpush1.xpose.msra.mxu0 0.0
  %3366 = vmatprep.subr.mxu0 0.0
  %3367 = vmatpush1.xpose.msra.mxu0 0.0
  %3368 = vmatprep.subr.mxu0 0.0
  %3369 = vmatpush1.xpose.msra.mxu0 0.0
  %3370 = vmatprep.subr.mxu0 0.0
  %3371 = vmatpush1.xpose.msra.mxu0 0.0
  %3372 = vmatprep.mubr.f32.mxu0 0.0
  %3373 = vmatmul.mubr.f32.gmra.mrb[0].mxu0 %v3304
  %v3374 = vpop.f32.mrb[0].mxu0
  %v3375 = vadd.f32 0.0, %v3374
  %v3376 = vpop.f32.mrb[0].mxu0
  %3377 = vdwg.mxu0
  %v3379 = vsel %vm494, %v2818, 0
  %v3381 = vsel %vm494, %v2832, 0
  %3383 = vmatprep.subr.mxu0 0.0
  %3384 = vmatpush1.xpose.msra.mxu0 %v3381
  %3385 = vmatprep.subr.mxu0 0.0
  %3386 = vmatpush1.xpose.msra.mxu0 0.0
  %3387 = vmatprep.subr.mxu0 0.0
  %3388 = vmatpush1.xpose.msra.mxu0 0.0
  %3389 = vmatprep.subr.mxu0 0.0
  %3390 = vmatpush1.xpose.msra.mxu0 0.0
  %3391 = vmatprep.subr.mxu0 0.0
  %3392 = vmatpush1.xpose.msra.mxu0 0.0
  %3393 = vmatprep.subr.mxu0 0.0
  %3394 = vmatpush1.xpose.msra.mxu0 0.0
  %3395 = vmatprep.subr.mxu0 0.0
  %3396 = vmatpush1.xpose.msra.mxu0 0.0
  %3397 = vmatprep.subr.mxu0 0.0
  %3398 = vmatpush1.xpose.msra.mxu0 0.0
  %3399 = vmatprep.subr.mxu0 0.0
  %3400 = vmatpush1.xpose.msra.mxu0 0.0
  %3401 = vmatprep.subr.mxu0 0.0
  %3402 = vmatpush1.xpose.msra.mxu0 0.0
  %3403 = vmatprep.subr.mxu0 0.0
  %3404 = vmatpush1.xpose.msra.mxu0 0.0
  %3405 = vmatprep.subr.mxu0 0.0
  %3406 = vmatpush1.xpose.msra.mxu0 0.0
  %3407 = vmatprep.subr.mxu0 0.0
  %3408 = vmatpush1.xpose.msra.mxu0 0.0
  %3409 = vmatprep.subr.mxu0 0.0
  %3410 = vmatpush1.xpose.msra.mxu0 0.0
  %3411 = vmatprep.subr.mxu0 0.0
  %3412 = vmatpush1.xpose.msra.mxu0 0.0
  %3413 = vmatprep.subr.mxu0 0.0
  %3414 = vmatpush1.xpose.msra.mxu0 0.0
  %3415 = vmatprep.subr.mxu0 0.0
  %3416 = vmatpush1.xpose.msra.mxu0 0.0
  %3417 = vmatprep.subr.mxu0 0.0
  %3418 = vmatpush1.xpose.msra.mxu0 0.0
  %3419 = vmatprep.subr.mxu0 0.0
  %3420 = vmatpush1.xpose.msra.mxu0 0.0
  %3421 = vmatprep.subr.mxu0 0.0
  %3422 = vmatpush1.xpose.msra.mxu0 0.0
  %3423 = vmatprep.subr.mxu0 0.0
  %3424 = vmatpush1.xpose.msra.mxu0 0.0
  %3425 = vmatprep.subr.mxu0 0.0
  %3426 = vmatpush1.xpose.msra.mxu0 0.0
  %3427 = vmatprep.subr.mxu0 0.0
  %3428 = vmatpush1.xpose.msra.mxu0 0.0
  %3429 = vmatprep.subr.mxu0 0.0
  %3430 = vmatpush1.xpose.msra.mxu0 0.0
  %3431 = vmatprep.subr.mxu0 0.0
  %3432 = vmatpush1.xpose.msra.mxu0 0.0
  %3433 = vmatprep.subr.mxu0 0.0
  %3434 = vmatpush1.xpose.msra.mxu0 0.0
  %3435 = vmatprep.subr.mxu0 0.0
  %3436 = vmatpush1.xpose.msra.mxu0 0.0
  %3437 = vmatprep.subr.mxu0 0.0
  %3438 = vmatpush1.xpose.msra.mxu0 0.0
  %3439 = vmatprep.subr.mxu0 0.0
  %3440 = vmatpush1.xpose.msra.mxu0 0.0
  %3441 = vmatprep.subr.mxu0 0.0
  %3442 = vmatpush1.xpose.msra.mxu0 0.0
  %3443 = vmatprep.subr.mxu0 0.0
  %3444 = vmatpush1.xpose.msra.mxu0 0.0
  %3445 = vmatprep.subr.mxu0 0.0
  %3446 = vmatpush1.xpose.msra.mxu0 0.0
  %3447 = vmatprep.mubr.f32.mxu0 0.0
  %3448 = vmatmul.mubr.f32.gmra.mrb[0].mxu0 %v3379
  %v3449 = vpop.f32.mrb[0].mxu0
  %v3450 = vadd.f32 0.0, %v3449
  %v3451 = vpop.f32.mrb[0].mxu0
  %3452 = vdwg.mxu0
  %v3453 = vsel %vm1143, -1e+09, %v2925
  %v3454 = vsel %vm1144, -1e+09, %v3000
  %v3455 = vsel %vm1145, -1e+09, %v3075
  %v3456 = vsel %vm1146, -1e+09, %v3150
  %v3457 = vsel %vm1147, -1e+09, %v3225
  %v3458 = vsel %vm1148, -1e+09, %v3300
  %v3459 = vsel %vm1149, -1e+09, %v3375
  %v3460 = vsel %vm1150, -1e+09, %v3450
  %v3461 = vsel %vm494, %v3453, -inf
  %3462 = vmax.xlane.f32.xlu0 %v3461
  %v3463 = vpop.xlane.xlu0 %3462
  %v3464 = vsel %vm494, %v3454, -inf
  %3465 = vmax.xlane.f32.xlu0 %v3464
  %v3466 = vpop.xlane.xlu0 %3465
  %v3467 = vsel %vm494, %v3455, -inf
  %3468 = vmax.xlane.f32.xlu0 %v3467
  %v3469 = vpop.xlane.xlu0 %3468
  %v3470 = vsel %vm494, %v3456, -inf
  %3471 = vmax.xlane.f32.xlu0 %v3470
  %v3472 = vpop.xlane.xlu0 %3471
  %v3473 = vsel %vm494, %v3457, -inf
  %3474 = vmax.xlane.f32.xlu0 %v3473
  %v3475 = vpop.xlane.xlu0 %3474
  %v3476 = vsel %vm494, %v3458, -inf
  %3477 = vmax.xlane.f32.xlu0 %v3476
  %v3478 = vpop.xlane.xlu0 %3477
  %v3479 = vsel %vm494, %v3459, -inf
  %3480 = vmax.xlane.f32.xlu0 %v3479
  %v3481 = vpop.xlane.xlu0 %3480
  %v3482 = vsel %vm494, %v3460, -inf
  %3483 = vmax.xlane.f32.xlu0 %v3482
  %v3484 = vpop.xlane.xlu0 %3483
  %v3485 = vsub.f32 %v3453, %v3463
  %v3486 = vsub.f32 %v3454, %v3466
  %v3487 = vsub.f32 %v3455, %v3469
  %v3488 = vsub.f32 %v3456, %v3472
  %v3489 = vsub.f32 %v3457, %v3475
  %v3490 = vsub.f32 %v3458, %v3478
  %v3491 = vsub.f32 %v3459, %v3481
  %v3492 = vsub.f32 %v3460, %v3484
  %v3493 = vmul.f32 %v3485, 1.442695
  %v3494 = vpow.pop %v3493
  %v3495 = vmul.f32 %v3486, 1.442695
  %v3496 = vpow.pop %v3495
  %v3497 = vmul.f32 %v3487, 1.442695
  %v3498 = vpow.pop %v3497
  %v3499 = vmul.f32 %v3488, 1.442695
  %v3500 = vpow.pop %v3499
  %v3501 = vmul.f32 %v3489, 1.442695
  %v3502 = vpow.pop %v3501
  %v3503 = vmul.f32 %v3490, 1.442695
  %v3504 = vpow.pop %v3503
  %v3505 = vmul.f32 %v3491, 1.442695
  %v3506 = vpow.pop %v3505
  %v3507 = vmul.f32 %v3492, 1.442695
  %v3508 = vpow.pop %v3507
  %v3509 = vsel %vm494, %v3494, 0.0
  %3510 = vadd.xlane.f32.xlu0 %v3509
  %v3511 = vpop.xlane.xlu0 %3510
  %v3512 = vsel %vm494, %v3496, 0.0
  %3513 = vadd.xlane.f32.xlu0 %v3512
  %v3514 = vpop.xlane.xlu0 %3513
  %v3515 = vsel %vm494, %v3498, 0.0
  %3516 = vadd.xlane.f32.xlu0 %v3515
  %v3517 = vpop.xlane.xlu0 %3516
  %v3518 = vsel %vm494, %v3500, 0.0
  %3519 = vadd.xlane.f32.xlu0 %v3518
  %v3520 = vpop.xlane.xlu0 %3519
  %v3521 = vsel %vm494, %v3502, 0.0
  %3522 = vadd.xlane.f32.xlu0 %v3521
  %v3523 = vpop.xlane.xlu0 %3522
  %v3524 = vsel %vm494, %v3504, 0.0
  %3525 = vadd.xlane.f32.xlu0 %v3524
  %v3526 = vpop.xlane.xlu0 %3525
  %v3527 = vsel %vm494, %v3506, 0.0
  %3528 = vadd.xlane.f32.xlu0 %v3527
  %v3529 = vpop.xlane.xlu0 %3528
  %v3530 = vsel %vm494, %v3508, 0.0
  %3531 = vadd.xlane.f32.xlu0 %v3530
  %v3532 = vpop.xlane.xlu0 %3531
  %v3533 = vrcp.pop %v3511
  %v3534 = vmul.f32 1.0, %v3533
  %v3535 = vrcp.pop %v3514
  %v3536 = vmul.f32 1.0, %v3535
  %v3537 = vrcp.pop %v3517
  %v3538 = vmul.f32 1.0, %v3537
  %v3539 = vrcp.pop %v3520
  %v3540 = vmul.f32 1.0, %v3539
  %v3541 = vrcp.pop %v3523
  %v3542 = vmul.f32 1.0, %v3541
  %v3543 = vrcp.pop %v3526
  %v3544 = vmul.f32 1.0, %v3543
  %v3545 = vrcp.pop %v3529
  %v3546 = vmul.f32 1.0, %v3545
  %v3547 = vrcp.pop %v3532
  %v3548 = vmul.f32 1.0, %v3547
  %v3549 = vmul.f32 %v3494, %v3534
  %v3550 = vmul.f32 %v3496, %v3536
  %v3551 = vmul.f32 %v3498, %v3538
  %v3552 = vmul.f32 %v3500, %v3540
  %v3553 = vmul.f32 %v3502, %v3542
  %v3554 = vmul.f32 %v3504, %v3544
  %v3555 = vmul.f32 %v3506, %v3546
  %v3556 = vmul.f32 %v3508, %v3548
  %v3558 = vsel %vm494, %v3549, 0
  %3560 = vmatprep.subr.mxu0 0.0
  %3561 = vmatpush1.msra.mxu0 %v2783
  %3562 = vmatprep.subr.mxu0 0.0
  %3563 = vmatpush1.msra.mxu0 0.0
  %3564 = vmatprep.subr.mxu0 0.0
  %3565 = vmatpush1.msra.mxu0 0.0
  %3566 = vmatprep.subr.mxu0 0.0
  %3567 = vmatpush1.msra.mxu0 0.0
  %3568 = vmatprep.subr.mxu0 0.0
  %3569 = vmatpush1.msra.mxu0 0.0
  %3570 = vmatprep.subr.mxu0 0.0
  %3571 = vmatpush1.msra.mxu0 0.0
  %3572 = vmatprep.subr.mxu0 0.0
  %3573 = vmatpush1.msra.mxu0 0.0
  %3574 = vmatprep.subr.mxu0 0.0
  %3575 = vmatpush1.msra.mxu0 0.0
  %3576 = vmatprep.subr.mxu0 0.0
  %3577 = vmatpush1.msra.mxu0 0.0
  %3578 = vmatprep.subr.mxu0 0.0
  %3579 = vmatpush1.msra.mxu0 0.0
  %3580 = vmatprep.subr.mxu0 0.0
  %3581 = vmatpush1.msra.mxu0 0.0
  %3582 = vmatprep.subr.mxu0 0.0
  %3583 = vmatpush1.msra.mxu0 0.0
  %3584 = vmatprep.subr.mxu0 0.0
  %3585 = vmatpush1.msra.mxu0 0.0
  %3586 = vmatprep.subr.mxu0 0.0
  %3587 = vmatpush1.msra.mxu0 0.0
  %3588 = vmatprep.subr.mxu0 0.0
  %3589 = vmatpush1.msra.mxu0 0.0
  %3590 = vmatprep.subr.mxu0 0.0
  %3591 = vmatpush1.msra.mxu0 0.0
  %3592 = vmatprep.subr.mxu0 0.0
  %3593 = vmatpush1.msra.mxu0 0.0
  %3594 = vmatprep.subr.mxu0 0.0
  %3595 = vmatpush1.msra.mxu0 0.0
  %3596 = vmatprep.subr.mxu0 0.0
  %3597 = vmatpush1.msra.mxu0 0.0
  %3598 = vmatprep.subr.mxu0 0.0
  %3599 = vmatpush1.msra.mxu0 0.0
  %3600 = vmatprep.subr.mxu0 0.0
  %3601 = vmatpush1.msra.mxu0 0.0
  %3602 = vmatprep.subr.mxu0 0.0
  %3603 = vmatpush1.msra.mxu0 0.0
  %3604 = vmatprep.subr.mxu0 0.0
  %3605 = vmatpush1.msra.mxu0 0.0
  %3606 = vmatprep.subr.mxu0 0.0
  %3607 = vmatpush1.msra.mxu0 0.0
  %3608 = vmatprep.subr.mxu0 0.0
  %3609 = vmatpush1.msra.mxu0 0.0
  %3610 = vmatprep.subr.mxu0 0.0
  %3611 = vmatpush1.msra.mxu0 0.0
  %3612 = vmatprep.subr.mxu0 0.0
  %3613 = vmatpush1.msra.mxu0 0.0
  %3614 = vmatprep.subr.mxu0 0.0
  %3615 = vmatpush1.msra.mxu0 0.0
  %3616 = vmatprep.subr.mxu0 0.0
  %3617 = vmatpush1.msra.mxu0 0.0
  %3618 = vmatprep.subr.mxu0 0.0
  %3619 = vmatpush1.msra.mxu0 0.0
  %3620 = vmatprep.subr.mxu0 0.0
  %3621 = vmatpush1.msra.mxu0 0.0
  %3622 = vmatprep.subr.mxu0 0.0
  %3623 = vmatpush1.msra.mxu0 0.0
  %3624 = vmatprep.mubr.f32.mxu0 0.0
  %3625 = vmatmul.mubr.f32.gmra.mrb[0].mxu0 %v3558
  %v3626 = vpop.f32.mrb[0].mxu0
  %v3627 = vadd.f32 0.0, %v3626
  %v3628 = vpop.f32.mrb[0].mxu0
  %3629 = vdwg.mxu0
  %v3631 = vsel %vm494, %v3550, 0
  %3633 = vmatprep.subr.mxu0 0.0
  %3634 = vmatpush1.msra.mxu0 %v2835
  %3635 = vmatprep.subr.mxu0 0.0
  %3636 = vmatpush1.msra.mxu0 0.0
  %3637 = vmatprep.subr.mxu0 0.0
  %3638 = vmatpush1.msra.mxu0 0.0
  %3639 = vmatprep.subr.mxu0 0.0
  %3640 = vmatpush1.msra.mxu0 0.0
  %3641 = vmatprep.subr.mxu0 0.0
  %3642 = vmatpush1.msra.mxu0 0.0
  %3643 = vmatprep.subr.mxu0 0.0
  %3644 = vmatpush1.msra.mxu0 0.0
  %3645 = vmatprep.subr.mxu0 0.0
  %3646 = vmatpush1.msra.mxu0 0.0
  %3647 = vmatprep.subr.mxu0 0.0
  %3648 = vmatpush1.msra.mxu0 0.0
  %3649 = vmatprep.subr.mxu0 0.0
  %3650 = vmatpush1.msra.mxu0 0.0
  %3651 = vmatprep.subr.mxu0 0.0
  %3652 = vmatpush1.msra.mxu0 0.0
  %3653 = vmatprep.subr.mxu0 0.0
  %3654 = vmatpush1.msra.mxu0 0.0
  %3655 = vmatprep.subr.mxu0 0.0
  %3656 = vmatpush1.msra.mxu0 0.0
  %3657 = vmatprep.subr.mxu0 0.0
  %3658 = vmatpush1.msra.mxu0 0.0
  %3659 = vmatprep.subr.mxu0 0.0
  %3660 = vmatpush1.msra.mxu0 0.0
  %3661 = vmatprep.subr.mxu0 0.0
  %3662 = vmatpush1.msra.mxu0 0.0
  %3663 = vmatprep.subr.mxu0 0.0
  %3664 = vmatpush1.msra.mxu0 0.0
  %3665 = vmatprep.subr.mxu0 0.0
  %3666 = vmatpush1.msra.mxu0 0.0
  %3667 = vmatprep.subr.mxu0 0.0
  %3668 = vmatpush1.msra.mxu0 0.0
  %3669 = vmatprep.subr.mxu0 0.0
  %3670 = vmatpush1.msra.mxu0 0.0
  %3671 = vmatprep.subr.mxu0 0.0
  %3672 = vmatpush1.msra.mxu0 0.0
  %3673 = vmatprep.subr.mxu0 0.0
  %3674 = vmatpush1.msra.mxu0 0.0
  %3675 = vmatprep.subr.mxu0 0.0
  %3676 = vmatpush1.msra.mxu0 0.0
  %3677 = vmatprep.subr.mxu0 0.0
  %3678 = vmatpush1.msra.mxu0 0.0
  %3679 = vmatprep.subr.mxu0 0.0
  %3680 = vmatpush1.msra.mxu0 0.0
  %3681 = vmatprep.subr.mxu0 0.0
  %3682 = vmatpush1.msra.mxu0 0.0
  %3683 = vmatprep.subr.mxu0 0.0
  %3684 = vmatpush1.msra.mxu0 0.0
  %3685 = vmatprep.subr.mxu0 0.0
  %3686 = vmatpush1.msra.mxu0 0.0
  %3687 = vmatprep.subr.mxu0 0.0
  %3688 = vmatpush1.msra.mxu0 0.0
  %3689 = vmatprep.subr.mxu0 0.0
  %3690 = vmatpush1.msra.mxu0 0.0
  %3691 = vmatprep.subr.mxu0 0.0
  %3692 = vmatpush1.msra.mxu0 0.0
  %3693 = vmatprep.subr.mxu0 0.0
  %3694 = vmatpush1.msra.mxu0 0.0
  %3695 = vmatprep.subr.mxu0 0.0
  %3696 = vmatpush1.msra.mxu0 0.0
  %3697 = vmatprep.mubr.f32.mxu0 0.0
  %3698 = vmatmul.mubr.f32.gmra.mrb[0].mxu0 %v3631
  %v3699 = vpop.f32.mrb[0].mxu0
  %v3700 = vadd.f32 0.0, %v3699
  %v3701 = vpop.f32.mrb[0].mxu0
  %3702 = vdwg.mxu0
  %v3704 = vsel %vm494, %v3551, 0
  %3706 = vmatprep.subr.mxu0 0.0
  %3707 = vmatpush1.msra.mxu0 %v2838
  %3708 = vmatprep.subr.mxu0 0.0
  %3709 = vmatpush1.msra.mxu0 0.0
  %3710 = vmatprep.subr.mxu0 0.0
  %3711 = vmatpush1.msra.mxu0 0.0
  %3712 = vmatprep.subr.mxu0 0.0
  %3713 = vmatpush1.msra.mxu0 0.0
  %3714 = vmatprep.subr.mxu0 0.0
  %3715 = vmatpush1.msra.mxu0 0.0
  %3716 = vmatprep.subr.mxu0 0.0
  %3717 = vmatpush1.msra.mxu0 0.0
  %3718 = vmatprep.subr.mxu0 0.0
  %3719 = vmatpush1.msra.mxu0 0.0
  %3720 = vmatprep.subr.mxu0 0.0
  %3721 = vmatpush1.msra.mxu0 0.0
  %3722 = vmatprep.subr.mxu0 0.0
  %3723 = vmatpush1.msra.mxu0 0.0
  %3724 = vmatprep.subr.mxu0 0.0
  %3725 = vmatpush1.msra.mxu0 0.0
  %3726 = vmatprep.subr.mxu0 0.0
  %3727 = vmatpush1.msra.mxu0 0.0
  %3728 = vmatprep.subr.mxu0 0.0
  %3729 = vmatpush1.msra.mxu0 0.0
  %3730 = vmatprep.subr.mxu0 0.0
  %3731 = vmatpush1.msra.mxu0 0.0
  %3732 = vmatprep.subr.mxu0 0.0
  %3733 = vmatpush1.msra.mxu0 0.0
  %3734 = vmatprep.subr.mxu0 0.0
  %3735 = vmatpush1.msra.mxu0 0.0
  %3736 = vmatprep.subr.mxu0 0.0
  %3737 = vmatpush1.msra.mxu0 0.0
  %3738 = vmatprep.subr.mxu0 0.0
  %3739 = vmatpush1.msra.mxu0 0.0
  %3740 = vmatprep.subr.mxu0 0.0
  %3741 = vmatpush1.msra.mxu0 0.0
  %3742 = vmatprep.subr.mxu0 0.0
  %3743 = vmatpush1.msra.mxu0 0.0
  %3744 = vmatprep.subr.mxu0 0.0
  %3745 = vmatpush1.msra.mxu0 0.0
  %3746 = vmatprep.subr.mxu0 0.0
  %3747 = vmatpush1.msra.mxu0 0.0
  %3748 = vmatprep.subr.mxu0 0.0
  %3749 = vmatpush1.msra.mxu0 0.0
  %3750 = vmatprep.subr.mxu0 0.0
  %3751 = vmatpush1.msra.mxu0 0.0
  %3752 = vmatprep.subr.mxu0 0.0
  %3753 = vmatpush1.msra.mxu0 0.0
  %3754 = vmatprep.subr.mxu0 0.0
  %3755 = vmatpush1.msra.mxu0 0.0
  %3756 = vmatprep.subr.mxu0 0.0
  %3757 = vmatpush1.msra.mxu0 0.0
  %3758 = vmatprep.subr.mxu0 0.0
  %3759 = vmatpush1.msra.mxu0 0.0
  %3760 = vmatprep.subr.mxu0 0.0
  %3761 = vmatpush1.msra.mxu0 0.0
  %3762 = vmatprep.subr.mxu0 0.0
  %3763 = vmatpush1.msra.mxu0 0.0
  %3764 = vmatprep.subr.mxu0 0.0
  %3765 = vmatpush1.msra.mxu0 0.0
  %3766 = vmatprep.subr.mxu0 0.0
  %3767 = vmatpush1.msra.mxu0 0.0
  %3768 = vmatprep.subr.mxu0 0.0
  %3769 = vmatpush1.msra.mxu0 0.0
  %3770 = vmatprep.mubr.f32.mxu0 0.0
  %3771 = vmatmul.mubr.f32.gmra.mrb[0].mxu0 %v3704
  %v3772 = vpop.f32.mrb[0].mxu0
  %v3773 = vadd.f32 0.0, %v3772
  %v3774 = vpop.f32.mrb[0].mxu0
  %3775 = vdwg.mxu0
  %v3777 = vsel %vm494, %v3552, 0
  %3779 = vmatprep.subr.mxu0 0.0
  %3780 = vmatpush1.msra.mxu0 %v2841
  %3781 = vmatprep.subr.mxu0 0.0
  %3782 = vmatpush1.msra.mxu0 0.0
  %3783 = vmatprep.subr.mxu0 0.0
  %3784 = vmatpush1.msra.mxu0 0.0
  %3785 = vmatprep.subr.mxu0 0.0
  %3786 = vmatpush1.msra.mxu0 0.0
  %3787 = vmatprep.subr.mxu0 0.0
  %3788 = vmatpush1.msra.mxu0 0.0
  %3789 = vmatprep.subr.mxu0 0.0
  %3790 = vmatpush1.msra.mxu0 0.0
  %3791 = vmatprep.subr.mxu0 0.0
  %3792 = vmatpush1.msra.mxu0 0.0
  %3793 = vmatprep.subr.mxu0 0.0
  %3794 = vmatpush1.msra.mxu0 0.0
  %3795 = vmatprep.subr.mxu0 0.0
  %3796 = vmatpush1.msra.mxu0 0.0
  %3797 = vmatprep.subr.mxu0 0.0
  %3798 = vmatpush1.msra.mxu0 0.0
  %3799 = vmatprep.subr.mxu0 0.0
  %3800 = vmatpush1.msra.mxu0 0.0
  %3801 = vmatprep.subr.mxu0 0.0
  %3802 = vmatpush1.msra.mxu0 0.0
  %3803 = vmatprep.subr.mxu0 0.0
  %3804 = vmatpush1.msra.mxu0 0.0
  %3805 = vmatprep.subr.mxu0 0.0
  %3806 = vmatpush1.msra.mxu0 0.0
  %3807 = vmatprep.subr.mxu0 0.0
  %3808 = vmatpush1.msra.mxu0 0.0
  %3809 = vmatprep.subr.mxu0 0.0
  %3810 = vmatpush1.msra.mxu0 0.0
  %3811 = vmatprep.subr.mxu0 0.0
  %3812 = vmatpush1.msra.mxu0 0.0
  %3813 = vmatprep.subr.mxu0 0.0
  %3814 = vmatpush1.msra.mxu0 0.0
  %3815 = vmatprep.subr.mxu0 0.0
  %3816 = vmatpush1.msra.mxu0 0.0
  %3817 = vmatprep.subr.mxu0 0.0
  %3818 = vmatpush1.msra.mxu0 0.0
  %3819 = vmatprep.subr.mxu0 0.0
  %3820 = vmatpush1.msra.mxu0 0.0
  %3821 = vmatprep.subr.mxu0 0.0
  %3822 = vmatpush1.msra.mxu0 0.0
  %3823 = vmatprep.subr.mxu0 0.0
  %3824 = vmatpush1.msra.mxu0 0.0
  %3825 = vmatprep.subr.mxu0 0.0
  %3826 = vmatpush1.msra.mxu0 0.0
  %3827 = vmatprep.subr.mxu0 0.0
  %3828 = vmatpush1.msra.mxu0 0.0
  %3829 = vmatprep.subr.mxu0 0.0
  %3830 = vmatpush1.msra.mxu0 0.0
  %3831 = vmatprep.subr.mxu0 0.0
  %3832 = vmatpush1.msra.mxu0 0.0
  %3833 = vmatprep.subr.mxu0 0.0
  %3834 = vmatpush1.msra.mxu0 0.0
  %3835 = vmatprep.subr.mxu0 0.0
  %3836 = vmatpush1.msra.mxu0 0.0
  %3837 = vmatprep.subr.mxu0 0.0
  %3838 = vmatpush1.msra.mxu0 0.0
  %3839 = vmatprep.subr.mxu0 0.0
  %3840 = vmatpush1.msra.mxu0 0.0
  %3841 = vmatprep.subr.mxu0 0.0
  %3842 = vmatpush1.msra.mxu0 0.0
  %3843 = vmatprep.mubr.f32.mxu0 0.0
  %3844 = vmatmul.mubr.f32.gmra.mrb[0].mxu0 %v3777
  %v3845 = vpop.f32.mrb[0].mxu0
  %v3846 = vadd.f32 0.0, %v3845
  %v3847 = vpop.f32.mrb[0].mxu0
  %3848 = vdwg.mxu0
  %v3850 = vsel %vm494, %v3553, 0
  %3852 = vmatprep.subr.mxu0 0.0
  %3853 = vmatpush1.msra.mxu0 %v2788
  %3854 = vmatprep.subr.mxu0 0.0
  %3855 = vmatpush1.msra.mxu0 0.0
  %3856 = vmatprep.subr.mxu0 0.0
  %3857 = vmatpush1.msra.mxu0 0.0
  %3858 = vmatprep.subr.mxu0 0.0
  %3859 = vmatpush1.msra.mxu0 0.0
  %3860 = vmatprep.subr.mxu0 0.0
  %3861 = vmatpush1.msra.mxu0 0.0
  %3862 = vmatprep.subr.mxu0 0.0
  %3863 = vmatpush1.msra.mxu0 0.0
  %3864 = vmatprep.subr.mxu0 0.0
  %3865 = vmatpush1.msra.mxu0 0.0
  %3866 = vmatprep.subr.mxu0 0.0
  %3867 = vmatpush1.msra.mxu0 0.0
  %3868 = vmatprep.subr.mxu0 0.0
  %3869 = vmatpush1.msra.mxu0 0.0
  %3870 = vmatprep.subr.mxu0 0.0
  %3871 = vmatpush1.msra.mxu0 0.0
  %3872 = vmatprep.subr.mxu0 0.0
  %3873 = vmatpush1.msra.mxu0 0.0
  %3874 = vmatprep.subr.mxu0 0.0
  %3875 = vmatpush1.msra.mxu0 0.0
  %3876 = vmatprep.subr.mxu0 0.0
  %3877 = vmatpush1.msra.mxu0 0.0
  %3878 = vmatprep.subr.mxu0 0.0
  %3879 = vmatpush1.msra.mxu0 0.0
  %3880 = vmatprep.subr.mxu0 0.0
  %3881 = vmatpush1.msra.mxu0 0.0
  %3882 = vmatprep.subr.mxu0 0.0
  %3883 = vmatpush1.msra.mxu0 0.0
  %3884 = vmatprep.subr.mxu0 0.0
  %3885 = vmatpush1.msra.mxu0 0.0
  %3886 = vmatprep.subr.mxu0 0.0
  %3887 = vmatpush1.msra.mxu0 0.0
  %3888 = vmatprep.subr.mxu0 0.0
  %3889 = vmatpush1.msra.mxu0 0.0
  %3890 = vmatprep.subr.mxu0 0.0
  %3891 = vmatpush1.msra.mxu0 0.0
  %3892 = vmatprep.subr.mxu0 0.0
  %3893 = vmatpush1.msra.mxu0 0.0
  %3894 = vmatprep.subr.mxu0 0.0
  %3895 = vmatpush1.msra.mxu0 0.0
  %3896 = vmatprep.subr.mxu0 0.0
  %3897 = vmatpush1.msra.mxu0 0.0
  %3898 = vmatprep.subr.mxu0 0.0
  %3899 = vmatpush1.msra.mxu0 0.0
  %3900 = vmatprep.subr.mxu0 0.0
  %3901 = vmatpush1.msra.mxu0 0.0
  %3902 = vmatprep.subr.mxu0 0.0
  %3903 = vmatpush1.msra.mxu0 0.0
  %3904 = vmatprep.subr.mxu0 0.0
  %3905 = vmatpush1.msra.mxu0 0.0
  %3906 = vmatprep.subr.mxu0 0.0
  %3907 = vmatpush1.msra.mxu0 0.0
  %3908 = vmatprep.subr.mxu0 0.0
  %3909 = vmatpush1.msra.mxu0 0.0
  %3910 = vmatprep.subr.mxu0 0.0
  %3911 = vmatpush1.msra.mxu0 0.0
  %3912 = vmatprep.subr.mxu0 0.0
  %3913 = vmatpush1.msra.mxu0 0.0
  %3914 = vmatprep.subr.mxu0 0.0
  %3915 = vmatpush1.msra.mxu0 0.0
  %3916 = vmatprep.mubr.f32.mxu0 0.0
  %3917 = vmatmul.mubr.f32.gmra.mrb[0].mxu0 %v3850
  %v3918 = vpop.f32.mrb[0].mxu0
  %v3919 = vadd.f32 0.0, %v3918
  %v3920 = vpop.f32.mrb[0].mxu0
  %3921 = vdwg.mxu0
  %v3923 = vsel %vm494, %v3554, 0
  %3925 = vmatprep.subr.mxu0 0.0
  %3926 = vmatpush1.msra.mxu0 %v2845
  %3927 = vmatprep.subr.mxu0 0.0
  %3928 = vmatpush1.msra.mxu0 0.0
  %3929 = vmatprep.subr.mxu0 0.0
  %3930 = vmatpush1.msra.mxu0 0.0
  %3931 = vmatprep.subr.mxu0 0.0
  %3932 = vmatpush1.msra.mxu0 0.0
  %3933 = vmatprep.subr.mxu0 0.0
  %3934 = vmatpush1.msra.mxu0 0.0
  %3935 = vmatprep.subr.mxu0 0.0
  %3936 = vmatpush1.msra.mxu0 0.0
  %3937 = vmatprep.subr.mxu0 0.0
  %3938 = vmatpush1.msra.mxu0 0.0
  %3939 = vmatprep.subr.mxu0 0.0
  %3940 = vmatpush1.msra.mxu0 0.0
  %3941 = vmatprep.subr.mxu0 0.0
  %3942 = vmatpush1.msra.mxu0 0.0
  %3943 = vmatprep.subr.mxu0 0.0
  %3944 = vmatpush1.msra.mxu0 0.0
  %3945 = vmatprep.subr.mxu0 0.0
  %3946 = vmatpush1.msra.mxu0 0.0
  %3947 = vmatprep.subr.mxu0 0.0
  %3948 = vmatpush1.msra.mxu0 0.0
  %3949 = vmatprep.subr.mxu0 0.0
  %3950 = vmatpush1.msra.mxu0 0.0
  %3951 = vmatprep.subr.mxu0 0.0
  %3952 = vmatpush1.msra.mxu0 0.0
  %3953 = vmatprep.subr.mxu0 0.0
  %3954 = vmatpush1.msra.mxu0 0.0
  %3955 = vmatprep.subr.mxu0 0.0
  %3956 = vmatpush1.msra.mxu0 0.0
  %3957 = vmatprep.subr.mxu0 0.0
  %3958 = vmatpush1.msra.mxu0 0.0
  %3959 = vmatprep.subr.mxu0 0.0
  %3960 = vmatpush1.msra.mxu0 0.0
  %3961 = vmatprep.subr.mxu0 0.0
  %3962 = vmatpush1.msra.mxu0 0.0
  %3963 = vmatprep.subr.mxu0 0.0
  %3964 = vmatpush1.msra.mxu0 0.0
  %3965 = vmatprep.subr.mxu0 0.0
  %3966 = vmatpush1.msra.mxu0 0.0
  %3967 = vmatprep.subr.mxu0 0.0
  %3968 = vmatpush1.msra.mxu0 0.0
  %3969 = vmatprep.subr.mxu0 0.0
  %3970 = vmatpush1.msra.mxu0 0.0
  %3971 = vmatprep.subr.mxu0 0.0
  %3972 = vmatpush1.msra.mxu0 0.0
  %3973 = vmatprep.subr.mxu0 0.0
  %3974 = vmatpush1.msra.mxu0 0.0
  %3975 = vmatprep.subr.mxu0 0.0
  %3976 = vmatpush1.msra.mxu0 0.0
  %3977 = vmatprep.subr.mxu0 0.0
  %3978 = vmatpush1.msra.mxu0 0.0
  %3979 = vmatprep.subr.mxu0 0.0
  %3980 = vmatpush1.msra.mxu0 0.0
  %3981 = vmatprep.subr.mxu0 0.0
  %3982 = vmatpush1.msra.mxu0 0.0
  %3983 = vmatprep.subr.mxu0 0.0
  %3984 = vmatpush1.msra.mxu0 0.0
  %3985 = vmatprep.subr.mxu0 0.0
  %3986 = vmatpush1.msra.mxu0 0.0
  %3987 = vmatprep.subr.mxu0 0.0
  %3988 = vmatpush1.msra.mxu0 0.0
  %3989 = vmatprep.mubr.f32.mxu0 0.0
  %3990 = vmatmul.mubr.f32.gmra.mrb[0].mxu0 %v3923
  %v3991 = vpop.f32.mrb[0].mxu0
  %v3992 = vadd.f32 0.0, %v3991
  %v3993 = vpop.f32.mrb[0].mxu0
  %3994 = vdwg.mxu0
  %v3996 = vsel %vm494, %v3555, 0
  %3998 = vmatprep.subr.mxu0 0.0
  %3999 = vmatpush1.msra.mxu0 %v2848
  %4000 = vmatprep.subr.mxu0 0.0
  %4001 = vmatpush1.msra.mxu0 0.0
  %4002 = vmatprep.subr.mxu0 0.0
  %4003 = vmatpush1.msra.mxu0 0.0
  %4004 = vmatprep.subr.mxu0 0.0
  %4005 = vmatpush1.msra.mxu0 0.0
  %4006 = vmatprep.subr.mxu0 0.0
  %4007 = vmatpush1.msra.mxu0 0.0
  %4008 = vmatprep.subr.mxu0 0.0
  %4009 = vmatpush1.msra.mxu0 0.0
  %4010 = vmatprep.subr.mxu0 0.0
  %4011 = vmatpush1.msra.mxu0 0.0
  %4012 = vmatprep.subr.mxu0 0.0
  %4013 = vmatpush1.msra.mxu0 0.0
  %4014 = vmatprep.subr.mxu0 0.0
  %4015 = vmatpush1.msra.mxu0 0.0
  %4016 = vmatprep.subr.mxu0 0.0
  %4017 = vmatpush1.msra.mxu0 0.0
  %4018 = vmatprep.subr.mxu0 0.0
  %4019 = vmatpush1.msra.mxu0 0.0
  %4020 = vmatprep.subr.mxu0 0.0
  %4021 = vmatpush1.msra.mxu0 0.0
  %4022 = vmatprep.subr.mxu0 0.0
  %4023 = vmatpush1.msra.mxu0 0.0
  %4024 = vmatprep.subr.mxu0 0.0
  %4025 = vmatpush1.msra.mxu0 0.0
  %4026 = vmatprep.subr.mxu0 0.0
  %4027 = vmatpush1.msra.mxu0 0.0
  %4028 = vmatprep.subr.mxu0 0.0
  %4029 = vmatpush1.msra.mxu0 0.0
  %4030 = vmatprep.subr.mxu0 0.0
  %4031 = vmatpush1.msra.mxu0 0.0
  %4032 = vmatprep.subr.mxu0 0.0
  %4033 = vmatpush1.msra.mxu0 0.0
  %4034 = vmatprep.subr.mxu0 0.0
  %4035 = vmatpush1.msra.mxu0 0.0
  %4036 = vmatprep.subr.mxu0 0.0
  %4037 = vmatpush1.msra.mxu0 0.0
  %4038 = vmatprep.subr.mxu0 0.0
  %4039 = vmatpush1.msra.mxu0 0.0
  %4040 = vmatprep.subr.mxu0 0.0
  %4041 = vmatpush1.msra.mxu0 0.0
  %4042 = vmatprep.subr.mxu0 0.0
  %4043 = vmatpush1.msra.mxu0 0.0
  %4044 = vmatprep.subr.mxu0 0.0
  %4045 = vmatpush1.msra.mxu0 0.0
  %4046 = vmatprep.subr.mxu0 0.0
  %4047 = vmatpush1.msra.mxu0 0.0
  %4048 = vmatprep.subr.mxu0 0.0
  %4049 = vmatpush1.msra.mxu0 0.0
  %4050 = vmatprep.subr.mxu0 0.0
  %4051 = vmatpush1.msra.mxu0 0.0
  %4052 = vmatprep.subr.mxu0 0.0
  %4053 = vmatpush1.msra.mxu0 0.0
  %4054 = vmatprep.subr.mxu0 0.0
  %4055 = vmatpush1.msra.mxu0 0.0
  %4056 = vmatprep.subr.mxu0 0.0
  %4057 = vmatpush1.msra.mxu0 0.0
  %4058 = vmatprep.subr.mxu0 0.0
  %4059 = vmatpush1.msra.mxu0 0.0
  %4060 = vmatprep.subr.mxu0 0.0
  %4061 = vmatpush1.msra.mxu0 0.0
  %4062 = vmatprep.mubr.f32.mxu0 0.0
  %4063 = vmatmul.mubr.f32.gmra.mrb[0].mxu0 %v3996
  %v4064 = vpop.f32.mrb[0].mxu0
  %v4065 = vadd.f32 0.0, %v4064
  %v4066 = vpop.f32.mrb[0].mxu0
  %4067 = vdwg.mxu0
  %v4069 = vsel %vm494, %v3556, 0
  %4071 = vmatprep.subr.mxu0 0.0
  %4072 = vmatpush1.msra.mxu0 %v2851
  %4073 = vmatprep.subr.mxu0 0.0
  %4074 = vmatpush1.msra.mxu0 0.0
  %4075 = vmatprep.subr.mxu0 0.0
  %4076 = vmatpush1.msra.mxu0 0.0
  %4077 = vmatprep.subr.mxu0 0.0
  %4078 = vmatpush1.msra.mxu0 0.0
  %4079 = vmatprep.subr.mxu0 0.0
  %4080 = vmatpush1.msra.mxu0 0.0
  %4081 = vmatprep.subr.mxu0 0.0
  %4082 = vmatpush1.msra.mxu0 0.0
  %4083 = vmatprep.subr.mxu0 0.0
  %4084 = vmatpush1.msra.mxu0 0.0
  %4085 = vmatprep.subr.mxu0 0.0
  %4086 = vmatpush1.msra.mxu0 0.0
  %4087 = vmatprep.subr.mxu0 0.0
  %4088 = vmatpush1.msra.mxu0 0.0
  %4089 = vmatprep.subr.mxu0 0.0
  %4090 = vmatpush1.msra.mxu0 0.0
  %4091 = vmatprep.subr.mxu0 0.0
  %4092 = vmatpush1.msra.mxu0 0.0
  %4093 = vmatprep.subr.mxu0 0.0
  %4094 = vmatpush1.msra.mxu0 0.0
  %4095 = vmatprep.subr.mxu0 0.0
  %4096 = vmatpush1.msra.mxu0 0.0
  %4097 = vmatprep.subr.mxu0 0.0
  %4098 = vmatpush1.msra.mxu0 0.0
  %4099 = vmatprep.subr.mxu0 0.0
  %4100 = vmatpush1.msra.mxu0 0.0
  %4101 = vmatprep.subr.mxu0 0.0
  %4102 = vmatpush1.msra.mxu0 0.0
  %4103 = vmatprep.subr.mxu0 0.0
  %4104 = vmatpush1.msra.mxu0 0.0
  %4105 = vmatprep.subr.mxu0 0.0
  %4106 = vmatpush1.msra.mxu0 0.0
  %4107 = vmatprep.subr.mxu0 0.0
  %4108 = vmatpush1.msra.mxu0 0.0
  %4109 = vmatprep.subr.mxu0 0.0
  %4110 = vmatpush1.msra.mxu0 0.0
  %4111 = vmatprep.subr.mxu0 0.0
  %4112 = vmatpush1.msra.mxu0 0.0
  %4113 = vmatprep.subr.mxu0 0.0
  %4114 = vmatpush1.msra.mxu0 0.0
  %4115 = vmatprep.subr.mxu0 0.0
  %4116 = vmatpush1.msra.mxu0 0.0
  %4117 = vmatprep.subr.mxu0 0.0
  %4118 = vmatpush1.msra.mxu0 0.0
  %4119 = vmatprep.subr.mxu0 0.0
  %4120 = vmatpush1.msra.mxu0 0.0
  %4121 = vmatprep.subr.mxu0 0.0
  %4122 = vmatpush1.msra.mxu0 0.0
  %4123 = vmatprep.subr.mxu0 0.0
  %4124 = vmatpush1.msra.mxu0 0.0
  %4125 = vmatprep.subr.mxu0 0.0
  %4126 = vmatpush1.msra.mxu0 0.0
  %4127 = vmatprep.subr.mxu0 0.0
  %4128 = vmatpush1.msra.mxu0 0.0
  %4129 = vmatprep.subr.mxu0 0.0
  %4130 = vmatpush1.msra.mxu0 0.0
  %4131 = vmatprep.subr.mxu0 0.0
  %4132 = vmatpush1.msra.mxu0 0.0
  %4133 = vmatprep.subr.mxu0 0.0
  %4134 = vmatpush1.msra.mxu0 0.0
  %4135 = vmatprep.mubr.f32.mxu0 0.0
  %4136 = vmatmul.mubr.f32.gmra.mrb[0].mxu0 %v4069
  %v4137 = vpop.f32.mrb[0].mxu0
  %v4138 = vadd.f32 0.0, %v4137
  %v4139 = vpop.f32.mrb[0].mxu0
  %4140 = vdwg.mxu0
  %v4141 = vand.u32 2147483647, %v3627
  %v4142 = vand.u32 2147483647, %v3700
  %v4143 = vand.u32 2147483647, %v3773
  %v4144 = vand.u32 2147483647, %v3846
  %v4145 = vand.u32 2147483647, %v3919
  %v4146 = vand.u32 2147483647, %v3992
  %v4147 = vand.u32 2147483647, %v4065
  %v4148 = vand.u32 2147483647, %v4138
  %v4149 = vsel %vm494, %v4141, -inf
  %4150 = vmax.xlane.f32.xlu0 %v4149
  %v4151 = vpop.xlane.xlu0 %4150
  %v4152 = vsel %vm494, %v4142, -inf
  %4153 = vmax.xlane.f32.xlu0 %v4152
  %v4154 = vpop.xlane.xlu0 %4153
  %v4155 = vsel %vm494, %v4143, -inf
  %4156 = vmax.xlane.f32.xlu0 %v4155
  %v4157 = vpop.xlane.xlu0 %4156
  %v4158 = vsel %vm494, %v4144, -inf
  %4159 = vmax.xlane.f32.xlu0 %v4158
  %v4160 = vpop.xlane.xlu0 %4159
  %v4161 = vsel %vm494, %v4145, -inf
  %4162 = vmax.xlane.f32.xlu0 %v4161
  %v4163 = vpop.xlane.xlu0 %4162
  %v4164 = vsel %vm494, %v4146, -inf
  %4165 = vmax.xlane.f32.xlu0 %v4164
  %v4166 = vpop.xlane.xlu0 %4165
  %v4167 = vsel %vm494, %v4147, -inf
  %4168 = vmax.xlane.f32.xlu0 %v4167
  %v4169 = vpop.xlane.xlu0 %4168
  %v4170 = vsel %vm494, %v4148, -inf
  %4171 = vmax.xlane.f32.xlu0 %v4170
  %v4172 = vpop.xlane.xlu0 %4171
  %v4173 = vrot.slane %v4151, 4
  %v4174 = vmax.f32 %v4151, %v4173
  %v4175 = vrot.slane %v4174, 2
  %v4176 = vmax.f32 %v4174, %v4175
  %v4177 = vrot.slane %v4176, 1
  %v4178 = vmax.f32 %v4176, %v4177
  %v4179 = vrot.slane %v4154, 4
  %v4180 = vmax.f32 %v4154, %v4179
  %v4181 = vrot.slane %v4180, 2
  %v4182 = vmax.f32 %v4180, %v4181
  %v4183 = vrot.slane %v4182, 1
  %v4184 = vmax.f32 %v4182, %v4183
  %v4185 = vrot.slane %v4157, 4
  %v4186 = vmax.f32 %v4157, %v4185
  %v4187 = vrot.slane %v4186, 2
  %v4188 = vmax.f32 %v4186, %v4187
  %v4189 = vrot.slane %v4188, 1
  %v4190 = vmax.f32 %v4188, %v4189
  %v4191 = vrot.slane %v4160, 4
  %v4192 = vmax.f32 %v4160, %v4191
  %v4193 = vrot.slane %v4192, 2
  %v4194 = vmax.f32 %v4192, %v4193
  %v4195 = vrot.slane %v4194, 1
  %v4196 = vmax.f32 %v4194, %v4195
  %v4197 = vrot.slane %v4163, 4
  %v4198 = vmax.f32 %v4163, %v4197
  %v4199 = vrot.slane %v4198, 2
  %v4200 = vmax.f32 %v4198, %v4199
  %v4201 = vrot.slane %v4200, 1
  %v4202 = vmax.f32 %v4200, %v4201
  %v4203 = vrot.slane %v4166, 4
  %v4204 = vmax.f32 %v4166, %v4203
  %v4205 = vrot.slane %v4204, 2
  %v4206 = vmax.f32 %v4204, %v4205
  %v4207 = vrot.slane %v4206, 1
  %v4208 = vmax.f32 %v4206, %v4207
  %v4209 = vrot.slane %v4169, 4
  %v4210 = vmax.f32 %v4169, %v4209
  %v4211 = vrot.slane %v4210, 2
  %v4212 = vmax.f32 %v4210, %v4211
  %v4213 = vrot.slane %v4212, 1
  %v4214 = vmax.f32 %v4212, %v4213
  %v4215 = vrot.slane %v4172, 4
  %v4216 = vmax.f32 %v4172, %v4215
  %v4217 = vrot.slane %v4216, 2
  %v4218 = vmax.f32 %v4216, %v4217
  %v4219 = vrot.slane %v4218, 1
  %v4220 = vmax.f32 %v4218, %v4219
  %v4221 = vmax.f32 %v4178, %v4202
  %v4222 = vmax.f32 %v4184, %v4208
  %v4223 = vmax.f32 %v4190, %v4214
  %v4224 = vmax.f32 %v4196, %v4220
  %v4225 = vmax.f32 %v4221, %v4222
  %v4226 = vmax.f32 %v4223, %v4224
  %v4227 = vmax.f32 %v4225, %v4226
  %v4228 = vmul.f32 %v4227, 2.0
  %v4229 = vmul.f32 %v4228, %v152
  %vm4230 = vcmp.eq.f32.partialorder %v4229, 0.0
  %v4231 = vsel %vm4230, 1e-05, %v4229
  %v4232 = vrcp.pop %v4231
  %v4233 = vmul.f32 1.0, %v4232
  %v4234 = vmul.f32 %v3627, %v4233
  %v4235 = vmul.f32 %v3700, %v4233
  %v4236 = vmul.f32 %v3773, %v4233
  %v4237 = vmul.f32 %v3846, %v4233
  %v4238 = vmul.f32 %v3919, %v4233
  %v4239 = vmul.f32 %v3992, %v4233
  %v4240 = vmul.f32 %v4065, %v4233
  %v4241 = vmul.f32 %v4138, %v4233
  %v4242 = vround.ne.pseudo %v4234
  %v4243 = vround.ne.pseudo %v4235
  %v4244 = vround.ne.pseudo %v4236
  %v4245 = vround.ne.pseudo %v4237
  %v4246 = vround.ne.pseudo %v4238
  %v4247 = vround.ne.pseudo %v4239
  %v4248 = vround.ne.pseudo %v4240
  %v4249 = vround.ne.pseudo %v4241
  %v4250 = vmax.f32 %v4242, -256.0
  %v4251 = vmax.f32 %v4243, -256.0
  %v4252 = vmax.f32 %v4244, -256.0
  %v4253 = vmax.f32 %v4245, -256.0
  %v4254 = vmax.f32 %v4246, -256.0
  %v4255 = vmax.f32 %v4247, -256.0
  %v4256 = vmax.f32 %v4248, -256.0
  %v4257 = vmax.f32 %v4249, -256.0
  %v4258 = vmin.f32 %v4250, 255.0
  %v4259 = vmin.f32 %v4251, 255.0
  %v4260 = vmin.f32 %v4252, 255.0
  %v4261 = vmin.f32 %v4253, 255.0
  %v4262 = vmin.f32 %v4254, 255.0
  %v4263 = vmin.f32 %v4255, 255.0
  %v4264 = vmin.f32 %v4256, 255.0
  %v4265 = vmin.f32 %v4257, 255.0
  %v4266 = vmul.f32 %v4258, %v4231
  %v4267 = vmul.f32 %v4259, %v4231
  %v4268 = vmul.f32 %v4260, %v4231
  %v4269 = vmul.f32 %v4261, %v4231
  %v4270 = vmul.f32 %v4262, %v4231
  %v4271 = vmul.f32 %v4263, %v4231
  %v4272 = vmul.f32 %v4264, %v4231
  %v4273 = vmul.f32 %v4265, %v4231
  %4275 = vrot.lane.b32.xlu0 %v4267, 8
  %v4276 = vpop.permute.xlu0 %4275
  %4279 = vrot.lane.b32.xlu0 %v4268, 16
  %v4280 = vpop.permute.xlu0 %4279
  %4283 = vrot.lane.b32.xlu0 %v4269, 24
  %v4284 = vpop.permute.xlu0 %4283
  %v4286 = vsel %vm494, %v4266, %v4276
  %v4287 = vsel %vm1985, %v4286, %v4280
  %v4288 = vsel %vm1987, %v4287, %v4284
  %4290 = vrot.lane.b32.xlu0 %v4271, 8
  %v4291 = vpop.permute.xlu0 %4290
  %4294 = vrot.lane.b32.xlu0 %v4272, 16
  %v4295 = vpop.permute.xlu0 %4294
  %4298 = vrot.lane.b32.xlu0 %v4273, 24
  %v4299 = vpop.permute.xlu0 %4298
  %v4301 = vsel %vm494, %v4270, %v4291
  %v4302 = vsel %vm1985, %v4301, %v4295
  %v4303 = vsel %vm1987, %v4302, %v4299
  %s4304 = scalar_lea.vmem %s10, 32
  %v4305 = vld [vmem:[%s4304] sm:$0xff]
  %v4306 = vld [vmem:[%s4304 + $0x8] sm:$0xff]
  %v4307 = vld [vmem:[%s4304 + $0x10] sm:$0xff]
  %v4308 = vld [vmem:[%s4304 + $0x18] sm:$0xff]
  %v4310 = vsel %vm77, %v4288, 0
  %v4313 = vsel %vm77, %v4303, 0
  %4315 = vmatprep.subr.mxu0 0.0
  %4316 = vmatpush1.msra.mxu0 %v4305
  %4317 = vmatprep.subr.mxu0 0.0
  %4318 = vmatpush1.msra.mxu0 %v4306
  %4319 = vmatprep.subr.mxu0 0.0
  %4320 = vmatpush1.msra.mxu0 %v4307
  %4321 = vmatprep.subr.mxu0 0.0
  %4322 = vmatpush1.msra.mxu0 %v4308
  %4323 = vmatprep.subr.mxu0 0.0
  %4324 = vmatpush1.msra.mxu0 0.0
  %4325 = vmatprep.subr.mxu0 0.0
  %4326 = vmatpush1.msra.mxu0 0.0
  %4327 = vmatprep.subr.mxu0 0.0
  %4328 = vmatpush1.msra.mxu0 0.0
  %4329 = vmatprep.subr.mxu0 0.0
  %4330 = vmatpush1.msra.mxu0 0.0
  %4331 = vmatprep.subr.mxu0 0.0
  %4332 = vmatpush1.msra.mxu0 0.0
  %4333 = vmatprep.subr.mxu0 0.0
  %4334 = vmatpush1.msra.mxu0 0.0
  %4335 = vmatprep.subr.mxu0 0.0
  %4336 = vmatpush1.msra.mxu0 0.0
  %4337 = vmatprep.subr.mxu0 0.0
  %4338 = vmatpush1.msra.mxu0 0.0
  %4339 = vmatprep.subr.mxu0 0.0
  %4340 = vmatpush1.msra.mxu0 0.0
  %4341 = vmatprep.subr.mxu0 0.0
  %4342 = vmatpush1.msra.mxu0 0.0
  %4343 = vmatprep.subr.mxu0 0.0
  %4344 = vmatpush1.msra.mxu0 0.0
  %4345 = vmatprep.subr.mxu0 0.0
  %4346 = vmatpush1.msra.mxu0 0.0
  %4347 = vmatprep.subr.mxu0 0.0
  %4348 = vmatpush1.msra.mxu0 0.0
  %4349 = vmatprep.subr.mxu0 0.0
  %4350 = vmatpush1.msra.mxu0 0.0
  %4351 = vmatprep.subr.mxu0 0.0
  %4352 = vmatpush1.msra.mxu0 0.0
  %4353 = vmatprep.subr.mxu0 0.0
  %4354 = vmatpush1.msra.mxu0 0.0
  %4355 = vmatprep.subr.mxu0 0.0
  %4356 = vmatpush1.msra.mxu0 0.0
  %4357 = vmatprep.subr.mxu0 0.0
  %4358 = vmatpush1.msra.mxu0 0.0
  %4359 = vmatprep.subr.mxu0 0.0
  %4360 = vmatpush1.msra.mxu0 0.0
  %4361 = vmatprep.subr.mxu0 0.0
  %4362 = vmatpush1.msra.mxu0 0.0
  %4363 = vmatprep.subr.mxu0 0.0
  %4364 = vmatpush1.msra.mxu0 0.0
  %4365 = vmatprep.subr.mxu0 0.0
  %4366 = vmatpush1.msra.mxu0 0.0
  %4367 = vmatprep.subr.mxu0 0.0
  %4368 = vmatpush1.msra.mxu0 0.0
  %4369 = vmatprep.subr.mxu0 0.0
  %4370 = vmatpush1.msra.mxu0 0.0
  %4371 = vmatprep.subr.mxu0 0.0
  %4372 = vmatpush1.msra.mxu0 0.0
  %4373 = vmatprep.subr.mxu0 0.0
  %4374 = vmatpush1.msra.mxu0 0.0
  %4375 = vmatprep.subr.mxu0 0.0
  %4376 = vmatpush1.msra.mxu0 0.0
  %4377 = vmatprep.subr.mxu0 0.0
  %4378 = vmatpush1.msra.mxu0 0.0
  %4379 = vmatprep.mubr.f32.mxu0 0.0
  %4380 = vmatmul.mubr.f32.gmra.mrb[0].mxu0 %v4310
  %v4381 = vpop.f32.mrb[0].mxu0
  %v4382 = vadd.f32 0.0, %v4381
  %v4383 = vpop.f32.mrb[0].mxu0
  %4384 = vmatprep.mubr.f32.mxu0 0.0
  %4385 = vmatmul.mubr.f32.gmra.mrb[0].mxu0 %v4313
  %v4386 = vpop.f32.mrb[0].mxu0
  %v4387 = vadd.f32 0.0, %v4386
  %v4388 = vpop.f32.mrb[0].mxu0
  %4389 = vdwg.mxu0
  %v4390 = vadd.f32 %v2428, %v4382
  %v4391 = vadd.f32 %v2429, %v4387
  %s4392 = scalar_lea.vmem %s11, 1
  %v4393 = vld [vmem:[%s4392] sm:$0x1]
  %v4395 = vlaneseq
  %v4396 = vshrl.u32 %v4395, 7
  %v4397 = vsub.s32 0, %v4396
  %v4398 = vrot.slane %v4393, %v4397
  %v4400 = vadd.f32 %v4390, %v4398
  %v4401 = vadd.f32 %v4391, %v4398
  %s4402 = scalar_lea.vmem %s12, 1
  %v4403 = vld [vmem:[%s4402] sm:$0x1]
  %s4404 = scalar_lea.vmem %s13, 1
  %v4405 = vld [vmem:[%s4404] sm:$0x1]
  %v4406 = vsel %vm77, %v4400, 0.0
  %4407 = vadd.xlane.f32.xlu0 %v4406
  %v4408 = vpop.xlane.xlu0 %4407
  %v4409 = vsel %vm77, %v4401, 0.0
  %4410 = vadd.xlane.f32.xlu0 %v4409
  %v4411 = vpop.xlane.xlu0 %4410
  %v4412 = vmul.f32 %v4408, %v84
  %v4413 = vmul.f32 %v4411, %v84
  %v4414 = vsub.f32 %v4400, %v4412
  %v4415 = vsub.f32 %v4401, %v4413
  %v4416 = vmul.f32 %v4414, %v4414
  %v4417 = vmul.f32 %v4415, %v4415
  %v4418 = vsel %vm77, %v4416, 0.0
  %4419 = vadd.xlane.f32.xlu0 %v4418
  %v4420 = vpop.xlane.xlu0 %4419
  %v4421 = vsel %vm77, %v4417, 0.0
  %4422 = vadd.xlane.f32.xlu0 %v4421
  %v4423 = vpop.xlane.xlu0 %4422
  %v4424 = vmul.f32 %v4420, %v97
  %v4425 = vmul.f32 %v4423, %v97
  %v4427 = vlaneseq
  %v4428 = vshrl.u32 %v4427, 7
  %v4429 = vsub.s32 0, %v4428
  %v4430 = vrot.slane %v4403, %v4429
  %v4432 = vmul.f32 %v4430, %v4414
  %v4433 = vmul.f32 %v4430, %v4415
  %v4434 = vrsqrt.pop %v4424
  %v4435 = vmul.f32 %v4424, %v4434
  %vm4436 = vcmp.eq.f32.partialorder %v4424, inf
  %v4437 = vsel %vm4436, %v4424, %v4435
  %vm4438 = vcmp.eq.f32.partialorder %v4424, 0.0
  %v4439 = vand.u32 %v4424, 2147483648
  %v4440 = vsel %vm4438, %v4439, %v4437
  %v4441 = vrsqrt.pop %v4425
  %v4442 = vmul.f32 %v4425, %v4441
  %vm4443 = vcmp.eq.f32.partialorder %v4425, inf
  %v4444 = vsel %vm4443, %v4425, %v4442
  %vm4445 = vcmp.eq.f32.partialorder %v4425, 0.0
  %v4446 = vand.u32 %v4425, 2147483648
  %v4447 = vsel %vm4445, %v4446, %v4444
  %v4448 = vadd.f32 %v4440, 1e-06
  %v4449 = vadd.f32 %v4447, 1e-06
  %v4450 = vrcp.pop %v4448
  %v4451 = vmul.f32 %v4432, %v4450
  %v4452 = vrcp.pop %v4449
  %v4453 = vmul.f32 %v4433, %v4452
  %v4455 = vlaneseq
  %v4456 = vshrl.u32 %v4455, 7
  %v4457 = vsub.s32 0, %v4456
  %v4458 = vrot.slane %v4405, %v4457
  %v4460 = vadd.f32 %v4451, %v4458
  %v4461 = vadd.f32 %v4453, %v4458
  %v4462 = vand.u32 2147483647, %v4460
  %v4463 = vand.u32 2147483647, %v4461
  %v4464 = vsel %vm77, %v4462, -inf
  %4465 = vmax.xlane.f32.xlu0 %v4464
  %v4466 = vpop.xlane.xlu0 %4465
  %v4467 = vsel %vm77, %v4463, -inf
  %4468 = vmax.xlane.f32.xlu0 %v4467
  %v4469 = vpop.xlane.xlu0 %4468
  %v4470 = vmax.f32 %v4466, %v4469
  %v4471 = vrot.slane %v4470, 4
  %v4472 = vmax.f32 %v4470, %v4471
  %v4473 = vrot.slane %v4472, 2
  %v4474 = vmax.f32 %v4472, %v4473
  %v4475 = vrot.slane %v4474, 1
  %v4476 = vmax.f32 %v4474, %v4475
  %v4477 = vmul.f32 %v4476, 2.0
  %v4478 = vmul.f32 %v4477, %v152
  %vm4479 = vcmp.eq.f32.partialorder %v4478, 0.0
  %v4480 = vsel %vm4479, 1e-05, %v4478
  %v4481 = vrcp.pop %v4480
  %v4482 = vmul.f32 1.0, %v4481
  %v4483 = vmul.f32 %v4460, %v4482
  %v4484 = vmul.f32 %v4461, %v4482
  %v4485 = vround.ne.pseudo %v4483
  %v4486 = vround.ne.pseudo %v4484
  %v4487 = vmax.f32 %v4485, -256.0
  %v4488 = vmax.f32 %v4486, -256.0
  %v4489 = vmin.f32 %v4487, 255.0
  %v4490 = vmin.f32 %v4488, 255.0
  %v4491 = vmul.f32 %v4489, %v4480
  %v4492 = vmul.f32 %v4490, %v4480
  %s4493 = scalar_lea.vmem %s14, 32
  %v4494 = vld [vmem:[%s4493] sm:$0xff]
  %v4495 = vld [vmem:[%s4493 + $0x8] sm:$0xff]
  %v4496 = vld [vmem:[%s4493 + $0x10] sm:$0xff]
  %v4497 = vld [vmem:[%s4493 + $0x18] sm:$0xff]
  %s4498 = scalar_lea.vmem %s15, 1
  %v4499 = vld [vmem:[%s4498] sm:$0x1]
  %v4501 = vlaneseq
  %v4502 = vshrl.u32 %v4501, 7
  %v4503 = vsub.s32 0, %v4502
  %v4504 = vrot.slane %v4499, %v4503
  %v4507 = vsel %vm77, %v4491, 0
  %v4510 = vsel %vm77, %v4492, 0
  %4512 = vmatprep.subr.mxu0 0.0
  %4513 = vmatpush1.msra.mxu0 %v4494
  %4514 = vmatprep.subr.mxu0 0.0
  %4515 = vmatpush1.msra.mxu0 %v4495
  %4516 = vmatprep.subr.mxu0 0.0
  %4517 = vmatpush1.msra.mxu0 %v4496
  %4518 = vmatprep.subr.mxu0 0.0
  %4519 = vmatpush1.msra.mxu0 %v4497
  %4520 = vmatprep.subr.mxu0 0.0
  %4521 = vmatpush1.msra.mxu0 0.0
  %4522 = vmatprep.subr.mxu0 0.0
  %4523 = vmatpush1.msra.mxu0 0.0
  %4524 = vmatprep.subr.mxu0 0.0
  %4525 = vmatpush1.msra.mxu0 0.0
  %4526 = vmatprep.subr.mxu0 0.0
  %4527 = vmatpush1.msra.mxu0 0.0
  %4528 = vmatprep.subr.mxu0 0.0
  %4529 = vmatpush1.msra.mxu0 0.0
  %4530 = vmatprep.subr.mxu0 0.0
  %4531 = vmatpush1.msra.mxu0 0.0
  %4532 = vmatprep.subr.mxu0 0.0
  %4533 = vmatpush1.msra.mxu0 0.0
  %4534 = vmatprep.subr.mxu0 0.0
  %4535 = vmatpush1.msra.mxu0 0.0
  %4536 = vmatprep.subr.mxu0 0.0
  %4537 = vmatpush1.msra.mxu0 0.0
  %4538 = vmatprep.subr.mxu0 0.0
  %4539 = vmatpush1.msra.mxu0 0.0
  %4540 = vmatprep.subr.mxu0 0.0
  %4541 = vmatpush1.msra.mxu0 0.0
  %4542 = vmatprep.subr.mxu0 0.0
  %4543 = vmatpush1.msra.mxu0 0.0
  %4544 = vmatprep.subr.mxu0 0.0
  %4545 = vmatpush1.msra.mxu0 0.0
  %4546 = vmatprep.subr.mxu0 0.0
  %4547 = vmatpush1.msra.mxu0 0.0
  %4548 = vmatprep.subr.mxu0 0.0
  %4549 = vmatpush1.msra.mxu0 0.0
  %4550 = vmatprep.subr.mxu0 0.0
  %4551 = vmatpush1.msra.mxu0 0.0
  %4552 = vmatprep.subr.mxu0 0.0
  %4553 = vmatpush1.msra.mxu0 0.0
  %4554 = vmatprep.subr.mxu0 0.0
  %4555 = vmatpush1.msra.mxu0 0.0
  %4556 = vmatprep.subr.mxu0 0.0
  %4557 = vmatpush1.msra.mxu0 0.0
  %4558 = vmatprep.subr.mxu0 0.0
  %4559 = vmatpush1.msra.mxu0 0.0
  %4560 = vmatprep.subr.mxu0 0.0
  %4561 = vmatpush1.msra.mxu0 0.0
  %4562 = vmatprep.subr.mxu0 0.0
  %4563 = vmatpush1.msra.mxu0 0.0
  %4564 = vmatprep.subr.mxu0 0.0
  %4565 = vmatpush1.msra.mxu0 0.0
  %4566 = vmatprep.subr.mxu0 0.0
  %4567 = vmatpush1.msra.mxu0 0.0
  %4568 = vmatprep.subr.mxu0 0.0
  %4569 = vmatpush1.msra.mxu0 0.0
  %4570 = vmatprep.subr.mxu0 0.0
  %4571 = vmatpush1.msra.mxu0 0.0
  %4572 = vmatprep.subr.mxu0 0.0
  %4573 = vmatpush1.msra.mxu0 0.0
  %4574 = vmatprep.subr.mxu0 0.0
  %4575 = vmatpush1.msra.mxu0 0.0
  %4576 = vmatprep.mubr.f32.mxu0 0.0
  %4577 = vmatmul.mubr.f32.gmra.mrb[0].mxu0 %v4507
  %v4578 = vpop.f32.mrb[0].mxu0
  %v4579 = vadd.f32 %v4504, %v4578
  %v4580 = vpop.f32.mrb[0].mxu0
  %4581 = vmatprep.mubr.f32.mxu0 0.0
  %4582 = vmatmul.mubr.f32.gmra.mrb[0].mxu0 %v4510
  %v4583 = vpop.f32.mrb[0].mxu0
  %v4584 = vadd.f32 %v4504, %v4583
  %v4585 = vpop.f32.mrb[0].mxu0
  %4586 = vdwg.mxu0
  %v4587 = vmul.f32 %v4579, 0.5
  %v4588 = vmul.f32 %v4584, 0.5
  %v4589 = vmul.f32 %v4579, %v4579
  %v4590 = vmul.f32 %v4584, %v4584
  %v4591 = vmul.f32 %v4579, %v4589
  %v4592 = vmul.f32 %v4584, %v4590
  %v4593 = vmul.f32 %v4591, 0.044715
  %v4594 = vmul.f32 %v4592, 0.044715
  %v4595 = vadd.f32 %v4579, %v4593
  %v4596 = vadd.f32 %v4584, %v4594
  %v4597 = vmul.f32 %v4595, 0.7978846
  %v4598 = vmul.f32 %v4596, 0.7978846
  %v4599 = vtanh.pop %v4597
  %v4600 = vtanh.pop %v4598
  %v4601 = vadd.f32 %v4599, 1.0
  %v4602 = vadd.f32 %v4600, 1.0
  %v4603 = vmul.f32 %v4587, %v4601
  %v4604 = vmul.f32 %v4588, %v4602
  %s4605 = scalar_lea.vmem %s16, 128
  %v4606 = vld [vmem:[%s4605] sm:$0xff]
  %v4607 = vld [vmem:[%s4605 + $0x8] sm:$0xff]
  %v4608 = vld [vmem:[%s4605 + $0x10] sm:$0xff]
  %v4609 = vld [vmem:[%s4605 + $0x18] sm:$0xff]
  %v4610 = vld [vmem:[%s4605 + $0x20] sm:$0xff]
  %v4611 = vld [vmem:[%s4605 + $0x28] sm:$0xff]
  %v4612 = vld [vmem:[%s4605 + $0x30] sm:$0xff]
  %v4613 = vld [vmem:[%s4605 + $0x38] sm:$0xff]
  %v4614 = vld [vmem:[%s4605 + $0x40] sm:$0xff]
  %v4615 = vld [vmem:[%s4605 + $0x48] sm:$0xff]
  %v4616 = vld [vmem:[%s4605 + $0x50] sm:$0xff]
  %v4617 = vld [vmem:[%s4605 + $0x58] sm:$0xff]
  %v4618 = vld [vmem:[%s4605 + $0x60] sm:$0xff]
  %v4619 = vld [vmem:[%s4605 + $0x68] sm:$0xff]
  %v4620 = vld [vmem:[%s4605 + $0x70] sm:$0xff]
  %v4621 = vld [vmem:[%s4605 + $0x78] sm:$0xff]
  %s4622 = scalar_lea.vmem %s17, 1
  %v4623 = vld [vmem:[%s4622] sm:$0x1]
  %v4625 = vlaneseq
  %v4626 = vshrl.u32 %v4625, 7
  %v4627 = vsub.s32 0, %v4626
  %v4628 = vrot.slane %v4623, %v4627
  %4630 = vmatprep.subr.mxu0 0.0
  %4631 = vmatpush1.msra.mxu0 %v4606
  %4632 = vmatprep.subr.mxu0 0.0
  %4633 = vmatpush1.msra.mxu0 %v4607
  %4634 = vmatprep.subr.mxu0 0.0
  %4635 = vmatpush1.msra.mxu0 %v4608
  %4636 = vmatprep.subr.mxu0 0.0
  %4637 = vmatpush1.msra.mxu0 %v4609
  %4638 = vmatprep.subr.mxu0 0.0
  %4639 = vmatpush1.msra.mxu0 %v4610
  %4640 = vmatprep.subr.mxu0 0.0
  %4641 = vmatpush1.msra.mxu0 %v4611
  %4642 = vmatprep.subr.mxu0 0.0
  %4643 = vmatpush1.msra.mxu0 %v4612
  %4644 = vmatprep.subr.mxu0 0.0
  %4645 = vmatpush1.msra.mxu0 %v4613
  %4646 = vmatprep.subr.mxu0 0.0
  %4647 = vmatpush1.msra.mxu0 %v4614
  %4648 = vmatprep.subr.mxu0 0.0
  %4649 = vmatpush1.msra.mxu0 %v4615
  %4650 = vmatprep.subr.mxu0 0.0
  %4651 = vmatpush1.msra.mxu0 %v4616
  %4652 = vmatprep.subr.mxu0 0.0
  %4653 = vmatpush1.msra.mxu0 %v4617
  %4654 = vmatprep.subr.mxu0 0.0
  %4655 = vmatpush1.msra.mxu0 %v4618
  %4656 = vmatprep.subr.mxu0 0.0
  %4657 = vmatpush1.msra.mxu0 %v4619
  %4658 = vmatprep.subr.mxu0 0.0
  %4659 = vmatpush1.msra.mxu0 %v4620
  %4660 = vmatprep.subr.mxu0 0.0
  %4661 = vmatpush1.msra.mxu0 %v4621
  %4662 = vmatprep.subr.mxu0 0.0
  %4663 = vmatpush1.msra.mxu0 0.0
  %4664 = vmatprep.subr.mxu0 0.0
  %4665 = vmatpush1.msra.mxu0 0.0
  %4666 = vmatprep.subr.mxu0 0.0
  %4667 = vmatpush1.msra.mxu0 0.0
  %4668 = vmatprep.subr.mxu0 0.0
  %4669 = vmatpush1.msra.mxu0 0.0
  %4670 = vmatprep.subr.mxu0 0.0
  %4671 = vmatpush1.msra.mxu0 0.0
  %4672 = vmatprep.subr.mxu0 0.0
  %4673 = vmatpush1.msra.mxu0 0.0
  %4674 = vmatprep.subr.mxu0 0.0
  %4675 = vmatpush1.msra.mxu0 0.0
  %4676 = vmatprep.subr.mxu0 0.0
  %4677 = vmatpush1.msra.mxu0 0.0
  %4678 = vmatprep.subr.mxu0 0.0
  %4679 = vmatpush1.msra.mxu0 0.0
  %4680 = vmatprep.subr.mxu0 0.0
  %4681 = vmatpush1.msra.mxu0 0.0
  %4682 = vmatprep.subr.mxu0 0.0
  %4683 = vmatpush1.msra.mxu0 0.0
  %4684 = vmatprep.subr.mxu0 0.0
  %4685 = vmatpush1.msra.mxu0 0.0
  %4686 = vmatprep.subr.mxu0 0.0
  %4687 = vmatpush1.msra.mxu0 0.0
  %4688 = vmatprep.subr.mxu0 0.0
  %4689 = vmatpush1.msra.mxu0 0.0
  %4690 = vmatprep.subr.mxu0 0.0
  %4691 = vmatpush1.msra.mxu0 0.0
  %4692 = vmatprep.subr.mxu0 0.0
  %4693 = vmatpush1.msra.mxu0 0.0
  %4694 = vmatprep.mubr.f32.mxu0 0.0
  %4695 = vmatmul.mubr.f32.gmra.mrb[0].mxu0 %v4603
  %v4696 = vpop.f32.mrb[0].mxu0
  %v4697 = vadd.f32 %v4628, %v4696
  %v4698 = vpop.f32.mrb[0].mxu0
  %4699 = vmatprep.mubr.f32.mxu0 0.0
  %4700 = vmatmul.mubr.f32.gmra.mrb[0].mxu0 %v4604
  %v4701 = vpop.f32.mrb[0].mxu0
  %v4702 = vadd.f32 %v4628, %v4701
  %v4703 = vpop.f32.mrb[0].mxu0
  %4704 = vdwg.mxu0
  %v4705 = vand.u32 2147483647, %v4697
  %v4706 = vand.u32 2147483647, %v4702
  %v4707 = vsel %vm77, %v4705, -inf
  %4708 = vmax.xlane.f32.xlu0 %v4707
  %v4709 = vpop.xlane.xlu0 %4708
  %v4710 = vsel %vm77, %v4706, -inf
  %4711 = vmax.xlane.f32.xlu0 %v4710
  %v4712 = vpop.xlane.xlu0 %4711
  %v4713 = vmax.f32 %v4709, %v4712
  %v4714 = vrot.slane %v4713, 4
  %v4715 = vmax.f32 %v4713, %v4714
  %v4716 = vrot.slane %v4715, 2
  %v4717 = vmax.f32 %v4715, %v4716
  %v4718 = vrot.slane %v4717, 1
  %v4719 = vmax.f32 %v4717, %v4718
  %v4720 = vmul.f32 %v4719, 2.0
  %v4721 = vmul.f32 %v4720, %v152
  %vm4722 = vcmp.eq.f32.partialorder %v4721, 0.0
  %v4723 = vsel %vm4722, 1e-05, %v4721
  %v4724 = vrcp.pop %v4723
  %v4725 = vmul.f32 1.0, %v4724
  %v4726 = vmul.f32 %v4697, %v4725
  %v4727 = vmul.f32 %v4702, %v4725
  %v4728 = vround.ne.pseudo %v4726
  %v4729 = vround.ne.pseudo %v4727
  %v4730 = vmax.f32 %v4728, -256.0
  %v4731 = vmax.f32 %v4729, -256.0
  %v4732 = vmin.f32 %v4730, 255.0
  %v4733 = vmin.f32 %v4731, 255.0
  %v4734 = vmul.f32 %v4732, %v4723
  %v4735 = vmul.f32 %v4733, %v4723
  %v4736 = vadd.f32 %v4400, %v4734
  %v4737 = vadd.f32 %v4401, %v4735
  %v4739 = vrot.slane %v4737, 7
  %vm4741 = vcmask 1040384
  %v4742 = vsel %vm4741, %v4736, %v4739
  %v4743 = vld [vmem:[%s18] sm:$0xff]
  %v4744 = vld [vmem:[%s18 + $0x8] sm:$0xff]
  %v4745 = vld [vmem:[%s18 + $0x10] sm:$0xff]
  %v4746 = vld [vmem:[%s18 + $0x18] sm:$0xff]
  %v4747 = vld [vmem:[%s19] sm:$0x1]
  %v4749 = vlaneseq
  %v4750 = vshrl.u32 %v4749, 7
  %v4751 = vsub.s32 0, %v4750
  %v4752 = vrot.slane %v4747, %v4751
  %v4755 = vsel %vm77, %v4742, 0
  %4757 = vmatprep.subr.mxu0 0.0
  %4758 = vmatpush1.msra.mxu0 %v4743
  %4759 = vmatprep.subr.mxu0 0.0
  %4760 = vmatpush1.msra.mxu0 %v4744
  %4761 = vmatprep.subr.mxu0 0.0
  %4762 = vmatpush1.msra.mxu0 %v4745
  %4763 = vmatprep.subr.mxu0 0.0
  %4764 = vmatpush1.msra.mxu0 %v4746
  %4765 = vmatprep.subr.mxu0 0.0
  %4766 = vmatpush1.msra.mxu0 0.0
  %4767 = vmatprep.subr.mxu0 0.0
  %4768 = vmatpush1.msra.mxu0 0.0
  %4769 = vmatprep.subr.mxu0 0.0
  %4770 = vmatpush1.msra.mxu0 0.0
  %4771 = vmatprep.subr.mxu0 0.0
  %4772 = vmatpush1.msra.mxu0 0.0
  %4773 = vmatprep.subr.mxu0 0.0
  %4774 = vmatpush1.msra.mxu0 0.0
  %4775 = vmatprep.subr.mxu0 0.0
  %4776 = vmatpush1.msra.mxu0 0.0
  %4777 = vmatprep.subr.mxu0 0.0
  %4778 = vmatpush1.msra.mxu0 0.0
  %4779 = vmatprep.subr.mxu0 0.0
  %4780 = vmatpush1.msra.mxu0 0.0
  %4781 = vmatprep.subr.mxu0 0.0
  %4782 = vmatpush1.msra.mxu0 0.0
  %4783 = vmatprep.subr.mxu0 0.0
  %4784 = vmatpush1.msra.mxu0 0.0
  %4785 = vmatprep.subr.mxu0 0.0
  %4786 = vmatpush1.msra.mxu0 0.0
  %4787 = vmatprep.subr.mxu0 0.0
  %4788 = vmatpush1.msra.mxu0 0.0
  %4789 = vmatprep.subr.mxu0 0.0
  %4790 = vmatpush1.msra.mxu0 0.0
  %4791 = vmatprep.subr.mxu0 0.0
  %4792 = vmatpush1.msra.mxu0 0.0
  %4793 = vmatprep.subr.mxu0 0.0
  %4794 = vmatpush1.msra.mxu0 0.0
  %4795 = vmatprep.subr.mxu0 0.0
  %4796 = vmatpush1.msra.mxu0 0.0
  %4797 = vmatprep.subr.mxu0 0.0
  %4798 = vmatpush1.msra.mxu0 0.0
  %4799 = vmatprep.subr.mxu0 0.0
  %4800 = vmatpush1.msra.mxu0 0.0
  %4801 = vmatprep.subr.mxu0 0.0
  %4802 = vmatpush1.msra.mxu0 0.0
  %4803 = vmatprep.subr.mxu0 0.0
  %4804 = vmatpush1.msra.mxu0 0.0
  %4805 = vmatprep.subr.mxu0 0.0
  %4806 = vmatpush1.msra.mxu0 0.0
  %4807 = vmatprep.subr.mxu0 0.0
  %4808 = vmatpush1.msra.mxu0 0.0
  %4809 = vmatprep.subr.mxu0 0.0
  %4810 = vmatpush1.msra.mxu0 0.0
  %4811 = vmatprep.subr.mxu0 0.0
  %4812 = vmatpush1.msra.mxu0 0.0
  %4813 = vmatprep.subr.mxu0 0.0
  %4814 = vmatpush1.msra.mxu0 0.0
  %4815 = vmatprep.subr.mxu0 0.0
  %4816 = vmatpush1.msra.mxu0 0.0
  %4817 = vmatprep.subr.mxu0 0.0
  %4818 = vmatpush1.msra.mxu0 0.0
  %4819 = vmatprep.subr.mxu0 0.0
  %4820 = vmatpush1.msra.mxu0 0.0
  %4821 = vmatprep.mubr.f32.mxu0 0.0
  %4822 = vmatmul.mubr.f32.gmra.mrb[0].mxu0 %v4755
  %v4823 = vpop.f32.mrb[0].mxu0
  %v4824 = vadd.f32 %v4752, %v4823
  %v4825 = vpop.f32.mrb[0].mxu0
  %4826 = vdwg.mxu0
  %vm4827 = vcmask 9216
  %4828 = vst.msk [vmem:[%s20] sm:$0x3] %vm4827, %v4824
  // Predicated region
  $region82: #{bert_pallas_forward.1} parent=0 // pred_check
    _
  $region83: #{bert_pallas_forward.1} parent=0 // pred_check_branch
    %4830 = sbr.rel (0) target = $region85
  $region84: #{bert_pallas_forward.1} parent=0 // pred_region
    _
  $region85: #{bert_pallas_forward.1} parent=0 // pred_fallthru
    _
  // Predicated region
  $region86: #{bert_pallas_forward.1} parent=0 // pred_check
    _
  $region87: #{bert_pallas_forward.1} parent=0 // pred_check_branch
    %4832 = sbr.rel (0) target = $region89
  $region88: #{bert_pallas_forward.1} parent=0 // pred_region
    _
  $region89: #{bert_pallas_forward.1} parent=0 // pred_fallthru
    _

</llo_original>
